<compile_context>
chip_gen: v5e
topology: v5e:2x2
jax: 0.10.0
libtpu: 0.0.40
codegen_flags: <defaults>
</compile_context>

<pallas_src>
import functools

import jax
import jax.numpy as jnp
from jax.experimental import pallas as pl
from jax.experimental.pallas import tpu as pltpu

_LANE = 128
_SMALL_INPUT_BYTES = 2 * 1024 * 1024  # below this, fused jnp beats a kernel launch


def _abs_kernel(x_ref, o_ref):
    o_ref[...] = jnp.abs(x_ref[...])


def _abs_eps_kernel(x_ref, o_ref, *, eps):
    x = x_ref[...]
    o_ref[...] = jnp.abs(x) + jnp.asarray(eps, x.dtype)


def _block_params():
    """Generation-aware block / VMEM sizing for this mem-bound kernel."""
    block_bytes = 4 * 1024 * 1024        # ~4 MiB/block -> 16 MiB double-buffered
    vmem_limit = 32 * 1024 * 1024
    try:
        info = pltpu.get_tpu_info()
        vmem_cap = getattr(info, "vmem_capacity_bytes", None)
        # v7x: 64 MiB physical VMEM but 3.2 TB/s HBM per TC, so the ~0.35 us
        # per-grid-step overhead is visible at 4 MiB; use 8 MiB blocks there.
        if vmem_cap is not None and vmem_cap <= 64 * 1024 * 1024:
            block_bytes = 8 * 1024 * 1024   # 4 bufs x 8 MiB = 32 MiB
            vmem_limit = 48 * 1024 * 1024   # keep compiler-scratch headroom
    except Exception:
        pass
    return block_bytes, vmem_limit


def abs_nlin(x: jax.Array) -> jax.Array:
    """Pallas implementation of AbsNlin.forward: abs(x) + 1e-16."""
    orig_shape = x.shape
    # torch promotes integer tensors on `abs(x) + 1e-16`; match with float32.
    if not jnp.issubdtype(x.dtype, jnp.floating):
        x = x.astype(jnp.float32)
    dtype = x.dtype
    itemsize = jnp.dtype(dtype).itemsize
    n = x.size

    eps = 1e-16
    add_eps = float(jnp.asarray(eps, dtype)) != 0.0  # 0 exactly for bf16/f16/fp8

    def jnp_fallback(flat):
        r = jnp.abs(flat)
        if add_eps:
            r = r + jnp.asarray(eps, dtype)
        return r.reshape(orig_shape)

    # Minimum packed sublane count: 8 for 32-bit, 16 for 16-bit, 32 for 8-bit.
    sub_min = max(8, 32 // itemsize)
    min_tile = sub_min * _LANE
    n_aligned = (n // min_tile) * min_tile
    tail_len = n - n_aligned

    # Small inputs: pallas_call fixed cost dominates; XLA's fused elementwise
    # already hits roofline in one pass.  Unaligned inputs: avoid any extra
    # full-array HBM pass (pad/concat) by taking the same fused path.
    if n_aligned * itemsize < _SMALL_INPUT_BYTES or tail_len:
        return jnp_fallback(x.reshape(-1))

    x_flat = x.reshape(-1)

    # Widest lane-dense last dim (multiple of 128) keeping rows % sub_min == 0.
    W = _LANE
    for cand in (8192, 4096, 2048, 1024, 512, 256, 128):
        if n_aligned % (cand * sub_min) == 0:
            W = cand
            break
    rows = n_aligned // W

    block_bytes, vmem_limit = _block_params()
    target_rows = max(sub_min, block_bytes // (W * itemsize))
    TR = min(rows, target_rows)
    TR = max(sub_min, (TR // sub_min) * sub_min)
    n_blocks = pl.cdiv(rows, TR)

    # Keep the "parallel" grid evenly divisible by 2 so v7x's two TensorCores
    # both stream (HBM bandwidth is per-TC on v7x).
    if n_blocks == 1 and rows >= 2 * sub_min and rows * W * itemsize >= 4 * 1024 * 1024:
        half = -(-rows // 2)
        TR = max(sub_min, ((half + sub_min - 1) // sub_min) * sub_min)
        n_blocks = pl.cdiv(rows, TR)
    elif n_blocks > 1 and n_blocks % 2 == 1:
        tr2 = -(-rows // (n_blocks + 1))
        tr2 = max(sub_min, ((tr2 + sub_min - 1) // sub_min) * sub_min)
        if pl.cdiv(rows, tr2) % 2 == 0:
            TR = tr2
            n_blocks = pl.cdiv(rows, TR)

    kernel = functools.partial(_abs_eps_kernel, eps=eps) if add_eps else _abs_kernel

    out2d = pl.pallas_call(
        kernel,
        out_shape=jax.ShapeDtypeStruct((rows, W), dtype),
        grid_spec=pltpu.PrefetchScalarGridSpec(
            num_scalar_prefetch=0,
            grid=(n_blocks,),
            in_specs=[pl.BlockSpec((TR, W), lambda i: (i, 0))],
            out_specs=pl.BlockSpec((TR, W), lambda i: (i, 0)),
        ),
        compiler_params=pltpu.CompilerParams(
            dimension_semantics=("parallel",),
            vmem_limit_bytes=vmem_limit,
        ),
        cost_estimate=pl.CostEstimate(
            flops=2 * n_aligned,
            transcendentals=0,
            bytes_accessed=2 * n_aligned * itemsize,
        ),
    )(x_flat.reshape(rows, W))

    return out2d.reshape(orig_shape)


if __name__ == "__main__":
    key = jax.random.PRNGKey(0)

    # Module-consistent small NCHW input (2, 4, 16, 16): fused-jnp fast path.
    x = jax.random.normal(key, (2, 4, 16, 16), dtype=jnp.float32)
    out = jax.block_until_ready(abs_nlin(x))
    ref = jnp.abs(x) + 1e-16
    assert out.shape == x.shape and out.dtype == x.dtype
    assert jnp.allclose(out, ref, atol=0.0, rtol=0.0)

    # Larger aligned input that exercises the Pallas kernel path (8 MiB f32).
    k2 = jax.random.split(key, 2)[1]
    y = jax.random.normal(k2, (8, 16, 128, 128), dtype=jnp.float32)
    out_y = jax.block_until_ready(abs_nlin(y))
    assert jnp.allclose(out_y, jnp.abs(y) + 1e-16, atol=0.0, rtol=0.0)

    # Odd-shaped / unaligned input exercises the no-extra-HBM-pass fallback.
    z = jax.random.normal(key, (3, 5, 7, 11), dtype=jnp.float32)
    out_z = jax.block_until_ready(abs_nlin(z))
    assert jnp.allclose(out_z, jnp.abs(z) + 1e-16, atol=0.0, rtol=0.0)

    print("KERNEL_OK")
</pallas_src>

<mosaic_0001>
module attributes {stable_mosaic.version = 11 : i64} {
  func.func @_abs_eps_kernel(%arg0: i32, %arg1: memref<128x8192xf32, #tpu.memory_space<vmem>>, %arg2: memref<128x8192xf32, #tpu.memory_space<vmem>>) attributes {dimension_semantics = [#tpu.dimension_semantics<parallel>], iteration_bounds = array<i64: 2>, scalar_prefetch = 0 : i64, scratch_operands = 0 : i64, tpu.core_type = #tpu.core_type<tc>, window_params = [{transform_indices = @transform_0, window_bounds = array<i64: 128, 8192>}, {transform_indices = @transform_1, window_bounds = array<i64: 128, 8192>}]} {
    %c0 = arith.constant 0 : index
    %c0_0 = arith.constant 0 : index
    %0 = vector.load %arg1[%c0, %c0_0] : memref<128x8192xf32, #tpu.memory_space<vmem>>, vector<128x8192xf32>
    %1 = math.absf %0 : vector<128x8192xf32>
    %cst = arith.constant 1.000000e-16 : f32
    %2 = vector.broadcast %cst : f32 to vector<128x8192xf32>
    %3 = arith.addf %1, %2 : vector<128x8192xf32>
    %c0_1 = arith.constant 0 : index
    %c0_2 = arith.constant 0 : index
    %4 = vector.load %arg2[%c0_1, %c0_2] : memref<128x8192xf32, #tpu.memory_space<vmem>>, vector<128x8192xf32>
    tpu.vector_store %arg2[%c0_1, %c0_2], %3 {strides = array<i32>} : memref<128x8192xf32, #tpu.memory_space<vmem>>, vector<128x8192xf32>,
    return
  }
  func.func @transform_0(%arg0: i32) -> (i32, i32) {
    %c0_i32 = arith.constant 0 : i32
    %c0_i32_0 = arith.constant 0 : i32
    return %arg0, %c0_i32 : i32, i32
  }
  func.func @transform_1(%arg0: i32) -> (i32, i32) {
    %c0_i32 = arith.constant 0 : i32
    %c0_i32_0 = arith.constant 0 : i32
    return %arg0, %c0_i32 : i32, i32
  }
}

</mosaic_0001>

<llo_original>
// kernel: tpu_custom_call.1
$region0: #{tpu_custom_call.1}
  #allocation0 [shape = 'u32[]', space=smem, size = 0x4, offset = 0x4, fixed_abs, tag = 'smem constant byte address 0x4 - core index']
  #allocation1 [shape = 'u32[72,128]{1,0:T(1,128)}', space=vmem, size = 0x9000, scoped, tag = 'internal scratch']
  %s0 = inlined_call_operand.hbm [shape: f32[256,8192], index: 0, kind: input, shape index: {}]
  %s1 = inlined_call_operand.hbm [shape: f32[256,8192], index: 1, kind: output, shape index: {}]
  %s2 = sld [smem:[#allocation0]]
  $region41: #{tpu_custom_call.1} parent=0
    _
  %s4 = ssub.s32 1, %s2
  %s5 = scalar_select 0, %s4, %s2
  $region1: #{tpu_custom_call.1} parent=0
    #allocation2 [shape = 'u8[8388608]{0}', space=vmem, size = 0x800000, scoped, tag = 'input window, operand 0']
    #allocation3 [shape = 's32[2]{0}', space=sflag, size = 0x8, scoped, tag = 'scoped memory for tpu_custom_call.1']
    #allocation4 [shape = 's32[2]{0}', space=sflag, size = 0x8, scoped, tag = 'scoped memory for tpu_custom_call.1']
    #allocation5 [shape = 'u8[8388608]{0}', space=vmem, size = 0x800000, scoped, tag = 'output window, operand 0']
    %6 = vsyncpa [#allocation3], 0
    %s7 = scalar_lea.sflag [#allocation3], 1
    %8 = vsyncpa %s7, 0
    %9 = vsyncpa [#allocation4], 0
    %s10 = scalar_lea.sflag [#allocation4], 1
    %11 = vsyncpa %s10, 0
    loop: start=0, step=1, limit=4
    $region2: #{tpu_custom_call.1} parent=1 // loop_pre_header
      _
    $region3: #{tpu_custom_call.1} parent=1 // loop_header
      %s13 = sphi 0, %s17
      %p14 = scmp.ge.s32.totalorder %s13, 4
      %s23 = sphi 0, %s25
      %s26 = sphi 0, %s23
      %s27 = sphi 0, %s26
      %s43 = sphi 0, %s27
      %s49 = sphi 0, %s51
      %s52 = sphi 0, %s49
      %s53 = sphi 0, %s52
      %s69 = sphi 0, %s53
    $region4: #{tpu_custom_call.1} parent=1 // loop_header_branch
      %16 = sbr.rel (%p14) target = $region8
    $region5: #{tpu_custom_call.1} parent=1 // loop_body
      %s18 = ssub.s32 %s13, 1
      %s19 = ssub.s32 %s13, 2
      %s20 = sadd.s32 %s13, 1
      %s21 = ssub.s32 %s13, %s20
      %p22 = scmp.eq.s32.totalorder %s21, 0
      %s24 = sadd.s32 %s23, 1
      %s25 = scalar_select %p22, %s23, %s24
      %p28 = pneg %p22
      %p29 = scmp.eq.s32.totalorder %s13, 1
      %p30 = por %p28, %p29
      %p31 = scmp.ne.s32.totalorder %s23, %s26
      %p32 = scmp.eq.s32.totalorder %s13, 0
      %p33 = por %p31, %p32
      %p34 = scmp.ne.s32.totalorder %s23, %s26
      %p35 = scmp.eq.s32.totalorder %s18, 1
      %p36 = por %p34, %p35
      %p37 = scmp.ne.s32.totalorder %s26, %s27
      %p38 = scmp.eq.s32.totalorder %s18, 0
      %p39 = por %p37, %p38
      %p40 = scmp.ne.s32.totalorder %s26, %s27
      %p41 = scmp.eq.s32.totalorder %s19, 1
      %p42 = por %p40, %p41
      %p44 = scmp.ne.s32.totalorder %s27, %s43
      %p45 = scmp.eq.s32.totalorder %s19, 0
      %p46 = por %p44, %p45
      %s47 = ssub.s32 %s13, %s20
      %p48 = scmp.eq.s32.totalorder %s47, 0
      %s50 = sadd.s32 %s49, 1
      %s51 = scalar_select %p48, %s49, %s50
      %p54 = pneg %p48
      %p55 = scmp.eq.s32.totalorder %s13, 1
      %p56 = por %p54, %p55
      %p57 = scmp.ne.s32.totalorder %s49, %s52
      %p58 = scmp.eq.s32.totalorder %s13, 0
      %p59 = por %p57, %p58
      %p60 = scmp.ne.s32.totalorder %s49, %s52
      %p61 = scmp.eq.s32.totalorder %s18, 1
      %p62 = por %p60, %p61
      %p63 = scmp.ne.s32.totalorder %s52, %s53
      %p64 = scmp.eq.s32.totalorder %s18, 0
      %p65 = por %p63, %p64
      %p66 = scmp.ne.s32.totalorder %s52, %s53
      %p67 = scmp.eq.s32.totalorder %s19, 1
      %p68 = por %p66, %p67
      %p70 = scmp.ne.s32.totalorder %s53, %s69
      %p71 = scmp.eq.s32.totalorder %s19, 0
      %p72 = por %p70, %p71
      %p73 = scmp.le.s32.totalorder 1, %s13
      %p74 = scmp.lt.s32.totalorder %s13, 3
      %p75 = pnand %p73, %p74
      %p76 = pneg %p75
      // Predicated region
      $region9: #{tpu_custom_call.1} parent=5 // pred_check
        _
      $region10: #{tpu_custom_call.1} parent=5 // pred_check_branch
        %78 = sbr.rel (%p75) target = $region12
      $region11: #{tpu_custom_call.1} parent=5 // pred_region
        %s79 = ssub.s32 %s13, 1
      $region12: #{tpu_custom_call.1} parent=5 // pred_fallthru
        _
      %p80 = scmp.lt.s32.totalorder %s13, 2
      // Predicated region
      $region13: #{tpu_custom_call.1} parent=5 // pred_check
        %p81 = pneg %p80
      $region14: #{tpu_custom_call.1} parent=5 // pred_check_branch
        %83 = sbr.rel (%p81) target = $region16
      $region15: #{tpu_custom_call.1} parent=5 // pred_region
        // Predicated region
        $region17: #{tpu_custom_call.1} parent=15 // pred_check
          %p84 = pneg %p33
        $region18: #{tpu_custom_call.1} parent=15 // pred_check_branch
          %86 = sbr.rel (%p84) target = $region20
        $region19: #{tpu_custom_call.1} parent=15 // pred_region
          %s87 = sand.u32 %s23, 1
          %s88 = scalar_lea.sflag [#allocation3], %s87
          %s89 = sand.u32 %s23, 1
          %s90 = smul.addr %s89, 8192
          %s91 = scalar_lea.vmem [#allocation2], %s90
          %s92 = smul.u32 16, %s13
          %94 = vsyncadd %s88, 0
          %s95 = smul.addr %s92, 64
          %s96 = smul.addr %s95, 8
          %s97 = scalar_lea.hbm %s0, %s96
          %s98 = sshll.u32 %s97, 4
          %s99 = int_to_ptr.hbm [resolvable:$true] %s98
          %s100 = sshll.u32 %s91, 4
          %s101 = int_to_ptr.vmem [resolvable:$true] %s100
          %106 = dma.hbm_to_vmem [thread:$0]  %s99, 131072, %s101, %s88, 8192, 8192, 512
        $region20: #{tpu_custom_call.1} parent=15 // pred_fallthru
          _
      $region16: #{tpu_custom_call.1} parent=5 // pred_fallthru
        _
      %p107 = scmp.le.s32.totalorder 1, %s13
      %p108 = scmp.lt.s32.totalorder %s13, 3
      %p109 = pnand %p107, %p108
      %p110 = pneg %p109
      // Predicated region
      $region21: #{tpu_custom_call.1} parent=5 // pred_check
        _
      $region22: #{tpu_custom_call.1} parent=5 // pred_check_branch
        %112 = sbr.rel (%p109) target = $region24
      $region23: #{tpu_custom_call.1} parent=5 // pred_region
        %s113 = ssub.s32 %s13, 1
        %s114 = sand.u32 %s26, 1
        %s115 = scalar_lea.sflag [#allocation3], %s114
        %s116 = sand.u32 %s26, 1
        %s117 = smul.addr %s116, 8192
        %s118 = scalar_lea.vmem [#allocation2], %s117
        // Predicated region
        $region25: #{tpu_custom_call.1} parent=23 // pred_check
          %p119 = pneg %p39
        $region26: #{tpu_custom_call.1} parent=23 // pred_check_branch
          %121 = sbr.rel (%p119) target = $region28
        $region27: #{tpu_custom_call.1} parent=23 // pred_region
          %123 = dma.done %s115, 131072
        $region28: #{tpu_custom_call.1} parent=23 // pred_fallthru
          _
        %s124 = sand.u32 %s26, 1
        %s125 = scalar_lea.sflag [#allocation3], %s124
        %s126 = sand.u32 %s26, 1
        %s127 = smul.addr %s126, 8192
        %s128 = scalar_lea.vmem [#allocation2], %s127
        %p129 = pneg %p39
        %p130 = pneg %p36
        %p131 = pneg %p65
        %p132 = pneg %p62
        %s133 = sand.u32 %s52, 1
        %s134 = scalar_lea.sflag [#allocation4], %s133
        %s135 = sand.u32 %s52, 1
        %s136 = smul.addr %s135, 8192
        %s137 = scalar_lea.vmem [#allocation5], %s136
        %s138 = smul.u32 16, %s18
        %s139 = smul.u32 16, %s18
        %v140 = vld [vmem:[%s118] sm:$0xff]
        %v141 = vld [vmem:[%s118 + $0x8] sm:$0xff]
        %v142 = vld [vmem:[%s118 + $0x10] sm:$0xff]
        %v143 = vld [vmem:[%s118 + $0x18] sm:$0xff]
        %v144 = vld [vmem:[%s118 + $0x20] sm:$0xff]
        %v145 = vld [vmem:[%s118 + $0x28] sm:$0xff]
        %v146 = vld [vmem:[%s118 + $0x30] sm:$0xff]
        %v147 = vld [vmem:[%s118 + $0x38] sm:$0xff]
        %v148 = vld [vmem:[%s118 + $0x40] sm:$0xff]
        %v149 = vld [vmem:[%s118 + $0x48] sm:$0xff]
        %v150 = vld [vmem:[%s118 + $0x50] sm:$0xff]
        %v151 = vld [vmem:[%s118 + $0x58] sm:$0xff]
        %v152 = vld [vmem:[%s118 + $0x60] sm:$0xff]
        %v153 = vld [vmem:[%s118 + $0x68] sm:$0xff]
        %v154 = vld [vmem:[%s118 + $0x70] sm:$0xff]
        %v155 = vld [vmem:[%s118 + $0x78] sm:$0xff]
        %v156 = vld [vmem:[%s118 + $0x80] sm:$0xff]
        %v157 = vld [vmem:[%s118 + $0x88] sm:$0xff]
        %v158 = vld [vmem:[%s118 + $0x90] sm:$0xff]
        %v159 = vld [vmem:[%s118 + $0x98] sm:$0xff]
        %v160 = vld [vmem:[%s118 + $0xa0] sm:$0xff]
        %v161 = vld [vmem:[%s118 + $0xa8] sm:$0xff]
        %v162 = vld [vmem:[%s118 + $0xb0] sm:$0xff]
        %v163 = vld [vmem:[%s118 + $0xb8] sm:$0xff]
        %v164 = vld [vmem:[%s118 + $0xc0] sm:$0xff]
        %v165 = vld [vmem:[%s118 + $0xc8] sm:$0xff]
        %v166 = vld [vmem:[%s118 + $0xd0] sm:$0xff]
        %v167 = vld [vmem:[%s118 + $0xd8] sm:$0xff]
        %v168 = vld [vmem:[%s118 + $0xe0] sm:$0xff]
        %v169 = vld [vmem:[%s118 + $0xe8] sm:$0xff]
        %v170 = vld [vmem:[%s118 + $0xf0] sm:$0xff]
        %v171 = vld [vmem:[%s118 + $0xf8] sm:$0xff]
        %v172 = vld [vmem:[%s118 + $0x100] sm:$0xff]
        %v173 = vld [vmem:[%s118 + $0x108] sm:$0xff]
        %v174 = vld [vmem:[%s118 + $0x110] sm:$0xff]
        %v175 = vld [vmem:[%s118 + $0x118] sm:$0xff]
        %v176 = vld [vmem:[%s118 + $0x120] sm:$0xff]
        %v177 = vld [vmem:[%s118 + $0x128] sm:$0xff]
        %v178 = vld [vmem:[%s118 + $0x130] sm:$0xff]
        %v179 = vld [vmem:[%s118 + $0x138] sm:$0xff]
        %v180 = vld [vmem:[%s118 + $0x140] sm:$0xff]
        %v181 = vld [vmem:[%s118 + $0x148] sm:$0xff]
        %v182 = vld [vmem:[%s118 + $0x150] sm:$0xff]
        %v183 = vld [vmem:[%s118 + $0x158] sm:$0xff]
        %v184 = vld [vmem:[%s118 + $0x160] sm:$0xff]
        %v185 = vld [vmem:[%s118 + $0x168] sm:$0xff]
        %v186 = vld [vmem:[%s118 + $0x170] sm:$0xff]
        %v187 = vld [vmem:[%s118 + $0x178] sm:$0xff]
        %v188 = vld [vmem:[%s118 + $0x180] sm:$0xff]
        %v189 = vld [vmem:[%s118 + $0x188] sm:$0xff]
        %v190 = vld [vmem:[%s118 + $0x190] sm:$0xff]
        %v191 = vld [vmem:[%s118 + $0x198] sm:$0xff]
        %v192 = vld [vmem:[%s118 + $0x1a0] sm:$0xff]
        %v193 = vld [vmem:[%s118 + $0x1a8] sm:$0xff]
        %v194 = vld [vmem:[%s118 + $0x1b0] sm:$0xff]
        %v195 = vld [vmem:[%s118 + $0x1b8] sm:$0xff]
        %v196 = vld [vmem:[%s118 + $0x1c0] sm:$0xff]
        %v197 = vld [vmem:[%s118 + $0x1c8] sm:$0xff]
        %v198 = vld [vmem:[%s118 + $0x1d0] sm:$0xff]
        %v199 = vld [vmem:[%s118 + $0x1d8] sm:$0xff]
        %v200 = vld [vmem:[%s118 + $0x1e0] sm:$0xff]
        %v201 = vld [vmem:[%s118 + $0x1e8] sm:$0xff]
        %v202 = vld [vmem:[%s118 + $0x1f0] sm:$0xff]
        %v203 = vld [vmem:[%s118 + $0x1f8] sm:$0xff]
        %v204 = vld [vmem:[%s118 + $0x200] sm:$0xff]
        %v205 = vld [vmem:[%s118 + $0x208] sm:$0xff]
        %v206 = vld [vmem:[%s118 + $0x210] sm:$0xff]
        %v207 = vld [vmem:[%s118 + $0x218] sm:$0xff]
        %v208 = vld [vmem:[%s118 + $0x220] sm:$0xff]
        %v209 = vld [vmem:[%s118 + $0x228] sm:$0xff]
        %v210 = vld [vmem:[%s118 + $0x230] sm:$0xff]
        %v211 = vld [vmem:[%s118 + $0x238] sm:$0xff]
        %v212 = vld [vmem:[%s118 + $0x240] sm:$0xff]
        %v213 = vld [vmem:[%s118 + $0x248] sm:$0xff]
        %v214 = vld [vmem:[%s118 + $0x250] sm:$0xff]
        %v215 = vld [vmem:[%s118 + $0x258] sm:$0xff]
        %v216 = vld [vmem:[%s118 + $0x260] sm:$0xff]
        %v217 = vld [vmem:[%s118 + $0x268] sm:$0xff]
        %v218 = vld [vmem:[%s118 + $0x270] sm:$0xff]
        %v219 = vld [vmem:[%s118 + $0x278] sm:$0xff]
        %v220 = vld [vmem:[%s118 + $0x280] sm:$0xff]
        %v221 = vld [vmem:[%s118 + $0x288] sm:$0xff]
        %v222 = vld [vmem:[%s118 + $0x290] sm:$0xff]
        %v223 = vld [vmem:[%s118 + $0x298] sm:$0xff]
        %v224 = vld [vmem:[%s118 + $0x2a0] sm:$0xff]
        %v225 = vld [vmem:[%s118 + $0x2a8] sm:$0xff]
        %v226 = vld [vmem:[%s118 + $0x2b0] sm:$0xff]
        %v227 = vld [vmem:[%s118 + $0x2b8] sm:$0xff]
        %v228 = vld [vmem:[%s118 + $0x2c0] sm:$0xff]
        %v229 = vld [vmem:[%s118 + $0x2c8] sm:$0xff]
        %v230 = vld [vmem:[%s118 + $0x2d0] sm:$0xff]
        %v231 = vld [vmem:[%s118 + $0x2d8] sm:$0xff]
        %v232 = vld [vmem:[%s118 + $0x2e0] sm:$0xff]
        %v233 = vld [vmem:[%s118 + $0x2e8] sm:$0xff]
        %v234 = vld [vmem:[%s118 + $0x2f0] sm:$0xff]
        %v235 = vld [vmem:[%s118 + $0x2f8] sm:$0xff]
        %v236 = vld [vmem:[%s118 + $0x300] sm:$0xff]
        %v237 = vld [vmem:[%s118 + $0x308] sm:$0xff]
        %v238 = vld [vmem:[%s118 + $0x310] sm:$0xff]
        %v239 = vld [vmem:[%s118 + $0x318] sm:$0xff]
        %v240 = vld [vmem:[%s118 + $0x320] sm:$0xff]
        %v241 = vld [vmem:[%s118 + $0x328] sm:$0xff]
        %v242 = vld [vmem:[%s118 + $0x330] sm:$0xff]
        %v243 = vld [vmem:[%s118 + $0x338] sm:$0xff]
        %v244 = vld [vmem:[%s118 + $0x340] sm:$0xff]
        %v245 = vld [vmem:[%s118 + $0x348] sm:$0xff]
        %v246 = vld [vmem:[%s118 + $0x350] sm:$0xff]
        %v247 = vld [vmem:[%s118 + $0x358] sm:$0xff]
        %v248 = vld [vmem:[%s118 + $0x360] sm:$0xff]
        %v249 = vld [vmem:[%s118 + $0x368] sm:$0xff]
        %v250 = vld [vmem:[%s118 + $0x370] sm:$0xff]
        %v251 = vld [vmem:[%s118 + $0x378] sm:$0xff]
        %v252 = vld [vmem:[%s118 + $0x380] sm:$0xff]
        %v253 = vld [vmem:[%s118 + $0x388] sm:$0xff]
        %v254 = vld [vmem:[%s118 + $0x390] sm:$0xff]
        %v255 = vld [vmem:[%s118 + $0x398] sm:$0xff]
        %v256 = vld [vmem:[%s118 + $0x3a0] sm:$0xff]
        %v257 = vld [vmem:[%s118 + $0x3a8] sm:$0xff]
        %v258 = vld [vmem:[%s118 + $0x3b0] sm:$0xff]
        %v259 = vld [vmem:[%s118 + $0x3b8] sm:$0xff]
        %v260 = vld [vmem:[%s118 + $0x3c0] sm:$0xff]
        %v261 = vld [vmem:[%s118 + $0x3c8] sm:$0xff]
        %v262 = vld [vmem:[%s118 + $0x3d0] sm:$0xff]
        %v263 = vld [vmem:[%s118 + $0x3d8] sm:$0xff]
        %v264 = vld [vmem:[%s118 + $0x3e0] sm:$0xff]
        %v265 = vld [vmem:[%s118 + $0x3e8] sm:$0xff]
        %v266 = vld [vmem:[%s118 + $0x3f0] sm:$0xff]
        %v267 = vld [vmem:[%s118 + $0x3f8] sm:$0xff]
        %v268 = vld [vmem:[%s118 + $0x400] sm:$0xff]
        %v269 = vld [vmem:[%s118 + $0x408] sm:$0xff]
        %v270 = vld [vmem:[%s118 + $0x410] sm:$0xff]
        %v271 = vld [vmem:[%s118 + $0x418] sm:$0xff]
        %v272 = vld [vmem:[%s118 + $0x420] sm:$0xff]
        %v273 = vld [vmem:[%s118 + $0x428] sm:$0xff]
        %v274 = vld [vmem:[%s118 + $0x430] sm:$0xff]
        %v275 = vld [vmem:[%s118 + $0x438] sm:$0xff]
        %v276 = vld [vmem:[%s118 + $0x440] sm:$0xff]
        %v277 = vld [vmem:[%s118 + $0x448] sm:$0xff]
        %v278 = vld [vmem:[%s118 + $0x450] sm:$0xff]
        %v279 = vld [vmem:[%s118 + $0x458] sm:$0xff]
        %v280 = vld [vmem:[%s118 + $0x460] sm:$0xff]
        %v281 = vld [vmem:[%s118 + $0x468] sm:$0xff]
        %v282 = vld [vmem:[%s118 + $0x470] sm:$0xff]
        %v283 = vld [vmem:[%s118 + $0x478] sm:$0xff]
        %v284 = vld [vmem:[%s118 + $0x480] sm:$0xff]
        %v285 = vld [vmem:[%s118 + $0x488] sm:$0xff]
        %v286 = vld [vmem:[%s118 + $0x490] sm:$0xff]
        %v287 = vld [vmem:[%s118 + $0x498] sm:$0xff]
        %v288 = vld [vmem:[%s118 + $0x4a0] sm:$0xff]
        %v289 = vld [vmem:[%s118 + $0x4a8] sm:$0xff]
        %v290 = vld [vmem:[%s118 + $0x4b0] sm:$0xff]
        %v291 = vld [vmem:[%s118 + $0x4b8] sm:$0xff]
        %v292 = vld [vmem:[%s118 + $0x4c0] sm:$0xff]
        %v293 = vld [vmem:[%s118 + $0x4c8] sm:$0xff]
        %v294 = vld [vmem:[%s118 + $0x4d0] sm:$0xff]
        %v295 = vld [vmem:[%s118 + $0x4d8] sm:$0xff]
        %v296 = vld [vmem:[%s118 + $0x4e0] sm:$0xff]
        %v297 = vld [vmem:[%s118 + $0x4e8] sm:$0xff]
        %v298 = vld [vmem:[%s118 + $0x4f0] sm:$0xff]
        %v299 = vld [vmem:[%s118 + $0x4f8] sm:$0xff]
        %v300 = vld [vmem:[%s118 + $0x500] sm:$0xff]
        %v301 = vld [vmem:[%s118 + $0x508] sm:$0xff]
        %v302 = vld [vmem:[%s118 + $0x510] sm:$0xff]
        %v303 = vld [vmem:[%s118 + $0x518] sm:$0xff]
        %v304 = vld [vmem:[%s118 + $0x520] sm:$0xff]
        %v305 = vld [vmem:[%s118 + $0x528] sm:$0xff]
        %v306 = vld [vmem:[%s118 + $0x530] sm:$0xff]
        %v307 = vld [vmem:[%s118 + $0x538] sm:$0xff]
        %v308 = vld [vmem:[%s118 + $0x540] sm:$0xff]
        %v309 = vld [vmem:[%s118 + $0x548] sm:$0xff]
        %v310 = vld [vmem:[%s118 + $0x550] sm:$0xff]
        %v311 = vld [vmem:[%s118 + $0x558] sm:$0xff]
        %v312 = vld [vmem:[%s118 + $0x560] sm:$0xff]
        %v313 = vld [vmem:[%s118 + $0x568] sm:$0xff]
        %v314 = vld [vmem:[%s118 + $0x570] sm:$0xff]
        %v315 = vld [vmem:[%s118 + $0x578] sm:$0xff]
        %v316 = vld [vmem:[%s118 + $0x580] sm:$0xff]
        %v317 = vld [vmem:[%s118 + $0x588] sm:$0xff]
        %v318 = vld [vmem:[%s118 + $0x590] sm:$0xff]
        %v319 = vld [vmem:[%s118 + $0x598] sm:$0xff]
        %v320 = vld [vmem:[%s118 + $0x5a0] sm:$0xff]
        %v321 = vld [vmem:[%s118 + $0x5a8] sm:$0xff]
        %v322 = vld [vmem:[%s118 + $0x5b0] sm:$0xff]
        %v323 = vld [vmem:[%s118 + $0x5b8] sm:$0xff]
        %v324 = vld [vmem:[%s118 + $0x5c0] sm:$0xff]
        %v325 = vld [vmem:[%s118 + $0x5c8] sm:$0xff]
        %v326 = vld [vmem:[%s118 + $0x5d0] sm:$0xff]
        %v327 = vld [vmem:[%s118 + $0x5d8] sm:$0xff]
        %v328 = vld [vmem:[%s118 + $0x5e0] sm:$0xff]
        %v329 = vld [vmem:[%s118 + $0x5e8] sm:$0xff]
        %v330 = vld [vmem:[%s118 + $0x5f0] sm:$0xff]
        %v331 = vld [vmem:[%s118 + $0x5f8] sm:$0xff]
        %v332 = vld [vmem:[%s118 + $0x600] sm:$0xff]
        %v333 = vld [vmem:[%s118 + $0x608] sm:$0xff]
        %v334 = vld [vmem:[%s118 + $0x610] sm:$0xff]
        %v335 = vld [vmem:[%s118 + $0x618] sm:$0xff]
        %v336 = vld [vmem:[%s118 + $0x620] sm:$0xff]
        %v337 = vld [vmem:[%s118 + $0x628] sm:$0xff]
        %v338 = vld [vmem:[%s118 + $0x630] sm:$0xff]
        %v339 = vld [vmem:[%s118 + $0x638] sm:$0xff]
        %v340 = vld [vmem:[%s118 + $0x640] sm:$0xff]
        %v341 = vld [vmem:[%s118 + $0x648] sm:$0xff]
        %v342 = vld [vmem:[%s118 + $0x650] sm:$0xff]
        %v343 = vld [vmem:[%s118 + $0x658] sm:$0xff]
        %v344 = vld [vmem:[%s118 + $0x660] sm:$0xff]
        %v345 = vld [vmem:[%s118 + $0x668] sm:$0xff]
        %v346 = vld [vmem:[%s118 + $0x670] sm:$0xff]
        %v347 = vld [vmem:[%s118 + $0x678] sm:$0xff]
        %v348 = vld [vmem:[%s118 + $0x680] sm:$0xff]
        %v349 = vld [vmem:[%s118 + $0x688] sm:$0xff]
        %v350 = vld [vmem:[%s118 + $0x690] sm:$0xff]
        %v351 = vld [vmem:[%s118 + $0x698] sm:$0xff]
        %v352 = vld [vmem:[%s118 + $0x6a0] sm:$0xff]
        %v353 = vld [vmem:[%s118 + $0x6a8] sm:$0xff]
        %v354 = vld [vmem:[%s118 + $0x6b0] sm:$0xff]
        %v355 = vld [vmem:[%s118 + $0x6b8] sm:$0xff]
        %v356 = vld [vmem:[%s118 + $0x6c0] sm:$0xff]
        %v357 = vld [vmem:[%s118 + $0x6c8] sm:$0xff]
        %v358 = vld [vmem:[%s118 + $0x6d0] sm:$0xff]
        %v359 = vld [vmem:[%s118 + $0x6d8] sm:$0xff]
        %v360 = vld [vmem:[%s118 + $0x6e0] sm:$0xff]
        %v361 = vld [vmem:[%s118 + $0x6e8] sm:$0xff]
        %v362 = vld [vmem:[%s118 + $0x6f0] sm:$0xff]
        %v363 = vld [vmem:[%s118 + $0x6f8] sm:$0xff]
        %v364 = vld [vmem:[%s118 + $0x700] sm:$0xff]
        %v365 = vld [vmem:[%s118 + $0x708] sm:$0xff]
        %v366 = vld [vmem:[%s118 + $0x710] sm:$0xff]
        %v367 = vld [vmem:[%s118 + $0x718] sm:$0xff]
        %v368 = vld [vmem:[%s118 + $0x720] sm:$0xff]
        %v369 = vld [vmem:[%s118 + $0x728] sm:$0xff]
        %v370 = vld [vmem:[%s118 + $0x730] sm:$0xff]
        %v371 = vld [vmem:[%s118 + $0x738] sm:$0xff]
        %v372 = vld [vmem:[%s118 + $0x740] sm:$0xff]
        %v373 = vld [vmem:[%s118 + $0x748] sm:$0xff]
        %v374 = vld [vmem:[%s118 + $0x750] sm:$0xff]
        %v375 = vld [vmem:[%s118 + $0x758] sm:$0xff]
        %v376 = vld [vmem:[%s118 + $0x760] sm:$0xff]
        %v377 = vld [vmem:[%s118 + $0x768] sm:$0xff]
        %v378 = vld [vmem:[%s118 + $0x770] sm:$0xff]
        %v379 = vld [vmem:[%s118 + $0x778] sm:$0xff]
        %v380 = vld [vmem:[%s118 + $0x780] sm:$0xff]
        %v381 = vld [vmem:[%s118 + $0x788] sm:$0xff]
        %v382 = vld [vmem:[%s118 + $0x790] sm:$0xff]
        %v383 = vld [vmem:[%s118 + $0x798] sm:$0xff]
        %v384 = vld [vmem:[%s118 + $0x7a0] sm:$0xff]
        %v385 = vld [vmem:[%s118 + $0x7a8] sm:$0xff]
        %v386 = vld [vmem:[%s118 + $0x7b0] sm:$0xff]
        %v387 = vld [vmem:[%s118 + $0x7b8] sm:$0xff]
        %v388 = vld [vmem:[%s118 + $0x7c0] sm:$0xff]
        %v389 = vld [vmem:[%s118 + $0x7c8] sm:$0xff]
        %v390 = vld [vmem:[%s118 + $0x7d0] sm:$0xff]
        %v391 = vld [vmem:[%s118 + $0x7d8] sm:$0xff]
        %v392 = vld [vmem:[%s118 + $0x7e0] sm:$0xff]
        %v393 = vld [vmem:[%s118 + $0x7e8] sm:$0xff]
        %v394 = vld [vmem:[%s118 + $0x7f0] sm:$0xff]
        %v395 = vld [vmem:[%s118 + $0x7f8] sm:$0xff]
        %v396 = vld [vmem:[%s118 + $0x800] sm:$0xff]
        %v397 = vld [vmem:[%s118 + $0x808] sm:$0xff]
        %v398 = vld [vmem:[%s118 + $0x810] sm:$0xff]
        %v399 = vld [vmem:[%s118 + $0x818] sm:$0xff]
        %v400 = vld [vmem:[%s118 + $0x820] sm:$0xff]
        %v401 = vld [vmem:[%s118 + $0x828] sm:$0xff]
        %v402 = vld [vmem:[%s118 + $0x830] sm:$0xff]
        %v403 = vld [vmem:[%s118 + $0x838] sm:$0xff]
        %v404 = vld [vmem:[%s118 + $0x840] sm:$0xff]
        %v405 = vld [vmem:[%s118 + $0x848] sm:$0xff]
        %v406 = vld [vmem:[%s118 + $0x850] sm:$0xff]
        %v407 = vld [vmem:[%s118 + $0x858] sm:$0xff]
        %v408 = vld [vmem:[%s118 + $0x860] sm:$0xff]
        %v409 = vld [vmem:[%s118 + $0x868] sm:$0xff]
        %v410 = vld [vmem:[%s118 + $0x870] sm:$0xff]
        %v411 = vld [vmem:[%s118 + $0x878] sm:$0xff]
        %v412 = vld [vmem:[%s118 + $0x880] sm:$0xff]
        %v413 = vld [vmem:[%s118 + $0x888] sm:$0xff]
        %v414 = vld [vmem:[%s118 + $0x890] sm:$0xff]
        %v415 = vld [vmem:[%s118 + $0x898] sm:$0xff]
        %v416 = vld [vmem:[%s118 + $0x8a0] sm:$0xff]
        %v417 = vld [vmem:[%s118 + $0x8a8] sm:$0xff]
        %v418 = vld [vmem:[%s118 + $0x8b0] sm:$0xff]
        %v419 = vld [vmem:[%s118 + $0x8b8] sm:$0xff]
        %v420 = vld [vmem:[%s118 + $0x8c0] sm:$0xff]
        %v421 = vld [vmem:[%s118 + $0x8c8] sm:$0xff]
        %v422 = vld [vmem:[%s118 + $0x8d0] sm:$0xff]
        %v423 = vld [vmem:[%s118 + $0x8d8] sm:$0xff]
        %v424 = vld [vmem:[%s118 + $0x8e0] sm:$0xff]
        %v425 = vld [vmem:[%s118 + $0x8e8] sm:$0xff]
        %v426 = vld [vmem:[%s118 + $0x8f0] sm:$0xff]
        %v427 = vld [vmem:[%s118 + $0x8f8] sm:$0xff]
        %v428 = vld [vmem:[%s118 + $0x900] sm:$0xff]
        %v429 = vld [vmem:[%s118 + $0x908] sm:$0xff]
        %v430 = vld [vmem:[%s118 + $0x910] sm:$0xff]
        %v431 = vld [vmem:[%s118 + $0x918] sm:$0xff]
        %v432 = vld [vmem:[%s118 + $0x920] sm:$0xff]
        %v433 = vld [vmem:[%s118 + $0x928] sm:$0xff]
        %v434 = vld [vmem:[%s118 + $0x930] sm:$0xff]
        %v435 = vld [vmem:[%s118 + $0x938] sm:$0xff]
        %v436 = vld [vmem:[%s118 + $0x940] sm:$0xff]
        %v437 = vld [vmem:[%s118 + $0x948] sm:$0xff]
        %v438 = vld [vmem:[%s118 + $0x950] sm:$0xff]
        %v439 = vld [vmem:[%s118 + $0x958] sm:$0xff]
        %v440 = vld [vmem:[%s118 + $0x960] sm:$0xff]
        %v441 = vld [vmem:[%s118 + $0x968] sm:$0xff]
        %v442 = vld [vmem:[%s118 + $0x970] sm:$0xff]
        %v443 = vld [vmem:[%s118 + $0x978] sm:$0xff]
        %v444 = vld [vmem:[%s118 + $0x980] sm:$0xff]
        %v445 = vld [vmem:[%s118 + $0x988] sm:$0xff]
        %v446 = vld [vmem:[%s118 + $0x990] sm:$0xff]
        %v447 = vld [vmem:[%s118 + $0x998] sm:$0xff]
        %v448 = vld [vmem:[%s118 + $0x9a0] sm:$0xff]
        %v449 = vld [vmem:[%s118 + $0x9a8] sm:$0xff]
        %v450 = vld [vmem:[%s118 + $0x9b0] sm:$0xff]
        %v451 = vld [vmem:[%s118 + $0x9b8] sm:$0xff]
        %v452 = vld [vmem:[%s118 + $0x9c0] sm:$0xff]
        %v453 = vld [vmem:[%s118 + $0x9c8] sm:$0xff]
        %v454 = vld [vmem:[%s118 + $0x9d0] sm:$0xff]
        %v455 = vld [vmem:[%s118 + $0x9d8] sm:$0xff]
        %v456 = vld [vmem:[%s118 + $0x9e0] sm:$0xff]
        %v457 = vld [vmem:[%s118 + $0x9e8] sm:$0xff]
        %v458 = vld [vmem:[%s118 + $0x9f0] sm:$0xff]
        %v459 = vld [vmem:[%s118 + $0x9f8] sm:$0xff]
        %v460 = vld [vmem:[%s118 + $0xa00] sm:$0xff]
        %v461 = vld [vmem:[%s118 + $0xa08] sm:$0xff]
        %v462 = vld [vmem:[%s118 + $0xa10] sm:$0xff]
        %v463 = vld [vmem:[%s118 + $0xa18] sm:$0xff]
        %v464 = vld [vmem:[%s118 + $0xa20] sm:$0xff]
        %v465 = vld [vmem:[%s118 + $0xa28] sm:$0xff]
        %v466 = vld [vmem:[%s118 + $0xa30] sm:$0xff]
        %v467 = vld [vmem:[%s118 + $0xa38] sm:$0xff]
        %v468 = vld [vmem:[%s118 + $0xa40] sm:$0xff]
        %v469 = vld [vmem:[%s118 + $0xa48] sm:$0xff]
        %v470 = vld [vmem:[%s118 + $0xa50] sm:$0xff]
        %v471 = vld [vmem:[%s118 + $0xa58] sm:$0xff]
        %v472 = vld [vmem:[%s118 + $0xa60] sm:$0xff]
        %v473 = vld [vmem:[%s118 + $0xa68] sm:$0xff]
        %v474 = vld [vmem:[%s118 + $0xa70] sm:$0xff]
        %v475 = vld [vmem:[%s118 + $0xa78] sm:$0xff]
        %v476 = vld [vmem:[%s118 + $0xa80] sm:$0xff]
        %v477 = vld [vmem:[%s118 + $0xa88] sm:$0xff]
        %v478 = vld [vmem:[%s118 + $0xa90] sm:$0xff]
        %v479 = vld [vmem:[%s118 + $0xa98] sm:$0xff]
        %v480 = vld [vmem:[%s118 + $0xaa0] sm:$0xff]
        %v481 = vld [vmem:[%s118 + $0xaa8] sm:$0xff]
        %v482 = vld [vmem:[%s118 + $0xab0] sm:$0xff]
        %v483 = vld [vmem:[%s118 + $0xab8] sm:$0xff]
        %v484 = vld [vmem:[%s118 + $0xac0] sm:$0xff]
        %v485 = vld [vmem:[%s118 + $0xac8] sm:$0xff]
        %v486 = vld [vmem:[%s118 + $0xad0] sm:$0xff]
        %v487 = vld [vmem:[%s118 + $0xad8] sm:$0xff]
        %v488 = vld [vmem:[%s118 + $0xae0] sm:$0xff]
        %v489 = vld [vmem:[%s118 + $0xae8] sm:$0xff]
        %v490 = vld [vmem:[%s118 + $0xaf0] sm:$0xff]
        %v491 = vld [vmem:[%s118 + $0xaf8] sm:$0xff]
        %v492 = vld [vmem:[%s118 + $0xb00] sm:$0xff]
        %v493 = vld [vmem:[%s118 + $0xb08] sm:$0xff]
        %v494 = vld [vmem:[%s118 + $0xb10] sm:$0xff]
        %v495 = vld [vmem:[%s118 + $0xb18] sm:$0xff]
        %v496 = vld [vmem:[%s118 + $0xb20] sm:$0xff]
        %v497 = vld [vmem:[%s118 + $0xb28] sm:$0xff]
        %v498 = vld [vmem:[%s118 + $0xb30] sm:$0xff]
        %v499 = vld [vmem:[%s118 + $0xb38] sm:$0xff]
        %v500 = vld [vmem:[%s118 + $0xb40] sm:$0xff]
        %v501 = vld [vmem:[%s118 + $0xb48] sm:$0xff]
        %v502 = vld [vmem:[%s118 + $0xb50] sm:$0xff]
        %v503 = vld [vmem:[%s118 + $0xb58] sm:$0xff]
        %v504 = vld [vmem:[%s118 + $0xb60] sm:$0xff]
        %v505 = vld [vmem:[%s118 + $0xb68] sm:$0xff]
        %v506 = vld [vmem:[%s118 + $0xb70] sm:$0xff]
        %v507 = vld [vmem:[%s118 + $0xb78] sm:$0xff]
        %v508 = vld [vmem:[%s118 + $0xb80] sm:$0xff]
        %v509 = vld [vmem:[%s118 + $0xb88] sm:$0xff]
        %v510 = vld [vmem:[%s118 + $0xb90] sm:$0xff]
        %v511 = vld [vmem:[%s118 + $0xb98] sm:$0xff]
        %v512 = vld [vmem:[%s118 + $0xba0] sm:$0xff]
        %v513 = vld [vmem:[%s118 + $0xba8] sm:$0xff]
        %v514 = vld [vmem:[%s118 + $0xbb0] sm:$0xff]
        %v515 = vld [vmem:[%s118 + $0xbb8] sm:$0xff]
        %v516 = vld [vmem:[%s118 + $0xbc0] sm:$0xff]
        %v517 = vld [vmem:[%s118 + $0xbc8] sm:$0xff]
        %v518 = vld [vmem:[%s118 + $0xbd0] sm:$0xff]
        %v519 = vld [vmem:[%s118 + $0xbd8] sm:$0xff]
        %v520 = vld [vmem:[%s118 + $0xbe0] sm:$0xff]
        %v521 = vld [vmem:[%s118 + $0xbe8] sm:$0xff]
        %v522 = vld [vmem:[%s118 + $0xbf0] sm:$0xff]
        %v523 = vld [vmem:[%s118 + $0xbf8] sm:$0xff]
        %v524 = vld [vmem:[%s118 + $0xc00] sm:$0xff]
        %v525 = vld [vmem:[%s118 + $0xc08] sm:$0xff]
        %v526 = vld [vmem:[%s118 + $0xc10] sm:$0xff]
        %v527 = vld [vmem:[%s118 + $0xc18] sm:$0xff]
        %v528 = vld [vmem:[%s118 + $0xc20] sm:$0xff]
        %v529 = vld [vmem:[%s118 + $0xc28] sm:$0xff]
        %v530 = vld [vmem:[%s118 + $0xc30] sm:$0xff]
        %v531 = vld [vmem:[%s118 + $0xc38] sm:$0xff]
        %v532 = vld [vmem:[%s118 + $0xc40] sm:$0xff]
        %v533 = vld [vmem:[%s118 + $0xc48] sm:$0xff]
        %v534 = vld [vmem:[%s118 + $0xc50] sm:$0xff]
        %v535 = vld [vmem:[%s118 + $0xc58] sm:$0xff]
        %v536 = vld [vmem:[%s118 + $0xc60] sm:$0xff]
        %v537 = vld [vmem:[%s118 + $0xc68] sm:$0xff]
        %v538 = vld [vmem:[%s118 + $0xc70] sm:$0xff]
        %v539 = vld [vmem:[%s118 + $0xc78] sm:$0xff]
        %v540 = vld [vmem:[%s118 + $0xc80] sm:$0xff]
        %v541 = vld [vmem:[%s118 + $0xc88] sm:$0xff]
        %v542 = vld [vmem:[%s118 + $0xc90] sm:$0xff]
        %v543 = vld [vmem:[%s118 + $0xc98] sm:$0xff]
        %v544 = vld [vmem:[%s118 + $0xca0] sm:$0xff]
        %v545 = vld [vmem:[%s118 + $0xca8] sm:$0xff]
        %v546 = vld [vmem:[%s118 + $0xcb0] sm:$0xff]
        %v547 = vld [vmem:[%s118 + $0xcb8] sm:$0xff]
        %v548 = vld [vmem:[%s118 + $0xcc0] sm:$0xff]
        %v549 = vld [vmem:[%s118 + $0xcc8] sm:$0xff]
        %v550 = vld [vmem:[%s118 + $0xcd0] sm:$0xff]
        %v551 = vld [vmem:[%s118 + $0xcd8] sm:$0xff]
        %v552 = vld [vmem:[%s118 + $0xce0] sm:$0xff]
        %v553 = vld [vmem:[%s118 + $0xce8] sm:$0xff]
        %v554 = vld [vmem:[%s118 + $0xcf0] sm:$0xff]
        %v555 = vld [vmem:[%s118 + $0xcf8] sm:$0xff]
        %v556 = vld [vmem:[%s118 + $0xd00] sm:$0xff]
        %v557 = vld [vmem:[%s118 + $0xd08] sm:$0xff]
        %v558 = vld [vmem:[%s118 + $0xd10] sm:$0xff]
        %v559 = vld [vmem:[%s118 + $0xd18] sm:$0xff]
        %v560 = vld [vmem:[%s118 + $0xd20] sm:$0xff]
        %v561 = vld [vmem:[%s118 + $0xd28] sm:$0xff]
        %v562 = vld [vmem:[%s118 + $0xd30] sm:$0xff]
        %v563 = vld [vmem:[%s118 + $0xd38] sm:$0xff]
        %v564 = vld [vmem:[%s118 + $0xd40] sm:$0xff]
        %v565 = vld [vmem:[%s118 + $0xd48] sm:$0xff]
        %v566 = vld [vmem:[%s118 + $0xd50] sm:$0xff]
        %v567 = vld [vmem:[%s118 + $0xd58] sm:$0xff]
        %v568 = vld [vmem:[%s118 + $0xd60] sm:$0xff]
        %v569 = vld [vmem:[%s118 + $0xd68] sm:$0xff]
        %v570 = vld [vmem:[%s118 + $0xd70] sm:$0xff]
        %v571 = vld [vmem:[%s118 + $0xd78] sm:$0xff]
        %v572 = vld [vmem:[%s118 + $0xd80] sm:$0xff]
        %v573 = vld [vmem:[%s118 + $0xd88] sm:$0xff]
        %v574 = vld [vmem:[%s118 + $0xd90] sm:$0xff]
        %v575 = vld [vmem:[%s118 + $0xd98] sm:$0xff]
        %v576 = vld [vmem:[%s118 + $0xda0] sm:$0xff]
        %v577 = vld [vmem:[%s118 + $0xda8] sm:$0xff]
        %v578 = vld [vmem:[%s118 + $0xdb0] sm:$0xff]
        %v579 = vld [vmem:[%s118 + $0xdb8] sm:$0xff]
        %v580 = vld [vmem:[%s118 + $0xdc0] sm:$0xff]
        %v581 = vld [vmem:[%s118 + $0xdc8] sm:$0xff]
        %v582 = vld [vmem:[%s118 + $0xdd0] sm:$0xff]
        %v583 = vld [vmem:[%s118 + $0xdd8] sm:$0xff]
        %v584 = vld [vmem:[%s118 + $0xde0] sm:$0xff]
        %v585 = vld [vmem:[%s118 + $0xde8] sm:$0xff]
        %v586 = vld [vmem:[%s118 + $0xdf0] sm:$0xff]
        %v587 = vld [vmem:[%s118 + $0xdf8] sm:$0xff]
        %v588 = vld [vmem:[%s118 + $0xe00] sm:$0xff]
        %v589 = vld [vmem:[%s118 + $0xe08] sm:$0xff]
        %v590 = vld [vmem:[%s118 + $0xe10] sm:$0xff]
        %v591 = vld [vmem:[%s118 + $0xe18] sm:$0xff]
        %v592 = vld [vmem:[%s118 + $0xe20] sm:$0xff]
        %v593 = vld [vmem:[%s118 + $0xe28] sm:$0xff]
        %v594 = vld [vmem:[%s118 + $0xe30] sm:$0xff]
        %v595 = vld [vmem:[%s118 + $0xe38] sm:$0xff]
        %v596 = vld [vmem:[%s118 + $0xe40] sm:$0xff]
        %v597 = vld [vmem:[%s118 + $0xe48] sm:$0xff]
        %v598 = vld [vmem:[%s118 + $0xe50] sm:$0xff]
        %v599 = vld [vmem:[%s118 + $0xe58] sm:$0xff]
        %v600 = vld [vmem:[%s118 + $0xe60] sm:$0xff]
        %v601 = vld [vmem:[%s118 + $0xe68] sm:$0xff]
        %v602 = vld [vmem:[%s118 + $0xe70] sm:$0xff]
        %v603 = vld [vmem:[%s118 + $0xe78] sm:$0xff]
        %v604 = vld [vmem:[%s118 + $0xe80] sm:$0xff]
        %v605 = vld [vmem:[%s118 + $0xe88] sm:$0xff]
        %v606 = vld [vmem:[%s118 + $0xe90] sm:$0xff]
        %v607 = vld [vmem:[%s118 + $0xe98] sm:$0xff]
        %v608 = vld [vmem:[%s118 + $0xea0] sm:$0xff]
        %v609 = vld [vmem:[%s118 + $0xea8] sm:$0xff]
        %v610 = vld [vmem:[%s118 + $0xeb0] sm:$0xff]
        %v611 = vld [vmem:[%s118 + $0xeb8] sm:$0xff]
        %v612 = vld [vmem:[%s118 + $0xec0] sm:$0xff]
        %v613 = vld [vmem:[%s118 + $0xec8] sm:$0xff]
        %v614 = vld [vmem:[%s118 + $0xed0] sm:$0xff]
        %v615 = vld [vmem:[%s118 + $0xed8] sm:$0xff]
        %v616 = vld [vmem:[%s118 + $0xee0] sm:$0xff]
        %v617 = vld [vmem:[%s118 + $0xee8] sm:$0xff]
        %v618 = vld [vmem:[%s118 + $0xef0] sm:$0xff]
        %v619 = vld [vmem:[%s118 + $0xef8] sm:$0xff]
        %v620 = vld [vmem:[%s118 + $0xf00] sm:$0xff]
        %v621 = vld [vmem:[%s118 + $0xf08] sm:$0xff]
        %v622 = vld [vmem:[%s118 + $0xf10] sm:$0xff]
        %v623 = vld [vmem:[%s118 + $0xf18] sm:$0xff]
        %v624 = vld [vmem:[%s118 + $0xf20] sm:$0xff]
        %v625 = vld [vmem:[%s118 + $0xf28] sm:$0xff]
        %v626 = vld [vmem:[%s118 + $0xf30] sm:$0xff]
        %v627 = vld [vmem:[%s118 + $0xf38] sm:$0xff]
        %v628 = vld [vmem:[%s118 + $0xf40] sm:$0xff]
        %v629 = vld [vmem:[%s118 + $0xf48] sm:$0xff]
        %v630 = vld [vmem:[%s118 + $0xf50] sm:$0xff]
        %v631 = vld [vmem:[%s118 + $0xf58] sm:$0xff]
        %v632 = vld [vmem:[%s118 + $0xf60] sm:$0xff]
        %v633 = vld [vmem:[%s118 + $0xf68] sm:$0xff]
        %v634 = vld [vmem:[%s118 + $0xf70] sm:$0xff]
        %v635 = vld [vmem:[%s118 + $0xf78] sm:$0xff]
        %v636 = vld [vmem:[%s118 + $0xf80] sm:$0xff]
        %v637 = vld [vmem:[%s118 + $0xf88] sm:$0xff]
        %v638 = vld [vmem:[%s118 + $0xf90] sm:$0xff]
        %v639 = vld [vmem:[%s118 + $0xf98] sm:$0xff]
        %v640 = vld [vmem:[%s118 + $0xfa0] sm:$0xff]
        %v641 = vld [vmem:[%s118 + $0xfa8] sm:$0xff]
        %v642 = vld [vmem:[%s118 + $0xfb0] sm:$0xff]
        %v643 = vld [vmem:[%s118 + $0xfb8] sm:$0xff]
        %v644 = vld [vmem:[%s118 + $0xfc0] sm:$0xff]
        %v645 = vld [vmem:[%s118 + $0xfc8] sm:$0xff]
        %v646 = vld [vmem:[%s118 + $0xfd0] sm:$0xff]
        %v647 = vld [vmem:[%s118 + $0xfd8] sm:$0xff]
        %v648 = vld [vmem:[%s118 + $0xfe0] sm:$0xff]
        %v649 = vld [vmem:[%s118 + $0xfe8] sm:$0xff]
        %v650 = vld [vmem:[%s118 + $0xff0] sm:$0xff]
        %v651 = vld [vmem:[%s118 + $0xff8] sm:$0xff]
        %v652 = vld [vmem:[%s118 + $0x1000] sm:$0xff]
        %v653 = vld [vmem:[%s118 + $0x1008] sm:$0xff]
        %v654 = vld [vmem:[%s118 + $0x1010] sm:$0xff]
        %v655 = vld [vmem:[%s118 + $0x1018] sm:$0xff]
        %v656 = vld [vmem:[%s118 + $0x1020] sm:$0xff]
        %v657 = vld [vmem:[%s118 + $0x1028] sm:$0xff]
        %v658 = vld [vmem:[%s118 + $0x1030] sm:$0xff]
        %v659 = vld [vmem:[%s118 + $0x1038] sm:$0xff]
        %v660 = vld [vmem:[%s118 + $0x1040] sm:$0xff]
        %v661 = vld [vmem:[%s118 + $0x1048] sm:$0xff]
        %v662 = vld [vmem:[%s118 + $0x1050] sm:$0xff]
        %v663 = vld [vmem:[%s118 + $0x1058] sm:$0xff]
        %v664 = vld [vmem:[%s118 + $0x1060] sm:$0xff]
        %v665 = vld [vmem:[%s118 + $0x1068] sm:$0xff]
        %v666 = vld [vmem:[%s118 + $0x1070] sm:$0xff]
        %v667 = vld [vmem:[%s118 + $0x1078] sm:$0xff]
        %v668 = vld [vmem:[%s118 + $0x1080] sm:$0xff]
        %v669 = vld [vmem:[%s118 + $0x1088] sm:$0xff]
        %v670 = vld [vmem:[%s118 + $0x1090] sm:$0xff]
        %v671 = vld [vmem:[%s118 + $0x1098] sm:$0xff]
        %v672 = vld [vmem:[%s118 + $0x10a0] sm:$0xff]
        %v673 = vld [vmem:[%s118 + $0x10a8] sm:$0xff]
        %v674 = vld [vmem:[%s118 + $0x10b0] sm:$0xff]
        %v675 = vld [vmem:[%s118 + $0x10b8] sm:$0xff]
        %v676 = vld [vmem:[%s118 + $0x10c0] sm:$0xff]
        %v677 = vld [vmem:[%s118 + $0x10c8] sm:$0xff]
        %v678 = vld [vmem:[%s118 + $0x10d0] sm:$0xff]
        %v679 = vld [vmem:[%s118 + $0x10d8] sm:$0xff]
        %v680 = vld [vmem:[%s118 + $0x10e0] sm:$0xff]
        %v681 = vld [vmem:[%s118 + $0x10e8] sm:$0xff]
        %v682 = vld [vmem:[%s118 + $0x10f0] sm:$0xff]
        %v683 = vld [vmem:[%s118 + $0x10f8] sm:$0xff]
        %v684 = vld [vmem:[%s118 + $0x1100] sm:$0xff]
        %v685 = vld [vmem:[%s118 + $0x1108] sm:$0xff]
        %v686 = vld [vmem:[%s118 + $0x1110] sm:$0xff]
        %v687 = vld [vmem:[%s118 + $0x1118] sm:$0xff]
        %v688 = vld [vmem:[%s118 + $0x1120] sm:$0xff]
        %v689 = vld [vmem:[%s118 + $0x1128] sm:$0xff]
        %v690 = vld [vmem:[%s118 + $0x1130] sm:$0xff]
        %v691 = vld [vmem:[%s118 + $0x1138] sm:$0xff]
        %v692 = vld [vmem:[%s118 + $0x1140] sm:$0xff]
        %v693 = vld [vmem:[%s118 + $0x1148] sm:$0xff]
        %v694 = vld [vmem:[%s118 + $0x1150] sm:$0xff]
        %v695 = vld [vmem:[%s118 + $0x1158] sm:$0xff]
        %v696 = vld [vmem:[%s118 + $0x1160] sm:$0xff]
        %v697 = vld [vmem:[%s118 + $0x1168] sm:$0xff]
        %v698 = vld [vmem:[%s118 + $0x1170] sm:$0xff]
        %v699 = vld [vmem:[%s118 + $0x1178] sm:$0xff]
        %v700 = vld [vmem:[%s118 + $0x1180] sm:$0xff]
        %v701 = vld [vmem:[%s118 + $0x1188] sm:$0xff]
        %v702 = vld [vmem:[%s118 + $0x1190] sm:$0xff]
        %v703 = vld [vmem:[%s118 + $0x1198] sm:$0xff]
        %v704 = vld [vmem:[%s118 + $0x11a0] sm:$0xff]
        %v705 = vld [vmem:[%s118 + $0x11a8] sm:$0xff]
        %v706 = vld [vmem:[%s118 + $0x11b0] sm:$0xff]
        %v707 = vld [vmem:[%s118 + $0x11b8] sm:$0xff]
        %v708 = vld [vmem:[%s118 + $0x11c0] sm:$0xff]
        %v709 = vld [vmem:[%s118 + $0x11c8] sm:$0xff]
        %v710 = vld [vmem:[%s118 + $0x11d0] sm:$0xff]
        %v711 = vld [vmem:[%s118 + $0x11d8] sm:$0xff]
        %v712 = vld [vmem:[%s118 + $0x11e0] sm:$0xff]
        %v713 = vld [vmem:[%s118 + $0x11e8] sm:$0xff]
        %v714 = vld [vmem:[%s118 + $0x11f0] sm:$0xff]
        %v715 = vld [vmem:[%s118 + $0x11f8] sm:$0xff]
        %v716 = vld [vmem:[%s118 + $0x1200] sm:$0xff]
        %v717 = vld [vmem:[%s118 + $0x1208] sm:$0xff]
        %v718 = vld [vmem:[%s118 + $0x1210] sm:$0xff]
        %v719 = vld [vmem:[%s118 + $0x1218] sm:$0xff]
        %v720 = vld [vmem:[%s118 + $0x1220] sm:$0xff]
        %v721 = vld [vmem:[%s118 + $0x1228] sm:$0xff]
        %v722 = vld [vmem:[%s118 + $0x1230] sm:$0xff]
        %v723 = vld [vmem:[%s118 + $0x1238] sm:$0xff]
        %v724 = vld [vmem:[%s118 + $0x1240] sm:$0xff]
        %v725 = vld [vmem:[%s118 + $0x1248] sm:$0xff]
        %v726 = vld [vmem:[%s118 + $0x1250] sm:$0xff]
        %v727 = vld [vmem:[%s118 + $0x1258] sm:$0xff]
        %v728 = vld [vmem:[%s118 + $0x1260] sm:$0xff]
        %v729 = vld [vmem:[%s118 + $0x1268] sm:$0xff]
        %v730 = vld [vmem:[%s118 + $0x1270] sm:$0xff]
        %v731 = vld [vmem:[%s118 + $0x1278] sm:$0xff]
        %v732 = vld [vmem:[%s118 + $0x1280] sm:$0xff]
        %v733 = vld [vmem:[%s118 + $0x1288] sm:$0xff]
        %v734 = vld [vmem:[%s118 + $0x1290] sm:$0xff]
        %v735 = vld [vmem:[%s118 + $0x1298] sm:$0xff]
        %v736 = vld [vmem:[%s118 + $0x12a0] sm:$0xff]
        %v737 = vld [vmem:[%s118 + $0x12a8] sm:$0xff]
        %v738 = vld [vmem:[%s118 + $0x12b0] sm:$0xff]
        %v739 = vld [vmem:[%s118 + $0x12b8] sm:$0xff]
        %v740 = vld [vmem:[%s118 + $0x12c0] sm:$0xff]
        %v741 = vld [vmem:[%s118 + $0x12c8] sm:$0xff]
        %v742 = vld [vmem:[%s118 + $0x12d0] sm:$0xff]
        %v743 = vld [vmem:[%s118 + $0x12d8] sm:$0xff]
        %v744 = vld [vmem:[%s118 + $0x12e0] sm:$0xff]
        %v745 = vld [vmem:[%s118 + $0x12e8] sm:$0xff]
        %v746 = vld [vmem:[%s118 + $0x12f0] sm:$0xff]
        %v747 = vld [vmem:[%s118 + $0x12f8] sm:$0xff]
        %v748 = vld [vmem:[%s118 + $0x1300] sm:$0xff]
        %v749 = vld [vmem:[%s118 + $0x1308] sm:$0xff]
        %v750 = vld [vmem:[%s118 + $0x1310] sm:$0xff]
        %v751 = vld [vmem:[%s118 + $0x1318] sm:$0xff]
        %v752 = vld [vmem:[%s118 + $0x1320] sm:$0xff]
        %v753 = vld [vmem:[%s118 + $0x1328] sm:$0xff]
        %v754 = vld [vmem:[%s118 + $0x1330] sm:$0xff]
        %v755 = vld [vmem:[%s118 + $0x1338] sm:$0xff]
        %v756 = vld [vmem:[%s118 + $0x1340] sm:$0xff]
        %v757 = vld [vmem:[%s118 + $0x1348] sm:$0xff]
        %v758 = vld [vmem:[%s118 + $0x1350] sm:$0xff]
        %v759 = vld [vmem:[%s118 + $0x1358] sm:$0xff]
        %v760 = vld [vmem:[%s118 + $0x1360] sm:$0xff]
        %v761 = vld [vmem:[%s118 + $0x1368] sm:$0xff]
        %v762 = vld [vmem:[%s118 + $0x1370] sm:$0xff]
        %v763 = vld [vmem:[%s118 + $0x1378] sm:$0xff]
        %v764 = vld [vmem:[%s118 + $0x1380] sm:$0xff]
        %v765 = vld [vmem:[%s118 + $0x1388] sm:$0xff]
        %v766 = vld [vmem:[%s118 + $0x1390] sm:$0xff]
        %v767 = vld [vmem:[%s118 + $0x1398] sm:$0xff]
        %v768 = vld [vmem:[%s118 + $0x13a0] sm:$0xff]
        %v769 = vld [vmem:[%s118 + $0x13a8] sm:$0xff]
        %v770 = vld [vmem:[%s118 + $0x13b0] sm:$0xff]
        %v771 = vld [vmem:[%s118 + $0x13b8] sm:$0xff]
        %v772 = vld [vmem:[%s118 + $0x13c0] sm:$0xff]
        %v773 = vld [vmem:[%s118 + $0x13c8] sm:$0xff]
        %v774 = vld [vmem:[%s118 + $0x13d0] sm:$0xff]
        %v775 = vld [vmem:[%s118 + $0x13d8] sm:$0xff]
        %v776 = vld [vmem:[%s118 + $0x13e0] sm:$0xff]
        %v777 = vld [vmem:[%s118 + $0x13e8] sm:$0xff]
        %v778 = vld [vmem:[%s118 + $0x13f0] sm:$0xff]
        %v779 = vld [vmem:[%s118 + $0x13f8] sm:$0xff]
        %v780 = vld [vmem:[%s118 + $0x1400] sm:$0xff]
        %v781 = vld [vmem:[%s118 + $0x1408] sm:$0xff]
        %v782 = vld [vmem:[%s118 + $0x1410] sm:$0xff]
        %v783 = vld [vmem:[%s118 + $0x1418] sm:$0xff]
        %v784 = vld [vmem:[%s118 + $0x1420] sm:$0xff]
        %v785 = vld [vmem:[%s118 + $0x1428] sm:$0xff]
        %v786 = vld [vmem:[%s118 + $0x1430] sm:$0xff]
        %v787 = vld [vmem:[%s118 + $0x1438] sm:$0xff]
        %v788 = vld [vmem:[%s118 + $0x1440] sm:$0xff]
        %v789 = vld [vmem:[%s118 + $0x1448] sm:$0xff]
        %v790 = vld [vmem:[%s118 + $0x1450] sm:$0xff]
        %v791 = vld [vmem:[%s118 + $0x1458] sm:$0xff]
        %v792 = vld [vmem:[%s118 + $0x1460] sm:$0xff]
        %v793 = vld [vmem:[%s118 + $0x1468] sm:$0xff]
        %v794 = vld [vmem:[%s118 + $0x1470] sm:$0xff]
        %v795 = vld [vmem:[%s118 + $0x1478] sm:$0xff]
        %v796 = vld [vmem:[%s118 + $0x1480] sm:$0xff]
        %v797 = vld [vmem:[%s118 + $0x1488] sm:$0xff]
        %v798 = vld [vmem:[%s118 + $0x1490] sm:$0xff]
        %v799 = vld [vmem:[%s118 + $0x1498] sm:$0xff]
        %v800 = vld [vmem:[%s118 + $0x14a0] sm:$0xff]
        %v801 = vld [vmem:[%s118 + $0x14a8] sm:$0xff]
        %v802 = vld [vmem:[%s118 + $0x14b0] sm:$0xff]
        %v803 = vld [vmem:[%s118 + $0x14b8] sm:$0xff]
        %v804 = vld [vmem:[%s118 + $0x14c0] sm:$0xff]
        %v805 = vld [vmem:[%s118 + $0x14c8] sm:$0xff]
        %v806 = vld [vmem:[%s118 + $0x14d0] sm:$0xff]
        %v807 = vld [vmem:[%s118 + $0x14d8] sm:$0xff]
        %v808 = vld [vmem:[%s118 + $0x14e0] sm:$0xff]
        %v809 = vld [vmem:[%s118 + $0x14e8] sm:$0xff]
        %v810 = vld [vmem:[%s118 + $0x14f0] sm:$0xff]
        %v811 = vld [vmem:[%s118 + $0x14f8] sm:$0xff]
        %v812 = vld [vmem:[%s118 + $0x1500] sm:$0xff]
        %v813 = vld [vmem:[%s118 + $0x1508] sm:$0xff]
        %v814 = vld [vmem:[%s118 + $0x1510] sm:$0xff]
        %v815 = vld [vmem:[%s118 + $0x1518] sm:$0xff]
        %v816 = vld [vmem:[%s118 + $0x1520] sm:$0xff]
        %v817 = vld [vmem:[%s118 + $0x1528] sm:$0xff]
        %v818 = vld [vmem:[%s118 + $0x1530] sm:$0xff]
        %v819 = vld [vmem:[%s118 + $0x1538] sm:$0xff]
        %v820 = vld [vmem:[%s118 + $0x1540] sm:$0xff]
        %v821 = vld [vmem:[%s118 + $0x1548] sm:$0xff]
        %v822 = vld [vmem:[%s118 + $0x1550] sm:$0xff]
        %v823 = vld [vmem:[%s118 + $0x1558] sm:$0xff]
        %v824 = vld [vmem:[%s118 + $0x1560] sm:$0xff]
        %v825 = vld [vmem:[%s118 + $0x1568] sm:$0xff]
        %v826 = vld [vmem:[%s118 + $0x1570] sm:$0xff]
        %v827 = vld [vmem:[%s118 + $0x1578] sm:$0xff]
        %v828 = vld [vmem:[%s118 + $0x1580] sm:$0xff]
        %v829 = vld [vmem:[%s118 + $0x1588] sm:$0xff]
        %v830 = vld [vmem:[%s118 + $0x1590] sm:$0xff]
        %v831 = vld [vmem:[%s118 + $0x1598] sm:$0xff]
        %v832 = vld [vmem:[%s118 + $0x15a0] sm:$0xff]
        %v833 = vld [vmem:[%s118 + $0x15a8] sm:$0xff]
        %v834 = vld [vmem:[%s118 + $0x15b0] sm:$0xff]
        %v835 = vld [vmem:[%s118 + $0x15b8] sm:$0xff]
        %v836 = vld [vmem:[%s118 + $0x15c0] sm:$0xff]
        %v837 = vld [vmem:[%s118 + $0x15c8] sm:$0xff]
        %v838 = vld [vmem:[%s118 + $0x15d0] sm:$0xff]
        %v839 = vld [vmem:[%s118 + $0x15d8] sm:$0xff]
        %v840 = vld [vmem:[%s118 + $0x15e0] sm:$0xff]
        %v841 = vld [vmem:[%s118 + $0x15e8] sm:$0xff]
        %v842 = vld [vmem:[%s118 + $0x15f0] sm:$0xff]
        %v843 = vld [vmem:[%s118 + $0x15f8] sm:$0xff]
        %v844 = vld [vmem:[%s118 + $0x1600] sm:$0xff]
        %v845 = vld [vmem:[%s118 + $0x1608] sm:$0xff]
        %v846 = vld [vmem:[%s118 + $0x1610] sm:$0xff]
        %v847 = vld [vmem:[%s118 + $0x1618] sm:$0xff]
        %v848 = vld [vmem:[%s118 + $0x1620] sm:$0xff]
        %v849 = vld [vmem:[%s118 + $0x1628] sm:$0xff]
        %v850 = vld [vmem:[%s118 + $0x1630] sm:$0xff]
        %v851 = vld [vmem:[%s118 + $0x1638] sm:$0xff]
        %v852 = vld [vmem:[%s118 + $0x1640] sm:$0xff]
        %v853 = vld [vmem:[%s118 + $0x1648] sm:$0xff]
        %v854 = vld [vmem:[%s118 + $0x1650] sm:$0xff]
        %v855 = vld [vmem:[%s118 + $0x1658] sm:$0xff]
        %v856 = vld [vmem:[%s118 + $0x1660] sm:$0xff]
        %v857 = vld [vmem:[%s118 + $0x1668] sm:$0xff]
        %v858 = vld [vmem:[%s118 + $0x1670] sm:$0xff]
        %v859 = vld [vmem:[%s118 + $0x1678] sm:$0xff]
        %v860 = vld [vmem:[%s118 + $0x1680] sm:$0xff]
        %v861 = vld [vmem:[%s118 + $0x1688] sm:$0xff]
        %v862 = vld [vmem:[%s118 + $0x1690] sm:$0xff]
        %v863 = vld [vmem:[%s118 + $0x1698] sm:$0xff]
        %v864 = vld [vmem:[%s118 + $0x16a0] sm:$0xff]
        %v865 = vld [vmem:[%s118 + $0x16a8] sm:$0xff]
        %v866 = vld [vmem:[%s118 + $0x16b0] sm:$0xff]
        %v867 = vld [vmem:[%s118 + $0x16b8] sm:$0xff]
        %v868 = vld [vmem:[%s118 + $0x16c0] sm:$0xff]
        %v869 = vld [vmem:[%s118 + $0x16c8] sm:$0xff]
        %v870 = vld [vmem:[%s118 + $0x16d0] sm:$0xff]
        %v871 = vld [vmem:[%s118 + $0x16d8] sm:$0xff]
        %v872 = vld [vmem:[%s118 + $0x16e0] sm:$0xff]
        %v873 = vld [vmem:[%s118 + $0x16e8] sm:$0xff]
        %v874 = vld [vmem:[%s118 + $0x16f0] sm:$0xff]
        %v875 = vld [vmem:[%s118 + $0x16f8] sm:$0xff]
        %v876 = vld [vmem:[%s118 + $0x1700] sm:$0xff]
        %v877 = vld [vmem:[%s118 + $0x1708] sm:$0xff]
        %v878 = vld [vmem:[%s118 + $0x1710] sm:$0xff]
        %v879 = vld [vmem:[%s118 + $0x1718] sm:$0xff]
        %v880 = vld [vmem:[%s118 + $0x1720] sm:$0xff]
        %v881 = vld [vmem:[%s118 + $0x1728] sm:$0xff]
        %v882 = vld [vmem:[%s118 + $0x1730] sm:$0xff]
        %v883 = vld [vmem:[%s118 + $0x1738] sm:$0xff]
        %v884 = vld [vmem:[%s118 + $0x1740] sm:$0xff]
        %v885 = vld [vmem:[%s118 + $0x1748] sm:$0xff]
        %v886 = vld [vmem:[%s118 + $0x1750] sm:$0xff]
        %v887 = vld [vmem:[%s118 + $0x1758] sm:$0xff]
        %v888 = vld [vmem:[%s118 + $0x1760] sm:$0xff]
        %v889 = vld [vmem:[%s118 + $0x1768] sm:$0xff]
        %v890 = vld [vmem:[%s118 + $0x1770] sm:$0xff]
        %v891 = vld [vmem:[%s118 + $0x1778] sm:$0xff]
        %v892 = vld [vmem:[%s118 + $0x1780] sm:$0xff]
        %v893 = vld [vmem:[%s118 + $0x1788] sm:$0xff]
        %v894 = vld [vmem:[%s118 + $0x1790] sm:$0xff]
        %v895 = vld [vmem:[%s118 + $0x1798] sm:$0xff]
        %v896 = vld [vmem:[%s118 + $0x17a0] sm:$0xff]
        %v897 = vld [vmem:[%s118 + $0x17a8] sm:$0xff]
        %v898 = vld [vmem:[%s118 + $0x17b0] sm:$0xff]
        %v899 = vld [vmem:[%s118 + $0x17b8] sm:$0xff]
        %v900 = vld [vmem:[%s118 + $0x17c0] sm:$0xff]
        %v901 = vld [vmem:[%s118 + $0x17c8] sm:$0xff]
        %v902 = vld [vmem:[%s118 + $0x17d0] sm:$0xff]
        %v903 = vld [vmem:[%s118 + $0x17d8] sm:$0xff]
        %v904 = vld [vmem:[%s118 + $0x17e0] sm:$0xff]
        %v905 = vld [vmem:[%s118 + $0x17e8] sm:$0xff]
        %v906 = vld [vmem:[%s118 + $0x17f0] sm:$0xff]
        %v907 = vld [vmem:[%s118 + $0x17f8] sm:$0xff]
        %v908 = vld [vmem:[%s118 + $0x1800] sm:$0xff]
        %v909 = vld [vmem:[%s118 + $0x1808] sm:$0xff]
        %v910 = vld [vmem:[%s118 + $0x1810] sm:$0xff]
        %v911 = vld [vmem:[%s118 + $0x1818] sm:$0xff]
        %v912 = vld [vmem:[%s118 + $0x1820] sm:$0xff]
        %v913 = vld [vmem:[%s118 + $0x1828] sm:$0xff]
        %v914 = vld [vmem:[%s118 + $0x1830] sm:$0xff]
        %v915 = vld [vmem:[%s118 + $0x1838] sm:$0xff]
        %v916 = vld [vmem:[%s118 + $0x1840] sm:$0xff]
        %v917 = vld [vmem:[%s118 + $0x1848] sm:$0xff]
        %v918 = vld [vmem:[%s118 + $0x1850] sm:$0xff]
        %v919 = vld [vmem:[%s118 + $0x1858] sm:$0xff]
        %v920 = vld [vmem:[%s118 + $0x1860] sm:$0xff]
        %v921 = vld [vmem:[%s118 + $0x1868] sm:$0xff]
        %v922 = vld [vmem:[%s118 + $0x1870] sm:$0xff]
        %v923 = vld [vmem:[%s118 + $0x1878] sm:$0xff]
        %v924 = vld [vmem:[%s118 + $0x1880] sm:$0xff]
        %v925 = vld [vmem:[%s118 + $0x1888] sm:$0xff]
        %v926 = vld [vmem:[%s118 + $0x1890] sm:$0xff]
        %v927 = vld [vmem:[%s118 + $0x1898] sm:$0xff]
        %v928 = vld [vmem:[%s118 + $0x18a0] sm:$0xff]
        %v929 = vld [vmem:[%s118 + $0x18a8] sm:$0xff]
        %v930 = vld [vmem:[%s118 + $0x18b0] sm:$0xff]
        %v931 = vld [vmem:[%s118 + $0x18b8] sm:$0xff]
        %v932 = vld [vmem:[%s118 + $0x18c0] sm:$0xff]
        %v933 = vld [vmem:[%s118 + $0x18c8] sm:$0xff]
        %v934 = vld [vmem:[%s118 + $0x18d0] sm:$0xff]
        %v935 = vld [vmem:[%s118 + $0x18d8] sm:$0xff]
        %v936 = vld [vmem:[%s118 + $0x18e0] sm:$0xff]
        %v937 = vld [vmem:[%s118 + $0x18e8] sm:$0xff]
        %v938 = vld [vmem:[%s118 + $0x18f0] sm:$0xff]
        %v939 = vld [vmem:[%s118 + $0x18f8] sm:$0xff]
        %v940 = vld [vmem:[%s118 + $0x1900] sm:$0xff]
        %v941 = vld [vmem:[%s118 + $0x1908] sm:$0xff]
        %v942 = vld [vmem:[%s118 + $0x1910] sm:$0xff]
        %v943 = vld [vmem:[%s118 + $0x1918] sm:$0xff]
        %v944 = vld [vmem:[%s118 + $0x1920] sm:$0xff]
        %v945 = vld [vmem:[%s118 + $0x1928] sm:$0xff]
        %v946 = vld [vmem:[%s118 + $0x1930] sm:$0xff]
        %v947 = vld [vmem:[%s118 + $0x1938] sm:$0xff]
        %v948 = vld [vmem:[%s118 + $0x1940] sm:$0xff]
        %v949 = vld [vmem:[%s118 + $0x1948] sm:$0xff]
        %v950 = vld [vmem:[%s118 + $0x1950] sm:$0xff]
        %v951 = vld [vmem:[%s118 + $0x1958] sm:$0xff]
        %v952 = vld [vmem:[%s118 + $0x1960] sm:$0xff]
        %v953 = vld [vmem:[%s118 + $0x1968] sm:$0xff]
        %v954 = vld [vmem:[%s118 + $0x1970] sm:$0xff]
        %v955 = vld [vmem:[%s118 + $0x1978] sm:$0xff]
        %v956 = vld [vmem:[%s118 + $0x1980] sm:$0xff]
        %v957 = vld [vmem:[%s118 + $0x1988] sm:$0xff]
        %v958 = vld [vmem:[%s118 + $0x1990] sm:$0xff]
        %v959 = vld [vmem:[%s118 + $0x1998] sm:$0xff]
        %v960 = vld [vmem:[%s118 + $0x19a0] sm:$0xff]
        %v961 = vld [vmem:[%s118 + $0x19a8] sm:$0xff]
        %v962 = vld [vmem:[%s118 + $0x19b0] sm:$0xff]
        %v963 = vld [vmem:[%s118 + $0x19b8] sm:$0xff]
        %v964 = vld [vmem:[%s118 + $0x19c0] sm:$0xff]
        %v965 = vld [vmem:[%s118 + $0x19c8] sm:$0xff]
        %v966 = vld [vmem:[%s118 + $0x19d0] sm:$0xff]
        %v967 = vld [vmem:[%s118 + $0x19d8] sm:$0xff]
        %v968 = vld [vmem:[%s118 + $0x19e0] sm:$0xff]
        %v969 = vld [vmem:[%s118 + $0x19e8] sm:$0xff]
        %v970 = vld [vmem:[%s118 + $0x19f0] sm:$0xff]
        %v971 = vld [vmem:[%s118 + $0x19f8] sm:$0xff]
        %v972 = vld [vmem:[%s118 + $0x1a00] sm:$0xff]
        %v973 = vld [vmem:[%s118 + $0x1a08] sm:$0xff]
        %v974 = vld [vmem:[%s118 + $0x1a10] sm:$0xff]
        %v975 = vld [vmem:[%s118 + $0x1a18] sm:$0xff]
        %v976 = vld [vmem:[%s118 + $0x1a20] sm:$0xff]
        %v977 = vld [vmem:[%s118 + $0x1a28] sm:$0xff]
        %v978 = vld [vmem:[%s118 + $0x1a30] sm:$0xff]
        %v979 = vld [vmem:[%s118 + $0x1a38] sm:$0xff]
        %v980 = vld [vmem:[%s118 + $0x1a40] sm:$0xff]
        %v981 = vld [vmem:[%s118 + $0x1a48] sm:$0xff]
        %v982 = vld [vmem:[%s118 + $0x1a50] sm:$0xff]
        %v983 = vld [vmem:[%s118 + $0x1a58] sm:$0xff]
        %v984 = vld [vmem:[%s118 + $0x1a60] sm:$0xff]
        %v985 = vld [vmem:[%s118 + $0x1a68] sm:$0xff]
        %v986 = vld [vmem:[%s118 + $0x1a70] sm:$0xff]
        %v987 = vld [vmem:[%s118 + $0x1a78] sm:$0xff]
        %v988 = vld [vmem:[%s118 + $0x1a80] sm:$0xff]
        %v989 = vld [vmem:[%s118 + $0x1a88] sm:$0xff]
        %v990 = vld [vmem:[%s118 + $0x1a90] sm:$0xff]
        %v991 = vld [vmem:[%s118 + $0x1a98] sm:$0xff]
        %v992 = vld [vmem:[%s118 + $0x1aa0] sm:$0xff]
        %v993 = vld [vmem:[%s118 + $0x1aa8] sm:$0xff]
        %v994 = vld [vmem:[%s118 + $0x1ab0] sm:$0xff]
        %v995 = vld [vmem:[%s118 + $0x1ab8] sm:$0xff]
        %v996 = vld [vmem:[%s118 + $0x1ac0] sm:$0xff]
        %v997 = vld [vmem:[%s118 + $0x1ac8] sm:$0xff]
        %v998 = vld [vmem:[%s118 + $0x1ad0] sm:$0xff]
        %v999 = vld [vmem:[%s118 + $0x1ad8] sm:$0xff]
        %v1000 = vld [vmem:[%s118 + $0x1ae0] sm:$0xff]
        %v1001 = vld [vmem:[%s118 + $0x1ae8] sm:$0xff]
        %v1002 = vld [vmem:[%s118 + $0x1af0] sm:$0xff]
        %v1003 = vld [vmem:[%s118 + $0x1af8] sm:$0xff]
        %v1004 = vld [vmem:[%s118 + $0x1b00] sm:$0xff]
        %v1005 = vld [vmem:[%s118 + $0x1b08] sm:$0xff]
        %v1006 = vld [vmem:[%s118 + $0x1b10] sm:$0xff]
        %v1007 = vld [vmem:[%s118 + $0x1b18] sm:$0xff]
        %v1008 = vld [vmem:[%s118 + $0x1b20] sm:$0xff]
        %v1009 = vld [vmem:[%s118 + $0x1b28] sm:$0xff]
        %v1010 = vld [vmem:[%s118 + $0x1b30] sm:$0xff]
        %v1011 = vld [vmem:[%s118 + $0x1b38] sm:$0xff]
        %v1012 = vld [vmem:[%s118 + $0x1b40] sm:$0xff]
        %v1013 = vld [vmem:[%s118 + $0x1b48] sm:$0xff]
        %v1014 = vld [vmem:[%s118 + $0x1b50] sm:$0xff]
        %v1015 = vld [vmem:[%s118 + $0x1b58] sm:$0xff]
        %v1016 = vld [vmem:[%s118 + $0x1b60] sm:$0xff]
        %v1017 = vld [vmem:[%s118 + $0x1b68] sm:$0xff]
        %v1018 = vld [vmem:[%s118 + $0x1b70] sm:$0xff]
        %v1019 = vld [vmem:[%s118 + $0x1b78] sm:$0xff]
        %v1020 = vld [vmem:[%s118 + $0x1b80] sm:$0xff]
        %v1021 = vld [vmem:[%s118 + $0x1b88] sm:$0xff]
        %v1022 = vld [vmem:[%s118 + $0x1b90] sm:$0xff]
        %v1023 = vld [vmem:[%s118 + $0x1b98] sm:$0xff]
        %v1024 = vld [vmem:[%s118 + $0x1ba0] sm:$0xff]
        %v1025 = vld [vmem:[%s118 + $0x1ba8] sm:$0xff]
        %v1026 = vld [vmem:[%s118 + $0x1bb0] sm:$0xff]
        %v1027 = vld [vmem:[%s118 + $0x1bb8] sm:$0xff]
        %v1028 = vld [vmem:[%s118 + $0x1bc0] sm:$0xff]
        %v1029 = vld [vmem:[%s118 + $0x1bc8] sm:$0xff]
        %v1030 = vld [vmem:[%s118 + $0x1bd0] sm:$0xff]
        %v1031 = vld [vmem:[%s118 + $0x1bd8] sm:$0xff]
        %v1032 = vld [vmem:[%s118 + $0x1be0] sm:$0xff]
        %v1033 = vld [vmem:[%s118 + $0x1be8] sm:$0xff]
        %v1034 = vld [vmem:[%s118 + $0x1bf0] sm:$0xff]
        %v1035 = vld [vmem:[%s118 + $0x1bf8] sm:$0xff]
        %v1036 = vld [vmem:[%s118 + $0x1c00] sm:$0xff]
        %v1037 = vld [vmem:[%s118 + $0x1c08] sm:$0xff]
        %v1038 = vld [vmem:[%s118 + $0x1c10] sm:$0xff]
        %v1039 = vld [vmem:[%s118 + $0x1c18] sm:$0xff]
        %v1040 = vld [vmem:[%s118 + $0x1c20] sm:$0xff]
        %v1041 = vld [vmem:[%s118 + $0x1c28] sm:$0xff]
        %v1042 = vld [vmem:[%s118 + $0x1c30] sm:$0xff]
        %v1043 = vld [vmem:[%s118 + $0x1c38] sm:$0xff]
        %v1044 = vld [vmem:[%s118 + $0x1c40] sm:$0xff]
        %v1045 = vld [vmem:[%s118 + $0x1c48] sm:$0xff]
        %v1046 = vld [vmem:[%s118 + $0x1c50] sm:$0xff]
        %v1047 = vld [vmem:[%s118 + $0x1c58] sm:$0xff]
        %v1048 = vld [vmem:[%s118 + $0x1c60] sm:$0xff]
        %v1049 = vld [vmem:[%s118 + $0x1c68] sm:$0xff]
        %v1050 = vld [vmem:[%s118 + $0x1c70] sm:$0xff]
        %v1051 = vld [vmem:[%s118 + $0x1c78] sm:$0xff]
        %v1052 = vld [vmem:[%s118 + $0x1c80] sm:$0xff]
        %v1053 = vld [vmem:[%s118 + $0x1c88] sm:$0xff]
        %v1054 = vld [vmem:[%s118 + $0x1c90] sm:$0xff]
        %v1055 = vld [vmem:[%s118 + $0x1c98] sm:$0xff]
        %v1056 = vld [vmem:[%s118 + $0x1ca0] sm:$0xff]
        %v1057 = vld [vmem:[%s118 + $0x1ca8] sm:$0xff]
        %v1058 = vld [vmem:[%s118 + $0x1cb0] sm:$0xff]
        %v1059 = vld [vmem:[%s118 + $0x1cb8] sm:$0xff]
        %v1060 = vld [vmem:[%s118 + $0x1cc0] sm:$0xff]
        %v1061 = vld [vmem:[%s118 + $0x1cc8] sm:$0xff]
        %v1062 = vld [vmem:[%s118 + $0x1cd0] sm:$0xff]
        %v1063 = vld [vmem:[%s118 + $0x1cd8] sm:$0xff]
        %v1064 = vld [vmem:[%s118 + $0x1ce0] sm:$0xff]
        %v1065 = vld [vmem:[%s118 + $0x1ce8] sm:$0xff]
        %v1066 = vld [vmem:[%s118 + $0x1cf0] sm:$0xff]
        %v1067 = vld [vmem:[%s118 + $0x1cf8] sm:$0xff]
        %v1068 = vld [vmem:[%s118 + $0x1d00] sm:$0xff]
        %v1069 = vld [vmem:[%s118 + $0x1d08] sm:$0xff]
        %v1070 = vld [vmem:[%s118 + $0x1d10] sm:$0xff]
        %v1071 = vld [vmem:[%s118 + $0x1d18] sm:$0xff]
        %v1072 = vld [vmem:[%s118 + $0x1d20] sm:$0xff]
        %v1073 = vld [vmem:[%s118 + $0x1d28] sm:$0xff]
        %v1074 = vld [vmem:[%s118 + $0x1d30] sm:$0xff]
        %v1075 = vld [vmem:[%s118 + $0x1d38] sm:$0xff]
        %v1076 = vld [vmem:[%s118 + $0x1d40] sm:$0xff]
        %v1077 = vld [vmem:[%s118 + $0x1d48] sm:$0xff]
        %v1078 = vld [vmem:[%s118 + $0x1d50] sm:$0xff]
        %v1079 = vld [vmem:[%s118 + $0x1d58] sm:$0xff]
        %v1080 = vld [vmem:[%s118 + $0x1d60] sm:$0xff]
        %v1081 = vld [vmem:[%s118 + $0x1d68] sm:$0xff]
        %v1082 = vld [vmem:[%s118 + $0x1d70] sm:$0xff]
        %v1083 = vld [vmem:[%s118 + $0x1d78] sm:$0xff]
        %v1084 = vld [vmem:[%s118 + $0x1d80] sm:$0xff]
        %v1085 = vld [vmem:[%s118 + $0x1d88] sm:$0xff]
        %v1086 = vld [vmem:[%s118 + $0x1d90] sm:$0xff]
        %v1087 = vld [vmem:[%s118 + $0x1d98] sm:$0xff]
        %v1088 = vld [vmem:[%s118 + $0x1da0] sm:$0xff]
        %v1089 = vld [vmem:[%s118 + $0x1da8] sm:$0xff]
        %v1090 = vld [vmem:[%s118 + $0x1db0] sm:$0xff]
        %v1091 = vld [vmem:[%s118 + $0x1db8] sm:$0xff]
        %v1092 = vld [vmem:[%s118 + $0x1dc0] sm:$0xff]
        %v1093 = vld [vmem:[%s118 + $0x1dc8] sm:$0xff]
        %v1094 = vld [vmem:[%s118 + $0x1dd0] sm:$0xff]
        %v1095 = vld [vmem:[%s118 + $0x1dd8] sm:$0xff]
        %v1096 = vld [vmem:[%s118 + $0x1de0] sm:$0xff]
        %v1097 = vld [vmem:[%s118 + $0x1de8] sm:$0xff]
        %v1098 = vld [vmem:[%s118 + $0x1df0] sm:$0xff]
        %v1099 = vld [vmem:[%s118 + $0x1df8] sm:$0xff]
        %v1100 = vld [vmem:[%s118 + $0x1e00] sm:$0xff]
        %v1101 = vld [vmem:[%s118 + $0x1e08] sm:$0xff]
        %v1102 = vld [vmem:[%s118 + $0x1e10] sm:$0xff]
        %v1103 = vld [vmem:[%s118 + $0x1e18] sm:$0xff]
        %v1104 = vld [vmem:[%s118 + $0x1e20] sm:$0xff]
        %v1105 = vld [vmem:[%s118 + $0x1e28] sm:$0xff]
        %v1106 = vld [vmem:[%s118 + $0x1e30] sm:$0xff]
        %v1107 = vld [vmem:[%s118 + $0x1e38] sm:$0xff]
        %v1108 = vld [vmem:[%s118 + $0x1e40] sm:$0xff]
        %v1109 = vld [vmem:[%s118 + $0x1e48] sm:$0xff]
        %v1110 = vld [vmem:[%s118 + $0x1e50] sm:$0xff]
        %v1111 = vld [vmem:[%s118 + $0x1e58] sm:$0xff]
        %v1112 = vld [vmem:[%s118 + $0x1e60] sm:$0xff]
        %v1113 = vld [vmem:[%s118 + $0x1e68] sm:$0xff]
        %v1114 = vld [vmem:[%s118 + $0x1e70] sm:$0xff]
        %v1115 = vld [vmem:[%s118 + $0x1e78] sm:$0xff]
        %v1116 = vld [vmem:[%s118 + $0x1e80] sm:$0xff]
        %v1117 = vld [vmem:[%s118 + $0x1e88] sm:$0xff]
        %v1118 = vld [vmem:[%s118 + $0x1e90] sm:$0xff]
        %v1119 = vld [vmem:[%s118 + $0x1e98] sm:$0xff]
        %v1120 = vld [vmem:[%s118 + $0x1ea0] sm:$0xff]
        %v1121 = vld [vmem:[%s118 + $0x1ea8] sm:$0xff]
        %v1122 = vld [vmem:[%s118 + $0x1eb0] sm:$0xff]
        %v1123 = vld [vmem:[%s118 + $0x1eb8] sm:$0xff]
        %v1124 = vld [vmem:[%s118 + $0x1ec0] sm:$0xff]
        %v1125 = vld [vmem:[%s118 + $0x1ec8] sm:$0xff]
        %v1126 = vld [vmem:[%s118 + $0x1ed0] sm:$0xff]
        %v1127 = vld [vmem:[%s118 + $0x1ed8] sm:$0xff]
        %v1128 = vld [vmem:[%s118 + $0x1ee0] sm:$0xff]
        %v1129 = vld [vmem:[%s118 + $0x1ee8] sm:$0xff]
        %v1130 = vld [vmem:[%s118 + $0x1ef0] sm:$0xff]
        %v1131 = vld [vmem:[%s118 + $0x1ef8] sm:$0xff]
        %v1132 = vld [vmem:[%s118 + $0x1f00] sm:$0xff]
        %v1133 = vld [vmem:[%s118 + $0x1f08] sm:$0xff]
        %v1134 = vld [vmem:[%s118 + $0x1f10] sm:$0xff]
        %v1135 = vld [vmem:[%s118 + $0x1f18] sm:$0xff]
        %v1136 = vld [vmem:[%s118 + $0x1f20] sm:$0xff]
        %v1137 = vld [vmem:[%s118 + $0x1f28] sm:$0xff]
        %v1138 = vld [vmem:[%s118 + $0x1f30] sm:$0xff]
        %v1139 = vld [vmem:[%s118 + $0x1f38] sm:$0xff]
        %v1140 = vld [vmem:[%s118 + $0x1f40] sm:$0xff]
        %v1141 = vld [vmem:[%s118 + $0x1f48] sm:$0xff]
        %v1142 = vld [vmem:[%s118 + $0x1f50] sm:$0xff]
        %v1143 = vld [vmem:[%s118 + $0x1f58] sm:$0xff]
        %v1144 = vld [vmem:[%s118 + $0x1f60] sm:$0xff]
        %v1145 = vld [vmem:[%s118 + $0x1f68] sm:$0xff]
        %v1146 = vld [vmem:[%s118 + $0x1f70] sm:$0xff]
        %v1147 = vld [vmem:[%s118 + $0x1f78] sm:$0xff]
        %v1148 = vld [vmem:[%s118 + $0x1f80] sm:$0xff]
        %v1149 = vld [vmem:[%s118 + $0x1f88] sm:$0xff]
        %v1150 = vld [vmem:[%s118 + $0x1f90] sm:$0xff]
        %v1151 = vld [vmem:[%s118 + $0x1f98] sm:$0xff]
        %v1152 = vld [vmem:[%s118 + $0x1fa0] sm:$0xff]
        %v1153 = vld [vmem:[%s118 + $0x1fa8] sm:$0xff]
        %v1154 = vld [vmem:[%s118 + $0x1fb0] sm:$0xff]
        %v1155 = vld [vmem:[%s118 + $0x1fb8] sm:$0xff]
        %v1156 = vld [vmem:[%s118 + $0x1fc0] sm:$0xff]
        %v1157 = vld [vmem:[%s118 + $0x1fc8] sm:$0xff]
        %v1158 = vld [vmem:[%s118 + $0x1fd0] sm:$0xff]
        %v1159 = vld [vmem:[%s118 + $0x1fd8] sm:$0xff]
        %v1160 = vld [vmem:[%s118 + $0x1fe0] sm:$0xff]
        %v1161 = vld [vmem:[%s118 + $0x1fe8] sm:$0xff]
        %v1162 = vld [vmem:[%s118 + $0x1ff0] sm:$0xff]
        %v1163 = vld [vmem:[%s118 + $0x1ff8] sm:$0xff]
        %v1164 = vand.u32 2147483647, %v140
        %v1165 = vand.u32 2147483647, %v141
        %v1166 = vand.u32 2147483647, %v142
        %v1167 = vand.u32 2147483647, %v143
        %v1168 = vand.u32 2147483647, %v144
        %v1169 = vand.u32 2147483647, %v145
        %v1170 = vand.u32 2147483647, %v146
        %v1171 = vand.u32 2147483647, %v147
        %v1172 = vand.u32 2147483647, %v148
        %v1173 = vand.u32 2147483647, %v149
        %v1174 = vand.u32 2147483647, %v150
        %v1175 = vand.u32 2147483647, %v151
        %v1176 = vand.u32 2147483647, %v152
        %v1177 = vand.u32 2147483647, %v153
        %v1178 = vand.u32 2147483647, %v154
        %v1179 = vand.u32 2147483647, %v155
        %v1180 = vand.u32 2147483647, %v156
        %v1181 = vand.u32 2147483647, %v157
        %v1182 = vand.u32 2147483647, %v158
        %v1183 = vand.u32 2147483647, %v159
        %v1184 = vand.u32 2147483647, %v160
        %v1185 = vand.u32 2147483647, %v161
        %v1186 = vand.u32 2147483647, %v162
        %v1187 = vand.u32 2147483647, %v163
        %v1188 = vand.u32 2147483647, %v164
        %v1189 = vand.u32 2147483647, %v165
        %v1190 = vand.u32 2147483647, %v166
        %v1191 = vand.u32 2147483647, %v167
        %v1192 = vand.u32 2147483647, %v168
        %v1193 = vand.u32 2147483647, %v169
        %v1194 = vand.u32 2147483647, %v170
        %v1195 = vand.u32 2147483647, %v171
        %v1196 = vand.u32 2147483647, %v172
        %v1197 = vand.u32 2147483647, %v173
        %v1198 = vand.u32 2147483647, %v174
        %v1199 = vand.u32 2147483647, %v175
        %v1200 = vand.u32 2147483647, %v176
        %v1201 = vand.u32 2147483647, %v177
        %v1202 = vand.u32 2147483647, %v178
        %v1203 = vand.u32 2147483647, %v179
        %v1204 = vand.u32 2147483647, %v180
        %v1205 = vand.u32 2147483647, %v181
        %v1206 = vand.u32 2147483647, %v182
        %v1207 = vand.u32 2147483647, %v183
        %v1208 = vand.u32 2147483647, %v184
        %v1209 = vand.u32 2147483647, %v185
        %v1210 = vand.u32 2147483647, %v186
        %v1211 = vand.u32 2147483647, %v187
        %v1212 = vand.u32 2147483647, %v188
        %v1213 = vand.u32 2147483647, %v189
        %v1214 = vand.u32 2147483647, %v190
        %v1215 = vand.u32 2147483647, %v191
        %v1216 = vand.u32 2147483647, %v192
        %v1217 = vand.u32 2147483647, %v193
        %v1218 = vand.u32 2147483647, %v194
        %v1219 = vand.u32 2147483647, %v195
        %v1220 = vand.u32 2147483647, %v196
        %v1221 = vand.u32 2147483647, %v197
        %v1222 = vand.u32 2147483647, %v198
        %v1223 = vand.u32 2147483647, %v199
        %v1224 = vand.u32 2147483647, %v200
        %v1225 = vand.u32 2147483647, %v201
        %v1226 = vand.u32 2147483647, %v202
        %v1227 = vand.u32 2147483647, %v203
        %v1228 = vand.u32 2147483647, %v204
        %v1229 = vand.u32 2147483647, %v205
        %v1230 = vand.u32 2147483647, %v206
        %v1231 = vand.u32 2147483647, %v207
        %v1232 = vand.u32 2147483647, %v208
        %v1233 = vand.u32 2147483647, %v209
        %v1234 = vand.u32 2147483647, %v210
        %v1235 = vand.u32 2147483647, %v211
        %v1236 = vand.u32 2147483647, %v212
        %v1237 = vand.u32 2147483647, %v213
        %v1238 = vand.u32 2147483647, %v214
        %v1239 = vand.u32 2147483647, %v215
        %v1240 = vand.u32 2147483647, %v216
        %v1241 = vand.u32 2147483647, %v217
        %v1242 = vand.u32 2147483647, %v218
        %v1243 = vand.u32 2147483647, %v219
        %v1244 = vand.u32 2147483647, %v220
        %v1245 = vand.u32 2147483647, %v221
        %v1246 = vand.u32 2147483647, %v222
        %v1247 = vand.u32 2147483647, %v223
        %v1248 = vand.u32 2147483647, %v224
        %v1249 = vand.u32 2147483647, %v225
        %v1250 = vand.u32 2147483647, %v226
        %v1251 = vand.u32 2147483647, %v227
        %v1252 = vand.u32 2147483647, %v228
        %v1253 = vand.u32 2147483647, %v229
        %v1254 = vand.u32 2147483647, %v230
        %v1255 = vand.u32 2147483647, %v231
        %v1256 = vand.u32 2147483647, %v232
        %v1257 = vand.u32 2147483647, %v233
        %v1258 = vand.u32 2147483647, %v234
        %v1259 = vand.u32 2147483647, %v235
        %v1260 = vand.u32 2147483647, %v236
        %v1261 = vand.u32 2147483647, %v237
        %v1262 = vand.u32 2147483647, %v238
        %v1263 = vand.u32 2147483647, %v239
        %v1264 = vand.u32 2147483647, %v240
        %v1265 = vand.u32 2147483647, %v241
        %v1266 = vand.u32 2147483647, %v242
        %v1267 = vand.u32 2147483647, %v243
        %v1268 = vand.u32 2147483647, %v244
        %v1269 = vand.u32 2147483647, %v245
        %v1270 = vand.u32 2147483647, %v246
        %v1271 = vand.u32 2147483647, %v247
        %v1272 = vand.u32 2147483647, %v248
        %v1273 = vand.u32 2147483647, %v249
        %v1274 = vand.u32 2147483647, %v250
        %v1275 = vand.u32 2147483647, %v251
        %v1276 = vand.u32 2147483647, %v252
        %v1277 = vand.u32 2147483647, %v253
        %v1278 = vand.u32 2147483647, %v254
        %v1279 = vand.u32 2147483647, %v255
        %v1280 = vand.u32 2147483647, %v256
        %v1281 = vand.u32 2147483647, %v257
        %v1282 = vand.u32 2147483647, %v258
        %v1283 = vand.u32 2147483647, %v259
        %v1284 = vand.u32 2147483647, %v260
        %v1285 = vand.u32 2147483647, %v261
        %v1286 = vand.u32 2147483647, %v262
        %v1287 = vand.u32 2147483647, %v263
        %v1288 = vand.u32 2147483647, %v264
        %v1289 = vand.u32 2147483647, %v265
        %v1290 = vand.u32 2147483647, %v266
        %v1291 = vand.u32 2147483647, %v267
        %v1292 = vand.u32 2147483647, %v268
        %v1293 = vand.u32 2147483647, %v269
        %v1294 = vand.u32 2147483647, %v270
        %v1295 = vand.u32 2147483647, %v271
        %v1296 = vand.u32 2147483647, %v272
        %v1297 = vand.u32 2147483647, %v273
        %v1298 = vand.u32 2147483647, %v274
        %v1299 = vand.u32 2147483647, %v275
        %v1300 = vand.u32 2147483647, %v276
        %v1301 = vand.u32 2147483647, %v277
        %v1302 = vand.u32 2147483647, %v278
        %v1303 = vand.u32 2147483647, %v279
        %v1304 = vand.u32 2147483647, %v280
        %v1305 = vand.u32 2147483647, %v281
        %v1306 = vand.u32 2147483647, %v282
        %v1307 = vand.u32 2147483647, %v283
        %v1308 = vand.u32 2147483647, %v284
        %v1309 = vand.u32 2147483647, %v285
        %v1310 = vand.u32 2147483647, %v286
        %v1311 = vand.u32 2147483647, %v287
        %v1312 = vand.u32 2147483647, %v288
        %v1313 = vand.u32 2147483647, %v289
        %v1314 = vand.u32 2147483647, %v290
        %v1315 = vand.u32 2147483647, %v291
        %v1316 = vand.u32 2147483647, %v292
        %v1317 = vand.u32 2147483647, %v293
        %v1318 = vand.u32 2147483647, %v294
        %v1319 = vand.u32 2147483647, %v295
        %v1320 = vand.u32 2147483647, %v296
        %v1321 = vand.u32 2147483647, %v297
        %v1322 = vand.u32 2147483647, %v298
        %v1323 = vand.u32 2147483647, %v299
        %v1324 = vand.u32 2147483647, %v300
        %v1325 = vand.u32 2147483647, %v301
        %v1326 = vand.u32 2147483647, %v302
        %v1327 = vand.u32 2147483647, %v303
        %v1328 = vand.u32 2147483647, %v304
        %v1329 = vand.u32 2147483647, %v305
        %v1330 = vand.u32 2147483647, %v306
        %v1331 = vand.u32 2147483647, %v307
        %v1332 = vand.u32 2147483647, %v308
        %v1333 = vand.u32 2147483647, %v309
        %v1334 = vand.u32 2147483647, %v310
        %v1335 = vand.u32 2147483647, %v311
        %v1336 = vand.u32 2147483647, %v312
        %v1337 = vand.u32 2147483647, %v313
        %v1338 = vand.u32 2147483647, %v314
        %v1339 = vand.u32 2147483647, %v315
        %v1340 = vand.u32 2147483647, %v316
        %v1341 = vand.u32 2147483647, %v317
        %v1342 = vand.u32 2147483647, %v318
        %v1343 = vand.u32 2147483647, %v319
        %v1344 = vand.u32 2147483647, %v320
        %v1345 = vand.u32 2147483647, %v321
        %v1346 = vand.u32 2147483647, %v322
        %v1347 = vand.u32 2147483647, %v323
        %v1348 = vand.u32 2147483647, %v324
        %v1349 = vand.u32 2147483647, %v325
        %v1350 = vand.u32 2147483647, %v326
        %v1351 = vand.u32 2147483647, %v327
        %v1352 = vand.u32 2147483647, %v328
        %v1353 = vand.u32 2147483647, %v329
        %v1354 = vand.u32 2147483647, %v330
        %v1355 = vand.u32 2147483647, %v331
        %v1356 = vand.u32 2147483647, %v332
        %v1357 = vand.u32 2147483647, %v333
        %v1358 = vand.u32 2147483647, %v334
        %v1359 = vand.u32 2147483647, %v335
        %v1360 = vand.u32 2147483647, %v336
        %v1361 = vand.u32 2147483647, %v337
        %v1362 = vand.u32 2147483647, %v338
        %v1363 = vand.u32 2147483647, %v339
        %v1364 = vand.u32 2147483647, %v340
        %v1365 = vand.u32 2147483647, %v341
        %v1366 = vand.u32 2147483647, %v342
        %v1367 = vand.u32 2147483647, %v343
        %v1368 = vand.u32 2147483647, %v344
        %v1369 = vand.u32 2147483647, %v345
        %v1370 = vand.u32 2147483647, %v346
        %v1371 = vand.u32 2147483647, %v347
        %v1372 = vand.u32 2147483647, %v348
        %v1373 = vand.u32 2147483647, %v349
        %v1374 = vand.u32 2147483647, %v350
        %v1375 = vand.u32 2147483647, %v351
        %v1376 = vand.u32 2147483647, %v352
        %v1377 = vand.u32 2147483647, %v353
        %v1378 = vand.u32 2147483647, %v354
        %v1379 = vand.u32 2147483647, %v355
        %v1380 = vand.u32 2147483647, %v356
        %v1381 = vand.u32 2147483647, %v357
        %v1382 = vand.u32 2147483647, %v358
        %v1383 = vand.u32 2147483647, %v359
        %v1384 = vand.u32 2147483647, %v360
        %v1385 = vand.u32 2147483647, %v361
        %v1386 = vand.u32 2147483647, %v362
        %v1387 = vand.u32 2147483647, %v363
        %v1388 = vand.u32 2147483647, %v364
        %v1389 = vand.u32 2147483647, %v365
        %v1390 = vand.u32 2147483647, %v366
        %v1391 = vand.u32 2147483647, %v367
        %v1392 = vand.u32 2147483647, %v368
        %v1393 = vand.u32 2147483647, %v369
        %v1394 = vand.u32 2147483647, %v370
        %v1395 = vand.u32 2147483647, %v371
        %v1396 = vand.u32 2147483647, %v372
        %v1397 = vand.u32 2147483647, %v373
        %v1398 = vand.u32 2147483647, %v374
        %v1399 = vand.u32 2147483647, %v375
        %v1400 = vand.u32 2147483647, %v376
        %v1401 = vand.u32 2147483647, %v377
        %v1402 = vand.u32 2147483647, %v378
        %v1403 = vand.u32 2147483647, %v379
        %v1404 = vand.u32 2147483647, %v380
        %v1405 = vand.u32 2147483647, %v381
        %v1406 = vand.u32 2147483647, %v382
        %v1407 = vand.u32 2147483647, %v383
        %v1408 = vand.u32 2147483647, %v384
        %v1409 = vand.u32 2147483647, %v385
        %v1410 = vand.u32 2147483647, %v386
        %v1411 = vand.u32 2147483647, %v387
        %v1412 = vand.u32 2147483647, %v388
        %v1413 = vand.u32 2147483647, %v389
        %v1414 = vand.u32 2147483647, %v390
        %v1415 = vand.u32 2147483647, %v391
        %v1416 = vand.u32 2147483647, %v392
        %v1417 = vand.u32 2147483647, %v393
        %v1418 = vand.u32 2147483647, %v394
        %v1419 = vand.u32 2147483647, %v395
        %v1420 = vand.u32 2147483647, %v396
        %v1421 = vand.u32 2147483647, %v397
        %v1422 = vand.u32 2147483647, %v398
        %v1423 = vand.u32 2147483647, %v399
        %v1424 = vand.u32 2147483647, %v400
        %v1425 = vand.u32 2147483647, %v401
        %v1426 = vand.u32 2147483647, %v402
        %v1427 = vand.u32 2147483647, %v403
        %v1428 = vand.u32 2147483647, %v404
        %v1429 = vand.u32 2147483647, %v405
        %v1430 = vand.u32 2147483647, %v406
        %v1431 = vand.u32 2147483647, %v407
        %v1432 = vand.u32 2147483647, %v408
        %v1433 = vand.u32 2147483647, %v409
        %v1434 = vand.u32 2147483647, %v410
        %v1435 = vand.u32 2147483647, %v411
        %v1436 = vand.u32 2147483647, %v412
        %v1437 = vand.u32 2147483647, %v413
        %v1438 = vand.u32 2147483647, %v414
        %v1439 = vand.u32 2147483647, %v415
        %v1440 = vand.u32 2147483647, %v416
        %v1441 = vand.u32 2147483647, %v417
        %v1442 = vand.u32 2147483647, %v418
        %v1443 = vand.u32 2147483647, %v419
        %v1444 = vand.u32 2147483647, %v420
        %v1445 = vand.u32 2147483647, %v421
        %v1446 = vand.u32 2147483647, %v422
        %v1447 = vand.u32 2147483647, %v423
        %v1448 = vand.u32 2147483647, %v424
        %v1449 = vand.u32 2147483647, %v425
        %v1450 = vand.u32 2147483647, %v426
        %v1451 = vand.u32 2147483647, %v427
        %v1452 = vand.u32 2147483647, %v428
        %v1453 = vand.u32 2147483647, %v429
        %v1454 = vand.u32 2147483647, %v430
        %v1455 = vand.u32 2147483647, %v431
        %v1456 = vand.u32 2147483647, %v432
        %v1457 = vand.u32 2147483647, %v433
        %v1458 = vand.u32 2147483647, %v434
        %v1459 = vand.u32 2147483647, %v435
        %v1460 = vand.u32 2147483647, %v436
        %v1461 = vand.u32 2147483647, %v437
        %v1462 = vand.u32 2147483647, %v438
        %v1463 = vand.u32 2147483647, %v439
        %v1464 = vand.u32 2147483647, %v440
        %v1465 = vand.u32 2147483647, %v441
        %v1466 = vand.u32 2147483647, %v442
        %v1467 = vand.u32 2147483647, %v443
        %v1468 = vand.u32 2147483647, %v444
        %v1469 = vand.u32 2147483647, %v445
        %v1470 = vand.u32 2147483647, %v446
        %v1471 = vand.u32 2147483647, %v447
        %v1472 = vand.u32 2147483647, %v448
        %v1473 = vand.u32 2147483647, %v449
        %v1474 = vand.u32 2147483647, %v450
        %v1475 = vand.u32 2147483647, %v451
        %v1476 = vand.u32 2147483647, %v452
        %v1477 = vand.u32 2147483647, %v453
        %v1478 = vand.u32 2147483647, %v454
        %v1479 = vand.u32 2147483647, %v455
        %v1480 = vand.u32 2147483647, %v456
        %v1481 = vand.u32 2147483647, %v457
        %v1482 = vand.u32 2147483647, %v458
        %v1483 = vand.u32 2147483647, %v459
        %v1484 = vand.u32 2147483647, %v460
        %v1485 = vand.u32 2147483647, %v461
        %v1486 = vand.u32 2147483647, %v462
        %v1487 = vand.u32 2147483647, %v463
        %v1488 = vand.u32 2147483647, %v464
        %v1489 = vand.u32 2147483647, %v465
        %v1490 = vand.u32 2147483647, %v466
        %v1491 = vand.u32 2147483647, %v467
        %v1492 = vand.u32 2147483647, %v468
        %v1493 = vand.u32 2147483647, %v469
        %v1494 = vand.u32 2147483647, %v470
        %v1495 = vand.u32 2147483647, %v471
        %v1496 = vand.u32 2147483647, %v472
        %v1497 = vand.u32 2147483647, %v473
        %v1498 = vand.u32 2147483647, %v474
        %v1499 = vand.u32 2147483647, %v475
        %v1500 = vand.u32 2147483647, %v476
        %v1501 = vand.u32 2147483647, %v477
        %v1502 = vand.u32 2147483647, %v478
        %v1503 = vand.u32 2147483647, %v479
        %v1504 = vand.u32 2147483647, %v480
        %v1505 = vand.u32 2147483647, %v481
        %v1506 = vand.u32 2147483647, %v482
        %v1507 = vand.u32 2147483647, %v483
        %v1508 = vand.u32 2147483647, %v484
        %v1509 = vand.u32 2147483647, %v485
        %v1510 = vand.u32 2147483647, %v486
        %v1511 = vand.u32 2147483647, %v487
        %v1512 = vand.u32 2147483647, %v488
        %v1513 = vand.u32 2147483647, %v489
        %v1514 = vand.u32 2147483647, %v490
        %v1515 = vand.u32 2147483647, %v491
        %v1516 = vand.u32 2147483647, %v492
        %v1517 = vand.u32 2147483647, %v493
        %v1518 = vand.u32 2147483647, %v494
        %v1519 = vand.u32 2147483647, %v495
        %v1520 = vand.u32 2147483647, %v496
        %v1521 = vand.u32 2147483647, %v497
        %v1522 = vand.u32 2147483647, %v498
        %v1523 = vand.u32 2147483647, %v499
        %v1524 = vand.u32 2147483647, %v500
        %v1525 = vand.u32 2147483647, %v501
        %v1526 = vand.u32 2147483647, %v502
        %v1527 = vand.u32 2147483647, %v503
        %v1528 = vand.u32 2147483647, %v504
        %v1529 = vand.u32 2147483647, %v505
        %v1530 = vand.u32 2147483647, %v506
        %v1531 = vand.u32 2147483647, %v507
        %v1532 = vand.u32 2147483647, %v508
        %v1533 = vand.u32 2147483647, %v509
        %v1534 = vand.u32 2147483647, %v510
        %v1535 = vand.u32 2147483647, %v511
        %v1536 = vand.u32 2147483647, %v512
        %v1537 = vand.u32 2147483647, %v513
        %v1538 = vand.u32 2147483647, %v514
        %v1539 = vand.u32 2147483647, %v515
        %v1540 = vand.u32 2147483647, %v516
        %v1541 = vand.u32 2147483647, %v517
        %v1542 = vand.u32 2147483647, %v518
        %v1543 = vand.u32 2147483647, %v519
        %v1544 = vand.u32 2147483647, %v520
        %v1545 = vand.u32 2147483647, %v521
        %v1546 = vand.u32 2147483647, %v522
        %v1547 = vand.u32 2147483647, %v523
        %v1548 = vand.u32 2147483647, %v524
        %v1549 = vand.u32 2147483647, %v525
        %v1550 = vand.u32 2147483647, %v526
        %v1551 = vand.u32 2147483647, %v527
        %v1552 = vand.u32 2147483647, %v528
        %v1553 = vand.u32 2147483647, %v529
        %v1554 = vand.u32 2147483647, %v530
        %v1555 = vand.u32 2147483647, %v531
        %v1556 = vand.u32 2147483647, %v532
        %v1557 = vand.u32 2147483647, %v533
        %v1558 = vand.u32 2147483647, %v534
        %v1559 = vand.u32 2147483647, %v535
        %v1560 = vand.u32 2147483647, %v536
        %v1561 = vand.u32 2147483647, %v537
        %v1562 = vand.u32 2147483647, %v538
        %v1563 = vand.u32 2147483647, %v539
        %v1564 = vand.u32 2147483647, %v540
        %v1565 = vand.u32 2147483647, %v541
        %v1566 = vand.u32 2147483647, %v542
        %v1567 = vand.u32 2147483647, %v543
        %v1568 = vand.u32 2147483647, %v544
        %v1569 = vand.u32 2147483647, %v545
        %v1570 = vand.u32 2147483647, %v546
        %v1571 = vand.u32 2147483647, %v547
        %v1572 = vand.u32 2147483647, %v548
        %v1573 = vand.u32 2147483647, %v549
        %v1574 = vand.u32 2147483647, %v550
        %v1575 = vand.u32 2147483647, %v551
        %v1576 = vand.u32 2147483647, %v552
        %v1577 = vand.u32 2147483647, %v553
        %v1578 = vand.u32 2147483647, %v554
        %v1579 = vand.u32 2147483647, %v555
        %v1580 = vand.u32 2147483647, %v556
        %v1581 = vand.u32 2147483647, %v557
        %v1582 = vand.u32 2147483647, %v558
        %v1583 = vand.u32 2147483647, %v559
        %v1584 = vand.u32 2147483647, %v560
        %v1585 = vand.u32 2147483647, %v561
        %v1586 = vand.u32 2147483647, %v562
        %v1587 = vand.u32 2147483647, %v563
        %v1588 = vand.u32 2147483647, %v564
        %v1589 = vand.u32 2147483647, %v565
        %v1590 = vand.u32 2147483647, %v566
        %v1591 = vand.u32 2147483647, %v567
        %v1592 = vand.u32 2147483647, %v568
        %v1593 = vand.u32 2147483647, %v569
        %v1594 = vand.u32 2147483647, %v570
        %v1595 = vand.u32 2147483647, %v571
        %v1596 = vand.u32 2147483647, %v572
        %v1597 = vand.u32 2147483647, %v573
        %v1598 = vand.u32 2147483647, %v574
        %v1599 = vand.u32 2147483647, %v575
        %v1600 = vand.u32 2147483647, %v576
        %v1601 = vand.u32 2147483647, %v577
        %v1602 = vand.u32 2147483647, %v578
        %v1603 = vand.u32 2147483647, %v579
        %v1604 = vand.u32 2147483647, %v580
        %v1605 = vand.u32 2147483647, %v581
        %v1606 = vand.u32 2147483647, %v582
        %v1607 = vand.u32 2147483647, %v583
        %v1608 = vand.u32 2147483647, %v584
        %v1609 = vand.u32 2147483647, %v585
        %v1610 = vand.u32 2147483647, %v586
        %v1611 = vand.u32 2147483647, %v587
        %v1612 = vand.u32 2147483647, %v588
        %v1613 = vand.u32 2147483647, %v589
        %v1614 = vand.u32 2147483647, %v590
        %v1615 = vand.u32 2147483647, %v591
        %v1616 = vand.u32 2147483647, %v592
        %v1617 = vand.u32 2147483647, %v593
        %v1618 = vand.u32 2147483647, %v594
        %v1619 = vand.u32 2147483647, %v595
        %v1620 = vand.u32 2147483647, %v596
        %v1621 = vand.u32 2147483647, %v597
        %v1622 = vand.u32 2147483647, %v598
        %v1623 = vand.u32 2147483647, %v599
        %v1624 = vand.u32 2147483647, %v600
        %v1625 = vand.u32 2147483647, %v601
        %v1626 = vand.u32 2147483647, %v602
        %v1627 = vand.u32 2147483647, %v603
        %v1628 = vand.u32 2147483647, %v604
        %v1629 = vand.u32 2147483647, %v605
        %v1630 = vand.u32 2147483647, %v606
        %v1631 = vand.u32 2147483647, %v607
        %v1632 = vand.u32 2147483647, %v608
        %v1633 = vand.u32 2147483647, %v609
        %v1634 = vand.u32 2147483647, %v610
        %v1635 = vand.u32 2147483647, %v611
        %v1636 = vand.u32 2147483647, %v612
        %v1637 = vand.u32 2147483647, %v613
        %v1638 = vand.u32 2147483647, %v614
        %v1639 = vand.u32 2147483647, %v615
        %v1640 = vand.u32 2147483647, %v616
        %v1641 = vand.u32 2147483647, %v617
        %v1642 = vand.u32 2147483647, %v618
        %v1643 = vand.u32 2147483647, %v619
        %v1644 = vand.u32 2147483647, %v620
        %v1645 = vand.u32 2147483647, %v621
        %v1646 = vand.u32 2147483647, %v622
        %v1647 = vand.u32 2147483647, %v623
        %v1648 = vand.u32 2147483647, %v624
        %v1649 = vand.u32 2147483647, %v625
        %v1650 = vand.u32 2147483647, %v626
        %v1651 = vand.u32 2147483647, %v627
        %v1652 = vand.u32 2147483647, %v628
        %v1653 = vand.u32 2147483647, %v629
        %v1654 = vand.u32 2147483647, %v630
        %v1655 = vand.u32 2147483647, %v631
        %v1656 = vand.u32 2147483647, %v632
        %v1657 = vand.u32 2147483647, %v633
        %v1658 = vand.u32 2147483647, %v634
        %v1659 = vand.u32 2147483647, %v635
        %v1660 = vand.u32 2147483647, %v636
        %v1661 = vand.u32 2147483647, %v637
        %v1662 = vand.u32 2147483647, %v638
        %v1663 = vand.u32 2147483647, %v639
        %v1664 = vand.u32 2147483647, %v640
        %v1665 = vand.u32 2147483647, %v641
        %v1666 = vand.u32 2147483647, %v642
        %v1667 = vand.u32 2147483647, %v643
        %v1668 = vand.u32 2147483647, %v644
        %v1669 = vand.u32 2147483647, %v645
        %v1670 = vand.u32 2147483647, %v646
        %v1671 = vand.u32 2147483647, %v647
        %v1672 = vand.u32 2147483647, %v648
        %v1673 = vand.u32 2147483647, %v649
        %v1674 = vand.u32 2147483647, %v650
        %v1675 = vand.u32 2147483647, %v651
        %v1676 = vand.u32 2147483647, %v652
        %v1677 = vand.u32 2147483647, %v653
        %v1678 = vand.u32 2147483647, %v654
        %v1679 = vand.u32 2147483647, %v655
        %v1680 = vand.u32 2147483647, %v656
        %v1681 = vand.u32 2147483647, %v657
        %v1682 = vand.u32 2147483647, %v658
        %v1683 = vand.u32 2147483647, %v659
        %v1684 = vand.u32 2147483647, %v660
        %v1685 = vand.u32 2147483647, %v661
        %v1686 = vand.u32 2147483647, %v662
        %v1687 = vand.u32 2147483647, %v663
        %v1688 = vand.u32 2147483647, %v664
        %v1689 = vand.u32 2147483647, %v665
        %v1690 = vand.u32 2147483647, %v666
        %v1691 = vand.u32 2147483647, %v667
        %v1692 = vand.u32 2147483647, %v668
        %v1693 = vand.u32 2147483647, %v669
        %v1694 = vand.u32 2147483647, %v670
        %v1695 = vand.u32 2147483647, %v671
        %v1696 = vand.u32 2147483647, %v672
        %v1697 = vand.u32 2147483647, %v673
        %v1698 = vand.u32 2147483647, %v674
        %v1699 = vand.u32 2147483647, %v675
        %v1700 = vand.u32 2147483647, %v676
        %v1701 = vand.u32 2147483647, %v677
        %v1702 = vand.u32 2147483647, %v678
        %v1703 = vand.u32 2147483647, %v679
        %v1704 = vand.u32 2147483647, %v680
        %v1705 = vand.u32 2147483647, %v681
        %v1706 = vand.u32 2147483647, %v682
        %v1707 = vand.u32 2147483647, %v683
        %v1708 = vand.u32 2147483647, %v684
        %v1709 = vand.u32 2147483647, %v685
        %v1710 = vand.u32 2147483647, %v686
        %v1711 = vand.u32 2147483647, %v687
        %v1712 = vand.u32 2147483647, %v688
        %v1713 = vand.u32 2147483647, %v689
        %v1714 = vand.u32 2147483647, %v690
        %v1715 = vand.u32 2147483647, %v691
        %v1716 = vand.u32 2147483647, %v692
        %v1717 = vand.u32 2147483647, %v693
        %v1718 = vand.u32 2147483647, %v694
        %v1719 = vand.u32 2147483647, %v695
        %v1720 = vand.u32 2147483647, %v696
        %v1721 = vand.u32 2147483647, %v697
        %v1722 = vand.u32 2147483647, %v698
        %v1723 = vand.u32 2147483647, %v699
        %v1724 = vand.u32 2147483647, %v700
        %v1725 = vand.u32 2147483647, %v701
        %v1726 = vand.u32 2147483647, %v702
        %v1727 = vand.u32 2147483647, %v703
        %v1728 = vand.u32 2147483647, %v704
        %v1729 = vand.u32 2147483647, %v705
        %v1730 = vand.u32 2147483647, %v706
        %v1731 = vand.u32 2147483647, %v707
        %v1732 = vand.u32 2147483647, %v708
        %v1733 = vand.u32 2147483647, %v709
        %v1734 = vand.u32 2147483647, %v710
        %v1735 = vand.u32 2147483647, %v711
        %v1736 = vand.u32 2147483647, %v712
        %v1737 = vand.u32 2147483647, %v713
        %v1738 = vand.u32 2147483647, %v714
        %v1739 = vand.u32 2147483647, %v715
        %v1740 = vand.u32 2147483647, %v716
        %v1741 = vand.u32 2147483647, %v717
        %v1742 = vand.u32 2147483647, %v718
        %v1743 = vand.u32 2147483647, %v719
        %v1744 = vand.u32 2147483647, %v720
        %v1745 = vand.u32 2147483647, %v721
        %v1746 = vand.u32 2147483647, %v722
        %v1747 = vand.u32 2147483647, %v723
        %v1748 = vand.u32 2147483647, %v724
        %v1749 = vand.u32 2147483647, %v725
        %v1750 = vand.u32 2147483647, %v726
        %v1751 = vand.u32 2147483647, %v727
        %v1752 = vand.u32 2147483647, %v728
        %v1753 = vand.u32 2147483647, %v729
        %v1754 = vand.u32 2147483647, %v730
        %v1755 = vand.u32 2147483647, %v731
        %v1756 = vand.u32 2147483647, %v732
        %v1757 = vand.u32 2147483647, %v733
        %v1758 = vand.u32 2147483647, %v734
        %v1759 = vand.u32 2147483647, %v735
        %v1760 = vand.u32 2147483647, %v736
        %v1761 = vand.u32 2147483647, %v737
        %v1762 = vand.u32 2147483647, %v738
        %v1763 = vand.u32 2147483647, %v739
        %v1764 = vand.u32 2147483647, %v740
        %v1765 = vand.u32 2147483647, %v741
        %v1766 = vand.u32 2147483647, %v742
        %v1767 = vand.u32 2147483647, %v743
        %v1768 = vand.u32 2147483647, %v744
        %v1769 = vand.u32 2147483647, %v745
        %v1770 = vand.u32 2147483647, %v746
        %v1771 = vand.u32 2147483647, %v747
        %v1772 = vand.u32 2147483647, %v748
        %v1773 = vand.u32 2147483647, %v749
        %v1774 = vand.u32 2147483647, %v750
        %v1775 = vand.u32 2147483647, %v751
        %v1776 = vand.u32 2147483647, %v752
        %v1777 = vand.u32 2147483647, %v753
        %v1778 = vand.u32 2147483647, %v754
        %v1779 = vand.u32 2147483647, %v755
        %v1780 = vand.u32 2147483647, %v756
        %v1781 = vand.u32 2147483647, %v757
        %v1782 = vand.u32 2147483647, %v758
        %v1783 = vand.u32 2147483647, %v759
        %v1784 = vand.u32 2147483647, %v760
        %v1785 = vand.u32 2147483647, %v761
        %v1786 = vand.u32 2147483647, %v762
        %v1787 = vand.u32 2147483647, %v763
        %v1788 = vand.u32 2147483647, %v764
        %v1789 = vand.u32 2147483647, %v765
        %v1790 = vand.u32 2147483647, %v766
        %v1791 = vand.u32 2147483647, %v767
        %v1792 = vand.u32 2147483647, %v768
        %v1793 = vand.u32 2147483647, %v769
        %v1794 = vand.u32 2147483647, %v770
        %v1795 = vand.u32 2147483647, %v771
        %v1796 = vand.u32 2147483647, %v772
        %v1797 = vand.u32 2147483647, %v773
        %v1798 = vand.u32 2147483647, %v774
        %v1799 = vand.u32 2147483647, %v775
        %v1800 = vand.u32 2147483647, %v776
        %v1801 = vand.u32 2147483647, %v777
        %v1802 = vand.u32 2147483647, %v778
        %v1803 = vand.u32 2147483647, %v779
        %v1804 = vand.u32 2147483647, %v780
        %v1805 = vand.u32 2147483647, %v781
        %v1806 = vand.u32 2147483647, %v782
        %v1807 = vand.u32 2147483647, %v783
        %v1808 = vand.u32 2147483647, %v784
        %v1809 = vand.u32 2147483647, %v785
        %v1810 = vand.u32 2147483647, %v786
        %v1811 = vand.u32 2147483647, %v787
        %v1812 = vand.u32 2147483647, %v788
        %v1813 = vand.u32 2147483647, %v789
        %v1814 = vand.u32 2147483647, %v790
        %v1815 = vand.u32 2147483647, %v791
        %v1816 = vand.u32 2147483647, %v792
        %v1817 = vand.u32 2147483647, %v793
        %v1818 = vand.u32 2147483647, %v794
        %v1819 = vand.u32 2147483647, %v795
        %v1820 = vand.u32 2147483647, %v796
        %v1821 = vand.u32 2147483647, %v797
        %v1822 = vand.u32 2147483647, %v798
        %v1823 = vand.u32 2147483647, %v799
        %v1824 = vand.u32 2147483647, %v800
        %v1825 = vand.u32 2147483647, %v801
        %v1826 = vand.u32 2147483647, %v802
        %v1827 = vand.u32 2147483647, %v803
        %v1828 = vand.u32 2147483647, %v804
        %v1829 = vand.u32 2147483647, %v805
        %v1830 = vand.u32 2147483647, %v806
        %v1831 = vand.u32 2147483647, %v807
        %v1832 = vand.u32 2147483647, %v808
        %v1833 = vand.u32 2147483647, %v809
        %v1834 = vand.u32 2147483647, %v810
        %v1835 = vand.u32 2147483647, %v811
        %v1836 = vand.u32 2147483647, %v812
        %v1837 = vand.u32 2147483647, %v813
        %v1838 = vand.u32 2147483647, %v814
        %v1839 = vand.u32 2147483647, %v815
        %v1840 = vand.u32 2147483647, %v816
        %v1841 = vand.u32 2147483647, %v817
        %v1842 = vand.u32 2147483647, %v818
        %v1843 = vand.u32 2147483647, %v819
        %v1844 = vand.u32 2147483647, %v820
        %v1845 = vand.u32 2147483647, %v821
        %v1846 = vand.u32 2147483647, %v822
        %v1847 = vand.u32 2147483647, %v823
        %v1848 = vand.u32 2147483647, %v824
        %v1849 = vand.u32 2147483647, %v825
        %v1850 = vand.u32 2147483647, %v826
        %v1851 = vand.u32 2147483647, %v827
        %v1852 = vand.u32 2147483647, %v828
        %v1853 = vand.u32 2147483647, %v829
        %v1854 = vand.u32 2147483647, %v830
        %v1855 = vand.u32 2147483647, %v831
        %v1856 = vand.u32 2147483647, %v832
        %v1857 = vand.u32 2147483647, %v833
        %v1858 = vand.u32 2147483647, %v834
        %v1859 = vand.u32 2147483647, %v835
        %v1860 = vand.u32 2147483647, %v836
        %v1861 = vand.u32 2147483647, %v837
        %v1862 = vand.u32 2147483647, %v838
        %v1863 = vand.u32 2147483647, %v839
        %v1864 = vand.u32 2147483647, %v840
        %v1865 = vand.u32 2147483647, %v841
        %v1866 = vand.u32 2147483647, %v842
        %v1867 = vand.u32 2147483647, %v843
        %v1868 = vand.u32 2147483647, %v844
        %v1869 = vand.u32 2147483647, %v845
        %v1870 = vand.u32 2147483647, %v846
        %v1871 = vand.u32 2147483647, %v847
        %v1872 = vand.u32 2147483647, %v848
        %v1873 = vand.u32 2147483647, %v849
        %v1874 = vand.u32 2147483647, %v850
        %v1875 = vand.u32 2147483647, %v851
        %v1876 = vand.u32 2147483647, %v852
        %v1877 = vand.u32 2147483647, %v853
        %v1878 = vand.u32 2147483647, %v854
        %v1879 = vand.u32 2147483647, %v855
        %v1880 = vand.u32 2147483647, %v856
        %v1881 = vand.u32 2147483647, %v857
        %v1882 = vand.u32 2147483647, %v858
        %v1883 = vand.u32 2147483647, %v859
        %v1884 = vand.u32 2147483647, %v860
        %v1885 = vand.u32 2147483647, %v861
        %v1886 = vand.u32 2147483647, %v862
        %v1887 = vand.u32 2147483647, %v863
        %v1888 = vand.u32 2147483647, %v864
        %v1889 = vand.u32 2147483647, %v865
        %v1890 = vand.u32 2147483647, %v866
        %v1891 = vand.u32 2147483647, %v867
        %v1892 = vand.u32 2147483647, %v868
        %v1893 = vand.u32 2147483647, %v869
        %v1894 = vand.u32 2147483647, %v870
        %v1895 = vand.u32 2147483647, %v871
        %v1896 = vand.u32 2147483647, %v872
        %v1897 = vand.u32 2147483647, %v873
        %v1898 = vand.u32 2147483647, %v874
        %v1899 = vand.u32 2147483647, %v875
        %v1900 = vand.u32 2147483647, %v876
        %v1901 = vand.u32 2147483647, %v877
        %v1902 = vand.u32 2147483647, %v878
        %v1903 = vand.u32 2147483647, %v879
        %v1904 = vand.u32 2147483647, %v880
        %v1905 = vand.u32 2147483647, %v881
        %v1906 = vand.u32 2147483647, %v882
        %v1907 = vand.u32 2147483647, %v883
        %v1908 = vand.u32 2147483647, %v884
        %v1909 = vand.u32 2147483647, %v885
        %v1910 = vand.u32 2147483647, %v886
        %v1911 = vand.u32 2147483647, %v887
        %v1912 = vand.u32 2147483647, %v888
        %v1913 = vand.u32 2147483647, %v889
        %v1914 = vand.u32 2147483647, %v890
        %v1915 = vand.u32 2147483647, %v891
        %v1916 = vand.u32 2147483647, %v892
        %v1917 = vand.u32 2147483647, %v893
        %v1918 = vand.u32 2147483647, %v894
        %v1919 = vand.u32 2147483647, %v895
        %v1920 = vand.u32 2147483647, %v896
        %v1921 = vand.u32 2147483647, %v897
        %v1922 = vand.u32 2147483647, %v898
        %v1923 = vand.u32 2147483647, %v899
        %v1924 = vand.u32 2147483647, %v900
        %v1925 = vand.u32 2147483647, %v901
        %v1926 = vand.u32 2147483647, %v902
        %v1927 = vand.u32 2147483647, %v903
        %v1928 = vand.u32 2147483647, %v904
        %v1929 = vand.u32 2147483647, %v905
        %v1930 = vand.u32 2147483647, %v906
        %v1931 = vand.u32 2147483647, %v907
        %v1932 = vand.u32 2147483647, %v908
        %v1933 = vand.u32 2147483647, %v909
        %v1934 = vand.u32 2147483647, %v910
        %v1935 = vand.u32 2147483647, %v911
        %v1936 = vand.u32 2147483647, %v912
        %v1937 = vand.u32 2147483647, %v913
        %v1938 = vand.u32 2147483647, %v914
        %v1939 = vand.u32 2147483647, %v915
        %v1940 = vand.u32 2147483647, %v916
        %v1941 = vand.u32 2147483647, %v917
        %v1942 = vand.u32 2147483647, %v918
        %v1943 = vand.u32 2147483647, %v919
        %v1944 = vand.u32 2147483647, %v920
        %v1945 = vand.u32 2147483647, %v921
        %v1946 = vand.u32 2147483647, %v922
        %v1947 = vand.u32 2147483647, %v923
        %v1948 = vand.u32 2147483647, %v924
        %v1949 = vand.u32 2147483647, %v925
        %v1950 = vand.u32 2147483647, %v926
        %v1951 = vand.u32 2147483647, %v927
        %v1952 = vand.u32 2147483647, %v928
        %v1953 = vand.u32 2147483647, %v929
        %v1954 = vand.u32 2147483647, %v930
        %v1955 = vand.u32 2147483647, %v931
        %v1956 = vand.u32 2147483647, %v932
        %v1957 = vand.u32 2147483647, %v933
        %v1958 = vand.u32 2147483647, %v934
        %v1959 = vand.u32 2147483647, %v935
        %v1960 = vand.u32 2147483647, %v936
        %v1961 = vand.u32 2147483647, %v937
        %v1962 = vand.u32 2147483647, %v938
        %v1963 = vand.u32 2147483647, %v939
        %v1964 = vand.u32 2147483647, %v940
        %v1965 = vand.u32 2147483647, %v941
        %v1966 = vand.u32 2147483647, %v942
        %v1967 = vand.u32 2147483647, %v943
        %v1968 = vand.u32 2147483647, %v944
        %v1969 = vand.u32 2147483647, %v945
        %v1970 = vand.u32 2147483647, %v946
        %v1971 = vand.u32 2147483647, %v947
        %v1972 = vand.u32 2147483647, %v948
        %v1973 = vand.u32 2147483647, %v949
        %v1974 = vand.u32 2147483647, %v950
        %v1975 = vand.u32 2147483647, %v951
        %v1976 = vand.u32 2147483647, %v952
        %v1977 = vand.u32 2147483647, %v953
        %v1978 = vand.u32 2147483647, %v954
        %v1979 = vand.u32 2147483647, %v955
        %v1980 = vand.u32 2147483647, %v956
        %v1981 = vand.u32 2147483647, %v957
        %v1982 = vand.u32 2147483647, %v958
        %v1983 = vand.u32 2147483647, %v959
        %v1984 = vand.u32 2147483647, %v960
        %v1985 = vand.u32 2147483647, %v961
        %v1986 = vand.u32 2147483647, %v962
        %v1987 = vand.u32 2147483647, %v963
        %v1988 = vand.u32 2147483647, %v964
        %v1989 = vand.u32 2147483647, %v965
        %v1990 = vand.u32 2147483647, %v966
        %v1991 = vand.u32 2147483647, %v967
        %v1992 = vand.u32 2147483647, %v968
        %v1993 = vand.u32 2147483647, %v969
        %v1994 = vand.u32 2147483647, %v970
        %v1995 = vand.u32 2147483647, %v971
        %v1996 = vand.u32 2147483647, %v972
        %v1997 = vand.u32 2147483647, %v973
        %v1998 = vand.u32 2147483647, %v974
        %v1999 = vand.u32 2147483647, %v975
        %v2000 = vand.u32 2147483647, %v976
        %v2001 = vand.u32 2147483647, %v977
        %v2002 = vand.u32 2147483647, %v978
        %v2003 = vand.u32 2147483647, %v979
        %v2004 = vand.u32 2147483647, %v980
        %v2005 = vand.u32 2147483647, %v981
        %v2006 = vand.u32 2147483647, %v982
        %v2007 = vand.u32 2147483647, %v983
        %v2008 = vand.u32 2147483647, %v984
        %v2009 = vand.u32 2147483647, %v985
        %v2010 = vand.u32 2147483647, %v986
        %v2011 = vand.u32 2147483647, %v987
        %v2012 = vand.u32 2147483647, %v988
        %v2013 = vand.u32 2147483647, %v989
        %v2014 = vand.u32 2147483647, %v990
        %v2015 = vand.u32 2147483647, %v991
        %v2016 = vand.u32 2147483647, %v992
        %v2017 = vand.u32 2147483647, %v993
        %v2018 = vand.u32 2147483647, %v994
        %v2019 = vand.u32 2147483647, %v995
        %v2020 = vand.u32 2147483647, %v996
        %v2021 = vand.u32 2147483647, %v997
        %v2022 = vand.u32 2147483647, %v998
        %v2023 = vand.u32 2147483647, %v999
        %v2024 = vand.u32 2147483647, %v1000
        %v2025 = vand.u32 2147483647, %v1001
        %v2026 = vand.u32 2147483647, %v1002
        %v2027 = vand.u32 2147483647, %v1003
        %v2028 = vand.u32 2147483647, %v1004
        %v2029 = vand.u32 2147483647, %v1005
        %v2030 = vand.u32 2147483647, %v1006
        %v2031 = vand.u32 2147483647, %v1007
        %v2032 = vand.u32 2147483647, %v1008
        %v2033 = vand.u32 2147483647, %v1009
        %v2034 = vand.u32 2147483647, %v1010
        %v2035 = vand.u32 2147483647, %v1011
        %v2036 = vand.u32 2147483647, %v1012
        %v2037 = vand.u32 2147483647, %v1013
        %v2038 = vand.u32 2147483647, %v1014
        %v2039 = vand.u32 2147483647, %v1015
        %v2040 = vand.u32 2147483647, %v1016
        %v2041 = vand.u32 2147483647, %v1017
        %v2042 = vand.u32 2147483647, %v1018
        %v2043 = vand.u32 2147483647, %v1019
        %v2044 = vand.u32 2147483647, %v1020
        %v2045 = vand.u32 2147483647, %v1021
        %v2046 = vand.u32 2147483647, %v1022
        %v2047 = vand.u32 2147483647, %v1023
        %v2048 = vand.u32 2147483647, %v1024
        %v2049 = vand.u32 2147483647, %v1025
        %v2050 = vand.u32 2147483647, %v1026
        %v2051 = vand.u32 2147483647, %v1027
        %v2052 = vand.u32 2147483647, %v1028
        %v2053 = vand.u32 2147483647, %v1029
        %v2054 = vand.u32 2147483647, %v1030
        %v2055 = vand.u32 2147483647, %v1031
        %v2056 = vand.u32 2147483647, %v1032
        %v2057 = vand.u32 2147483647, %v1033
        %v2058 = vand.u32 2147483647, %v1034
        %v2059 = vand.u32 2147483647, %v1035
        %v2060 = vand.u32 2147483647, %v1036
        %v2061 = vand.u32 2147483647, %v1037
        %v2062 = vand.u32 2147483647, %v1038
        %v2063 = vand.u32 2147483647, %v1039
        %v2064 = vand.u32 2147483647, %v1040
        %v2065 = vand.u32 2147483647, %v1041
        %v2066 = vand.u32 2147483647, %v1042
        %v2067 = vand.u32 2147483647, %v1043
        %v2068 = vand.u32 2147483647, %v1044
        %v2069 = vand.u32 2147483647, %v1045
        %v2070 = vand.u32 2147483647, %v1046
        %v2071 = vand.u32 2147483647, %v1047
        %v2072 = vand.u32 2147483647, %v1048
        %v2073 = vand.u32 2147483647, %v1049
        %v2074 = vand.u32 2147483647, %v1050
        %v2075 = vand.u32 2147483647, %v1051
        %v2076 = vand.u32 2147483647, %v1052
        %v2077 = vand.u32 2147483647, %v1053
        %v2078 = vand.u32 2147483647, %v1054
        %v2079 = vand.u32 2147483647, %v1055
        %v2080 = vand.u32 2147483647, %v1056
        %v2081 = vand.u32 2147483647, %v1057
        %v2082 = vand.u32 2147483647, %v1058
        %v2083 = vand.u32 2147483647, %v1059
        %v2084 = vand.u32 2147483647, %v1060
        %v2085 = vand.u32 2147483647, %v1061
        %v2086 = vand.u32 2147483647, %v1062
        %v2087 = vand.u32 2147483647, %v1063
        %v2088 = vand.u32 2147483647, %v1064
        %v2089 = vand.u32 2147483647, %v1065
        %v2090 = vand.u32 2147483647, %v1066
        %v2091 = vand.u32 2147483647, %v1067
        %v2092 = vand.u32 2147483647, %v1068
        %v2093 = vand.u32 2147483647, %v1069
        %v2094 = vand.u32 2147483647, %v1070
        %v2095 = vand.u32 2147483647, %v1071
        %v2096 = vand.u32 2147483647, %v1072
        %v2097 = vand.u32 2147483647, %v1073
        %v2098 = vand.u32 2147483647, %v1074
        %v2099 = vand.u32 2147483647, %v1075
        %v2100 = vand.u32 2147483647, %v1076
        %v2101 = vand.u32 2147483647, %v1077
        %v2102 = vand.u32 2147483647, %v1078
        %v2103 = vand.u32 2147483647, %v1079
        %v2104 = vand.u32 2147483647, %v1080
        %v2105 = vand.u32 2147483647, %v1081
        %v2106 = vand.u32 2147483647, %v1082
        %v2107 = vand.u32 2147483647, %v1083
        %v2108 = vand.u32 2147483647, %v1084
        %v2109 = vand.u32 2147483647, %v1085
        %v2110 = vand.u32 2147483647, %v1086
        %v2111 = vand.u32 2147483647, %v1087
        %v2112 = vand.u32 2147483647, %v1088
        %v2113 = vand.u32 2147483647, %v1089
        %v2114 = vand.u32 2147483647, %v1090
        %v2115 = vand.u32 2147483647, %v1091
        %v2116 = vand.u32 2147483647, %v1092
        %v2117 = vand.u32 2147483647, %v1093
        %v2118 = vand.u32 2147483647, %v1094
        %v2119 = vand.u32 2147483647, %v1095
        %v2120 = vand.u32 2147483647, %v1096
        %v2121 = vand.u32 2147483647, %v1097
        %v2122 = vand.u32 2147483647, %v1098
        %v2123 = vand.u32 2147483647, %v1099
        %v2124 = vand.u32 2147483647, %v1100
        %v2125 = vand.u32 2147483647, %v1101
        %v2126 = vand.u32 2147483647, %v1102
        %v2127 = vand.u32 2147483647, %v1103
        %v2128 = vand.u32 2147483647, %v1104
        %v2129 = vand.u32 2147483647, %v1105
        %v2130 = vand.u32 2147483647, %v1106
        %v2131 = vand.u32 2147483647, %v1107
        %v2132 = vand.u32 2147483647, %v1108
        %v2133 = vand.u32 2147483647, %v1109
        %v2134 = vand.u32 2147483647, %v1110
        %v2135 = vand.u32 2147483647, %v1111
        %v2136 = vand.u32 2147483647, %v1112
        %v2137 = vand.u32 2147483647, %v1113
        %v2138 = vand.u32 2147483647, %v1114
        %v2139 = vand.u32 2147483647, %v1115
        %v2140 = vand.u32 2147483647, %v1116
        %v2141 = vand.u32 2147483647, %v1117
        %v2142 = vand.u32 2147483647, %v1118
        %v2143 = vand.u32 2147483647, %v1119
        %v2144 = vand.u32 2147483647, %v1120
        %v2145 = vand.u32 2147483647, %v1121
        %v2146 = vand.u32 2147483647, %v1122
        %v2147 = vand.u32 2147483647, %v1123
        %v2148 = vand.u32 2147483647, %v1124
        %v2149 = vand.u32 2147483647, %v1125
        %v2150 = vand.u32 2147483647, %v1126
        %v2151 = vand.u32 2147483647, %v1127
        %v2152 = vand.u32 2147483647, %v1128
        %v2153 = vand.u32 2147483647, %v1129
        %v2154 = vand.u32 2147483647, %v1130
        %v2155 = vand.u32 2147483647, %v1131
        %v2156 = vand.u32 2147483647, %v1132
        %v2157 = vand.u32 2147483647, %v1133
        %v2158 = vand.u32 2147483647, %v1134
        %v2159 = vand.u32 2147483647, %v1135
        %v2160 = vand.u32 2147483647, %v1136
        %v2161 = vand.u32 2147483647, %v1137
        %v2162 = vand.u32 2147483647, %v1138
        %v2163 = vand.u32 2147483647, %v1139
        %v2164 = vand.u32 2147483647, %v1140
        %v2165 = vand.u32 2147483647, %v1141
        %v2166 = vand.u32 2147483647, %v1142
        %v2167 = vand.u32 2147483647, %v1143
        %v2168 = vand.u32 2147483647, %v1144
        %v2169 = vand.u32 2147483647, %v1145
        %v2170 = vand.u32 2147483647, %v1146
        %v2171 = vand.u32 2147483647, %v1147
        %v2172 = vand.u32 2147483647, %v1148
        %v2173 = vand.u32 2147483647, %v1149
        %v2174 = vand.u32 2147483647, %v1150
        %v2175 = vand.u32 2147483647, %v1151
        %v2176 = vand.u32 2147483647, %v1152
        %v2177 = vand.u32 2147483647, %v1153
        %v2178 = vand.u32 2147483647, %v1154
        %v2179 = vand.u32 2147483647, %v1155
        %v2180 = vand.u32 2147483647, %v1156
        %v2181 = vand.u32 2147483647, %v1157
        %v2182 = vand.u32 2147483647, %v1158
        %v2183 = vand.u32 2147483647, %v1159
        %v2184 = vand.u32 2147483647, %v1160
        %v2185 = vand.u32 2147483647, %v1161
        %v2186 = vand.u32 2147483647, %v1162
        %v2187 = vand.u32 2147483647, %v1163
        %v2188 = vadd.f32 %v1164, 1e-16
        %v2189 = vadd.f32 %v1165, 1e-16
        %v2190 = vadd.f32 %v1166, 1e-16
        %v2191 = vadd.f32 %v1167, 1e-16
        %v2192 = vadd.f32 %v1168, 1e-16
        %v2193 = vadd.f32 %v1169, 1e-16
        %v2194 = vadd.f32 %v1170, 1e-16
        %v2195 = vadd.f32 %v1171, 1e-16
        %v2196 = vadd.f32 %v1172, 1e-16
        %v2197 = vadd.f32 %v1173, 1e-16
        %v2198 = vadd.f32 %v1174, 1e-16
        %v2199 = vadd.f32 %v1175, 1e-16
        %v2200 = vadd.f32 %v1176, 1e-16
        %v2201 = vadd.f32 %v1177, 1e-16
        %v2202 = vadd.f32 %v1178, 1e-16
        %v2203 = vadd.f32 %v1179, 1e-16
        %v2204 = vadd.f32 %v1180, 1e-16
        %v2205 = vadd.f32 %v1181, 1e-16
        %v2206 = vadd.f32 %v1182, 1e-16
        %v2207 = vadd.f32 %v1183, 1e-16
        %v2208 = vadd.f32 %v1184, 1e-16
        %v2209 = vadd.f32 %v1185, 1e-16
        %v2210 = vadd.f32 %v1186, 1e-16
        %v2211 = vadd.f32 %v1187, 1e-16
        %v2212 = vadd.f32 %v1188, 1e-16
        %v2213 = vadd.f32 %v1189, 1e-16
        %v2214 = vadd.f32 %v1190, 1e-16
        %v2215 = vadd.f32 %v1191, 1e-16
        %v2216 = vadd.f32 %v1192, 1e-16
        %v2217 = vadd.f32 %v1193, 1e-16
        %v2218 = vadd.f32 %v1194, 1e-16
        %v2219 = vadd.f32 %v1195, 1e-16
        %v2220 = vadd.f32 %v1196, 1e-16
        %v2221 = vadd.f32 %v1197, 1e-16
        %v2222 = vadd.f32 %v1198, 1e-16
        %v2223 = vadd.f32 %v1199, 1e-16
        %v2224 = vadd.f32 %v1200, 1e-16
        %v2225 = vadd.f32 %v1201, 1e-16
        %v2226 = vadd.f32 %v1202, 1e-16
        %v2227 = vadd.f32 %v1203, 1e-16
        %v2228 = vadd.f32 %v1204, 1e-16
        %v2229 = vadd.f32 %v1205, 1e-16
        %v2230 = vadd.f32 %v1206, 1e-16
        %v2231 = vadd.f32 %v1207, 1e-16
        %v2232 = vadd.f32 %v1208, 1e-16
        %v2233 = vadd.f32 %v1209, 1e-16
        %v2234 = vadd.f32 %v1210, 1e-16
        %v2235 = vadd.f32 %v1211, 1e-16
        %v2236 = vadd.f32 %v1212, 1e-16
        %v2237 = vadd.f32 %v1213, 1e-16
        %v2238 = vadd.f32 %v1214, 1e-16
        %v2239 = vadd.f32 %v1215, 1e-16
        %v2240 = vadd.f32 %v1216, 1e-16
        %v2241 = vadd.f32 %v1217, 1e-16
        %v2242 = vadd.f32 %v1218, 1e-16
        %v2243 = vadd.f32 %v1219, 1e-16
        %v2244 = vadd.f32 %v1220, 1e-16
        %v2245 = vadd.f32 %v1221, 1e-16
        %v2246 = vadd.f32 %v1222, 1e-16
        %v2247 = vadd.f32 %v1223, 1e-16
        %v2248 = vadd.f32 %v1224, 1e-16
        %v2249 = vadd.f32 %v1225, 1e-16
        %v2250 = vadd.f32 %v1226, 1e-16
        %v2251 = vadd.f32 %v1227, 1e-16
        %v2252 = vadd.f32 %v1228, 1e-16
        %v2253 = vadd.f32 %v1229, 1e-16
        %v2254 = vadd.f32 %v1230, 1e-16
        %v2255 = vadd.f32 %v1231, 1e-16
        %v2256 = vadd.f32 %v1232, 1e-16
        %v2257 = vadd.f32 %v1233, 1e-16
        %v2258 = vadd.f32 %v1234, 1e-16
        %v2259 = vadd.f32 %v1235, 1e-16
        %v2260 = vadd.f32 %v1236, 1e-16
        %v2261 = vadd.f32 %v1237, 1e-16
        %v2262 = vadd.f32 %v1238, 1e-16
        %v2263 = vadd.f32 %v1239, 1e-16
        %v2264 = vadd.f32 %v1240, 1e-16
        %v2265 = vadd.f32 %v1241, 1e-16
        %v2266 = vadd.f32 %v1242, 1e-16
        %v2267 = vadd.f32 %v1243, 1e-16
        %v2268 = vadd.f32 %v1244, 1e-16
        %v2269 = vadd.f32 %v1245, 1e-16
        %v2270 = vadd.f32 %v1246, 1e-16
        %v2271 = vadd.f32 %v1247, 1e-16
        %v2272 = vadd.f32 %v1248, 1e-16
        %v2273 = vadd.f32 %v1249, 1e-16
        %v2274 = vadd.f32 %v1250, 1e-16
        %v2275 = vadd.f32 %v1251, 1e-16
        %v2276 = vadd.f32 %v1252, 1e-16
        %v2277 = vadd.f32 %v1253, 1e-16
        %v2278 = vadd.f32 %v1254, 1e-16
        %v2279 = vadd.f32 %v1255, 1e-16
        %v2280 = vadd.f32 %v1256, 1e-16
        %v2281 = vadd.f32 %v1257, 1e-16
        %v2282 = vadd.f32 %v1258, 1e-16
        %v2283 = vadd.f32 %v1259, 1e-16
        %v2284 = vadd.f32 %v1260, 1e-16
        %v2285 = vadd.f32 %v1261, 1e-16
        %v2286 = vadd.f32 %v1262, 1e-16
        %v2287 = vadd.f32 %v1263, 1e-16
        %v2288 = vadd.f32 %v1264, 1e-16
        %v2289 = vadd.f32 %v1265, 1e-16
        %v2290 = vadd.f32 %v1266, 1e-16
        %v2291 = vadd.f32 %v1267, 1e-16
        %v2292 = vadd.f32 %v1268, 1e-16
        %v2293 = vadd.f32 %v1269, 1e-16
        %v2294 = vadd.f32 %v1270, 1e-16
        %v2295 = vadd.f32 %v1271, 1e-16
        %v2296 = vadd.f32 %v1272, 1e-16
        %v2297 = vadd.f32 %v1273, 1e-16
        %v2298 = vadd.f32 %v1274, 1e-16
        %v2299 = vadd.f32 %v1275, 1e-16
        %v2300 = vadd.f32 %v1276, 1e-16
        %v2301 = vadd.f32 %v1277, 1e-16
        %v2302 = vadd.f32 %v1278, 1e-16
        %v2303 = vadd.f32 %v1279, 1e-16
        %v2304 = vadd.f32 %v1280, 1e-16
        %v2305 = vadd.f32 %v1281, 1e-16
        %v2306 = vadd.f32 %v1282, 1e-16
        %v2307 = vadd.f32 %v1283, 1e-16
        %v2308 = vadd.f32 %v1284, 1e-16
        %v2309 = vadd.f32 %v1285, 1e-16
        %v2310 = vadd.f32 %v1286, 1e-16
        %v2311 = vadd.f32 %v1287, 1e-16
        %v2312 = vadd.f32 %v1288, 1e-16
        %v2313 = vadd.f32 %v1289, 1e-16
        %v2314 = vadd.f32 %v1290, 1e-16
        %v2315 = vadd.f32 %v1291, 1e-16
        %v2316 = vadd.f32 %v1292, 1e-16
        %v2317 = vadd.f32 %v1293, 1e-16
        %v2318 = vadd.f32 %v1294, 1e-16
        %v2319 = vadd.f32 %v1295, 1e-16
        %v2320 = vadd.f32 %v1296, 1e-16
        %v2321 = vadd.f32 %v1297, 1e-16
        %v2322 = vadd.f32 %v1298, 1e-16
        %v2323 = vadd.f32 %v1299, 1e-16
        %v2324 = vadd.f32 %v1300, 1e-16
        %v2325 = vadd.f32 %v1301, 1e-16
        %v2326 = vadd.f32 %v1302, 1e-16
        %v2327 = vadd.f32 %v1303, 1e-16
        %v2328 = vadd.f32 %v1304, 1e-16
        %v2329 = vadd.f32 %v1305, 1e-16
        %v2330 = vadd.f32 %v1306, 1e-16
        %v2331 = vadd.f32 %v1307, 1e-16
        %v2332 = vadd.f32 %v1308, 1e-16
        %v2333 = vadd.f32 %v1309, 1e-16
        %v2334 = vadd.f32 %v1310, 1e-16
        %v2335 = vadd.f32 %v1311, 1e-16
        %v2336 = vadd.f32 %v1312, 1e-16
        %v2337 = vadd.f32 %v1313, 1e-16
        %v2338 = vadd.f32 %v1314, 1e-16
        %v2339 = vadd.f32 %v1315, 1e-16
        %v2340 = vadd.f32 %v1316, 1e-16
        %v2341 = vadd.f32 %v1317, 1e-16
        %v2342 = vadd.f32 %v1318, 1e-16
        %v2343 = vadd.f32 %v1319, 1e-16
        %v2344 = vadd.f32 %v1320, 1e-16
        %v2345 = vadd.f32 %v1321, 1e-16
        %v2346 = vadd.f32 %v1322, 1e-16
        %v2347 = vadd.f32 %v1323, 1e-16
        %v2348 = vadd.f32 %v1324, 1e-16
        %v2349 = vadd.f32 %v1325, 1e-16
        %v2350 = vadd.f32 %v1326, 1e-16
        %v2351 = vadd.f32 %v1327, 1e-16
        %v2352 = vadd.f32 %v1328, 1e-16
        %v2353 = vadd.f32 %v1329, 1e-16
        %v2354 = vadd.f32 %v1330, 1e-16
        %v2355 = vadd.f32 %v1331, 1e-16
        %v2356 = vadd.f32 %v1332, 1e-16
        %v2357 = vadd.f32 %v1333, 1e-16
        %v2358 = vadd.f32 %v1334, 1e-16
        %v2359 = vadd.f32 %v1335, 1e-16
        %v2360 = vadd.f32 %v1336, 1e-16
        %v2361 = vadd.f32 %v1337, 1e-16
        %v2362 = vadd.f32 %v1338, 1e-16
        %v2363 = vadd.f32 %v1339, 1e-16
        %v2364 = vadd.f32 %v1340, 1e-16
        %v2365 = vadd.f32 %v1341, 1e-16
        %v2366 = vadd.f32 %v1342, 1e-16
        %v2367 = vadd.f32 %v1343, 1e-16
        %v2368 = vadd.f32 %v1344, 1e-16
        %v2369 = vadd.f32 %v1345, 1e-16
        %v2370 = vadd.f32 %v1346, 1e-16
        %v2371 = vadd.f32 %v1347, 1e-16
        %v2372 = vadd.f32 %v1348, 1e-16
        %v2373 = vadd.f32 %v1349, 1e-16
        %v2374 = vadd.f32 %v1350, 1e-16
        %v2375 = vadd.f32 %v1351, 1e-16
        %v2376 = vadd.f32 %v1352, 1e-16
        %v2377 = vadd.f32 %v1353, 1e-16
        %v2378 = vadd.f32 %v1354, 1e-16
        %v2379 = vadd.f32 %v1355, 1e-16
        %v2380 = vadd.f32 %v1356, 1e-16
        %v2381 = vadd.f32 %v1357, 1e-16
        %v2382 = vadd.f32 %v1358, 1e-16
        %v2383 = vadd.f32 %v1359, 1e-16
        %v2384 = vadd.f32 %v1360, 1e-16
        %v2385 = vadd.f32 %v1361, 1e-16
        %v2386 = vadd.f32 %v1362, 1e-16
        %v2387 = vadd.f32 %v1363, 1e-16
        %v2388 = vadd.f32 %v1364, 1e-16
        %v2389 = vadd.f32 %v1365, 1e-16
        %v2390 = vadd.f32 %v1366, 1e-16
        %v2391 = vadd.f32 %v1367, 1e-16
        %v2392 = vadd.f32 %v1368, 1e-16
        %v2393 = vadd.f32 %v1369, 1e-16
        %v2394 = vadd.f32 %v1370, 1e-16
        %v2395 = vadd.f32 %v1371, 1e-16
        %v2396 = vadd.f32 %v1372, 1e-16
        %v2397 = vadd.f32 %v1373, 1e-16
        %v2398 = vadd.f32 %v1374, 1e-16
        %v2399 = vadd.f32 %v1375, 1e-16
        %v2400 = vadd.f32 %v1376, 1e-16
        %v2401 = vadd.f32 %v1377, 1e-16
        %v2402 = vadd.f32 %v1378, 1e-16
        %v2403 = vadd.f32 %v1379, 1e-16
        %v2404 = vadd.f32 %v1380, 1e-16
        %v2405 = vadd.f32 %v1381, 1e-16
        %v2406 = vadd.f32 %v1382, 1e-16
        %v2407 = vadd.f32 %v1383, 1e-16
        %v2408 = vadd.f32 %v1384, 1e-16
        %v2409 = vadd.f32 %v1385, 1e-16
        %v2410 = vadd.f32 %v1386, 1e-16
        %v2411 = vadd.f32 %v1387, 1e-16
        %v2412 = vadd.f32 %v1388, 1e-16
        %v2413 = vadd.f32 %v1389, 1e-16
        %v2414 = vadd.f32 %v1390, 1e-16
        %v2415 = vadd.f32 %v1391, 1e-16
        %v2416 = vadd.f32 %v1392, 1e-16
        %v2417 = vadd.f32 %v1393, 1e-16
        %v2418 = vadd.f32 %v1394, 1e-16
        %v2419 = vadd.f32 %v1395, 1e-16
        %v2420 = vadd.f32 %v1396, 1e-16
        %v2421 = vadd.f32 %v1397, 1e-16
        %v2422 = vadd.f32 %v1398, 1e-16
        %v2423 = vadd.f32 %v1399, 1e-16
        %v2424 = vadd.f32 %v1400, 1e-16
        %v2425 = vadd.f32 %v1401, 1e-16
        %v2426 = vadd.f32 %v1402, 1e-16
        %v2427 = vadd.f32 %v1403, 1e-16
        %v2428 = vadd.f32 %v1404, 1e-16
        %v2429 = vadd.f32 %v1405, 1e-16
        %v2430 = vadd.f32 %v1406, 1e-16
        %v2431 = vadd.f32 %v1407, 1e-16
        %v2432 = vadd.f32 %v1408, 1e-16
        %v2433 = vadd.f32 %v1409, 1e-16
        %v2434 = vadd.f32 %v1410, 1e-16
        %v2435 = vadd.f32 %v1411, 1e-16
        %v2436 = vadd.f32 %v1412, 1e-16
        %v2437 = vadd.f32 %v1413, 1e-16
        %v2438 = vadd.f32 %v1414, 1e-16
        %v2439 = vadd.f32 %v1415, 1e-16
        %v2440 = vadd.f32 %v1416, 1e-16
        %v2441 = vadd.f32 %v1417, 1e-16
        %v2442 = vadd.f32 %v1418, 1e-16
        %v2443 = vadd.f32 %v1419, 1e-16
        %v2444 = vadd.f32 %v1420, 1e-16
        %v2445 = vadd.f32 %v1421, 1e-16
        %v2446 = vadd.f32 %v1422, 1e-16
        %v2447 = vadd.f32 %v1423, 1e-16
        %v2448 = vadd.f32 %v1424, 1e-16
        %v2449 = vadd.f32 %v1425, 1e-16
        %v2450 = vadd.f32 %v1426, 1e-16
        %v2451 = vadd.f32 %v1427, 1e-16
        %v2452 = vadd.f32 %v1428, 1e-16
        %v2453 = vadd.f32 %v1429, 1e-16
        %v2454 = vadd.f32 %v1430, 1e-16
        %v2455 = vadd.f32 %v1431, 1e-16
        %v2456 = vadd.f32 %v1432, 1e-16
        %v2457 = vadd.f32 %v1433, 1e-16
        %v2458 = vadd.f32 %v1434, 1e-16
        %v2459 = vadd.f32 %v1435, 1e-16
        %v2460 = vadd.f32 %v1436, 1e-16
        %v2461 = vadd.f32 %v1437, 1e-16
        %v2462 = vadd.f32 %v1438, 1e-16
        %v2463 = vadd.f32 %v1439, 1e-16
        %v2464 = vadd.f32 %v1440, 1e-16
        %v2465 = vadd.f32 %v1441, 1e-16
        %v2466 = vadd.f32 %v1442, 1e-16
        %v2467 = vadd.f32 %v1443, 1e-16
        %v2468 = vadd.f32 %v1444, 1e-16
        %v2469 = vadd.f32 %v1445, 1e-16
        %v2470 = vadd.f32 %v1446, 1e-16
        %v2471 = vadd.f32 %v1447, 1e-16
        %v2472 = vadd.f32 %v1448, 1e-16
        %v2473 = vadd.f32 %v1449, 1e-16
        %v2474 = vadd.f32 %v1450, 1e-16
        %v2475 = vadd.f32 %v1451, 1e-16
        %v2476 = vadd.f32 %v1452, 1e-16
        %v2477 = vadd.f32 %v1453, 1e-16
        %v2478 = vadd.f32 %v1454, 1e-16
        %v2479 = vadd.f32 %v1455, 1e-16
        %v2480 = vadd.f32 %v1456, 1e-16
        %v2481 = vadd.f32 %v1457, 1e-16
        %v2482 = vadd.f32 %v1458, 1e-16
        %v2483 = vadd.f32 %v1459, 1e-16
        %v2484 = vadd.f32 %v1460, 1e-16
        %v2485 = vadd.f32 %v1461, 1e-16
        %v2486 = vadd.f32 %v1462, 1e-16
        %v2487 = vadd.f32 %v1463, 1e-16
        %v2488 = vadd.f32 %v1464, 1e-16
        %v2489 = vadd.f32 %v1465, 1e-16
        %v2490 = vadd.f32 %v1466, 1e-16
        %v2491 = vadd.f32 %v1467, 1e-16
        %v2492 = vadd.f32 %v1468, 1e-16
        %v2493 = vadd.f32 %v1469, 1e-16
        %v2494 = vadd.f32 %v1470, 1e-16
        %v2495 = vadd.f32 %v1471, 1e-16
        %v2496 = vadd.f32 %v1472, 1e-16
        %v2497 = vadd.f32 %v1473, 1e-16
        %v2498 = vadd.f32 %v1474, 1e-16
        %v2499 = vadd.f32 %v1475, 1e-16
        %v2500 = vadd.f32 %v1476, 1e-16
        %v2501 = vadd.f32 %v1477, 1e-16
        %v2502 = vadd.f32 %v1478, 1e-16
        %v2503 = vadd.f32 %v1479, 1e-16
        %v2504 = vadd.f32 %v1480, 1e-16
        %v2505 = vadd.f32 %v1481, 1e-16
        %v2506 = vadd.f32 %v1482, 1e-16
        %v2507 = vadd.f32 %v1483, 1e-16
        %v2508 = vadd.f32 %v1484, 1e-16
        %v2509 = vadd.f32 %v1485, 1e-16
        %v2510 = vadd.f32 %v1486, 1e-16
        %v2511 = vadd.f32 %v1487, 1e-16
        %v2512 = vadd.f32 %v1488, 1e-16
        %v2513 = vadd.f32 %v1489, 1e-16
        %v2514 = vadd.f32 %v1490, 1e-16
        %v2515 = vadd.f32 %v1491, 1e-16
        %v2516 = vadd.f32 %v1492, 1e-16
        %v2517 = vadd.f32 %v1493, 1e-16
        %v2518 = vadd.f32 %v1494, 1e-16
        %v2519 = vadd.f32 %v1495, 1e-16
        %v2520 = vadd.f32 %v1496, 1e-16
        %v2521 = vadd.f32 %v1497, 1e-16
        %v2522 = vadd.f32 %v1498, 1e-16
        %v2523 = vadd.f32 %v1499, 1e-16
        %v2524 = vadd.f32 %v1500, 1e-16
        %v2525 = vadd.f32 %v1501, 1e-16
        %v2526 = vadd.f32 %v1502, 1e-16
        %v2527 = vadd.f32 %v1503, 1e-16
        %v2528 = vadd.f32 %v1504, 1e-16
        %v2529 = vadd.f32 %v1505, 1e-16
        %v2530 = vadd.f32 %v1506, 1e-16
        %v2531 = vadd.f32 %v1507, 1e-16
        %v2532 = vadd.f32 %v1508, 1e-16
        %v2533 = vadd.f32 %v1509, 1e-16
        %v2534 = vadd.f32 %v1510, 1e-16
        %v2535 = vadd.f32 %v1511, 1e-16
        %v2536 = vadd.f32 %v1512, 1e-16
        %v2537 = vadd.f32 %v1513, 1e-16
        %v2538 = vadd.f32 %v1514, 1e-16
        %v2539 = vadd.f32 %v1515, 1e-16
        %v2540 = vadd.f32 %v1516, 1e-16
        %v2541 = vadd.f32 %v1517, 1e-16
        %v2542 = vadd.f32 %v1518, 1e-16
        %v2543 = vadd.f32 %v1519, 1e-16
        %v2544 = vadd.f32 %v1520, 1e-16
        %v2545 = vadd.f32 %v1521, 1e-16
        %v2546 = vadd.f32 %v1522, 1e-16
        %v2547 = vadd.f32 %v1523, 1e-16
        %v2548 = vadd.f32 %v1524, 1e-16
        %v2549 = vadd.f32 %v1525, 1e-16
        %v2550 = vadd.f32 %v1526, 1e-16
        %v2551 = vadd.f32 %v1527, 1e-16
        %v2552 = vadd.f32 %v1528, 1e-16
        %v2553 = vadd.f32 %v1529, 1e-16
        %v2554 = vadd.f32 %v1530, 1e-16
        %v2555 = vadd.f32 %v1531, 1e-16
        %v2556 = vadd.f32 %v1532, 1e-16
        %v2557 = vadd.f32 %v1533, 1e-16
        %v2558 = vadd.f32 %v1534, 1e-16
        %v2559 = vadd.f32 %v1535, 1e-16
        %v2560 = vadd.f32 %v1536, 1e-16
        %v2561 = vadd.f32 %v1537, 1e-16
        %v2562 = vadd.f32 %v1538, 1e-16
        %v2563 = vadd.f32 %v1539, 1e-16
        %v2564 = vadd.f32 %v1540, 1e-16
        %v2565 = vadd.f32 %v1541, 1e-16
        %v2566 = vadd.f32 %v1542, 1e-16
        %v2567 = vadd.f32 %v1543, 1e-16
        %v2568 = vadd.f32 %v1544, 1e-16
        %v2569 = vadd.f32 %v1545, 1e-16
        %v2570 = vadd.f32 %v1546, 1e-16
        %v2571 = vadd.f32 %v1547, 1e-16
        %v2572 = vadd.f32 %v1548, 1e-16
        %v2573 = vadd.f32 %v1549, 1e-16
        %v2574 = vadd.f32 %v1550, 1e-16
        %v2575 = vadd.f32 %v1551, 1e-16
        %v2576 = vadd.f32 %v1552, 1e-16
        %v2577 = vadd.f32 %v1553, 1e-16
        %v2578 = vadd.f32 %v1554, 1e-16
        %v2579 = vadd.f32 %v1555, 1e-16
        %v2580 = vadd.f32 %v1556, 1e-16
        %v2581 = vadd.f32 %v1557, 1e-16
        %v2582 = vadd.f32 %v1558, 1e-16
        %v2583 = vadd.f32 %v1559, 1e-16
        %v2584 = vadd.f32 %v1560, 1e-16
        %v2585 = vadd.f32 %v1561, 1e-16
        %v2586 = vadd.f32 %v1562, 1e-16
        %v2587 = vadd.f32 %v1563, 1e-16
        %v2588 = vadd.f32 %v1564, 1e-16
        %v2589 = vadd.f32 %v1565, 1e-16
        %v2590 = vadd.f32 %v1566, 1e-16
        %v2591 = vadd.f32 %v1567, 1e-16
        %v2592 = vadd.f32 %v1568, 1e-16
        %v2593 = vadd.f32 %v1569, 1e-16
        %v2594 = vadd.f32 %v1570, 1e-16
        %v2595 = vadd.f32 %v1571, 1e-16
        %v2596 = vadd.f32 %v1572, 1e-16
        %v2597 = vadd.f32 %v1573, 1e-16
        %v2598 = vadd.f32 %v1574, 1e-16
        %v2599 = vadd.f32 %v1575, 1e-16
        %v2600 = vadd.f32 %v1576, 1e-16
        %v2601 = vadd.f32 %v1577, 1e-16
        %v2602 = vadd.f32 %v1578, 1e-16
        %v2603 = vadd.f32 %v1579, 1e-16
        %v2604 = vadd.f32 %v1580, 1e-16
        %v2605 = vadd.f32 %v1581, 1e-16
        %v2606 = vadd.f32 %v1582, 1e-16
        %v2607 = vadd.f32 %v1583, 1e-16
        %v2608 = vadd.f32 %v1584, 1e-16
        %v2609 = vadd.f32 %v1585, 1e-16
        %v2610 = vadd.f32 %v1586, 1e-16
        %v2611 = vadd.f32 %v1587, 1e-16
        %v2612 = vadd.f32 %v1588, 1e-16
        %v2613 = vadd.f32 %v1589, 1e-16
        %v2614 = vadd.f32 %v1590, 1e-16
        %v2615 = vadd.f32 %v1591, 1e-16
        %v2616 = vadd.f32 %v1592, 1e-16
        %v2617 = vadd.f32 %v1593, 1e-16
        %v2618 = vadd.f32 %v1594, 1e-16
        %v2619 = vadd.f32 %v1595, 1e-16
        %v2620 = vadd.f32 %v1596, 1e-16
        %v2621 = vadd.f32 %v1597, 1e-16
        %v2622 = vadd.f32 %v1598, 1e-16
        %v2623 = vadd.f32 %v1599, 1e-16
        %v2624 = vadd.f32 %v1600, 1e-16
        %v2625 = vadd.f32 %v1601, 1e-16
        %v2626 = vadd.f32 %v1602, 1e-16
        %v2627 = vadd.f32 %v1603, 1e-16
        %v2628 = vadd.f32 %v1604, 1e-16
        %v2629 = vadd.f32 %v1605, 1e-16
        %v2630 = vadd.f32 %v1606, 1e-16
        %v2631 = vadd.f32 %v1607, 1e-16
        %v2632 = vadd.f32 %v1608, 1e-16
        %v2633 = vadd.f32 %v1609, 1e-16
        %v2634 = vadd.f32 %v1610, 1e-16
        %v2635 = vadd.f32 %v1611, 1e-16
        %v2636 = vadd.f32 %v1612, 1e-16
        %v2637 = vadd.f32 %v1613, 1e-16
        %v2638 = vadd.f32 %v1614, 1e-16
        %v2639 = vadd.f32 %v1615, 1e-16
        %v2640 = vadd.f32 %v1616, 1e-16
        %v2641 = vadd.f32 %v1617, 1e-16
        %v2642 = vadd.f32 %v1618, 1e-16
        %v2643 = vadd.f32 %v1619, 1e-16
        %v2644 = vadd.f32 %v1620, 1e-16
        %v2645 = vadd.f32 %v1621, 1e-16
        %v2646 = vadd.f32 %v1622, 1e-16
        %v2647 = vadd.f32 %v1623, 1e-16
        %v2648 = vadd.f32 %v1624, 1e-16
        %v2649 = vadd.f32 %v1625, 1e-16
        %v2650 = vadd.f32 %v1626, 1e-16
        %v2651 = vadd.f32 %v1627, 1e-16
        %v2652 = vadd.f32 %v1628, 1e-16
        %v2653 = vadd.f32 %v1629, 1e-16
        %v2654 = vadd.f32 %v1630, 1e-16
        %v2655 = vadd.f32 %v1631, 1e-16
        %v2656 = vadd.f32 %v1632, 1e-16
        %v2657 = vadd.f32 %v1633, 1e-16
        %v2658 = vadd.f32 %v1634, 1e-16
        %v2659 = vadd.f32 %v1635, 1e-16
        %v2660 = vadd.f32 %v1636, 1e-16
        %v2661 = vadd.f32 %v1637, 1e-16
        %v2662 = vadd.f32 %v1638, 1e-16
        %v2663 = vadd.f32 %v1639, 1e-16
        %v2664 = vadd.f32 %v1640, 1e-16
        %v2665 = vadd.f32 %v1641, 1e-16
        %v2666 = vadd.f32 %v1642, 1e-16
        %v2667 = vadd.f32 %v1643, 1e-16
        %v2668 = vadd.f32 %v1644, 1e-16
        %v2669 = vadd.f32 %v1645, 1e-16
        %v2670 = vadd.f32 %v1646, 1e-16
        %v2671 = vadd.f32 %v1647, 1e-16
        %v2672 = vadd.f32 %v1648, 1e-16
        %v2673 = vadd.f32 %v1649, 1e-16
        %v2674 = vadd.f32 %v1650, 1e-16
        %v2675 = vadd.f32 %v1651, 1e-16
        %v2676 = vadd.f32 %v1652, 1e-16
        %v2677 = vadd.f32 %v1653, 1e-16
        %v2678 = vadd.f32 %v1654, 1e-16
        %v2679 = vadd.f32 %v1655, 1e-16
        %v2680 = vadd.f32 %v1656, 1e-16
        %v2681 = vadd.f32 %v1657, 1e-16
        %v2682 = vadd.f32 %v1658, 1e-16
        %v2683 = vadd.f32 %v1659, 1e-16
        %v2684 = vadd.f32 %v1660, 1e-16
        %v2685 = vadd.f32 %v1661, 1e-16
        %v2686 = vadd.f32 %v1662, 1e-16
        %v2687 = vadd.f32 %v1663, 1e-16
        %v2688 = vadd.f32 %v1664, 1e-16
        %v2689 = vadd.f32 %v1665, 1e-16
        %v2690 = vadd.f32 %v1666, 1e-16
        %v2691 = vadd.f32 %v1667, 1e-16
        %v2692 = vadd.f32 %v1668, 1e-16
        %v2693 = vadd.f32 %v1669, 1e-16
        %v2694 = vadd.f32 %v1670, 1e-16
        %v2695 = vadd.f32 %v1671, 1e-16
        %v2696 = vadd.f32 %v1672, 1e-16
        %v2697 = vadd.f32 %v1673, 1e-16
        %v2698 = vadd.f32 %v1674, 1e-16
        %v2699 = vadd.f32 %v1675, 1e-16
        %v2700 = vadd.f32 %v1676, 1e-16
        %v2701 = vadd.f32 %v1677, 1e-16
        %v2702 = vadd.f32 %v1678, 1e-16
        %v2703 = vadd.f32 %v1679, 1e-16
        %v2704 = vadd.f32 %v1680, 1e-16
        %v2705 = vadd.f32 %v1681, 1e-16
        %v2706 = vadd.f32 %v1682, 1e-16
        %v2707 = vadd.f32 %v1683, 1e-16
        %v2708 = vadd.f32 %v1684, 1e-16
        %v2709 = vadd.f32 %v1685, 1e-16
        %v2710 = vadd.f32 %v1686, 1e-16
        %v2711 = vadd.f32 %v1687, 1e-16
        %v2712 = vadd.f32 %v1688, 1e-16
        %v2713 = vadd.f32 %v1689, 1e-16
        %v2714 = vadd.f32 %v1690, 1e-16
        %v2715 = vadd.f32 %v1691, 1e-16
        %v2716 = vadd.f32 %v1692, 1e-16
        %v2717 = vadd.f32 %v1693, 1e-16
        %v2718 = vadd.f32 %v1694, 1e-16
        %v2719 = vadd.f32 %v1695, 1e-16
        %v2720 = vadd.f32 %v1696, 1e-16
        %v2721 = vadd.f32 %v1697, 1e-16
        %v2722 = vadd.f32 %v1698, 1e-16
        %v2723 = vadd.f32 %v1699, 1e-16
        %v2724 = vadd.f32 %v1700, 1e-16
        %v2725 = vadd.f32 %v1701, 1e-16
        %v2726 = vadd.f32 %v1702, 1e-16
        %v2727 = vadd.f32 %v1703, 1e-16
        %v2728 = vadd.f32 %v1704, 1e-16
        %v2729 = vadd.f32 %v1705, 1e-16
        %v2730 = vadd.f32 %v1706, 1e-16
        %v2731 = vadd.f32 %v1707, 1e-16
        %v2732 = vadd.f32 %v1708, 1e-16
        %v2733 = vadd.f32 %v1709, 1e-16
        %v2734 = vadd.f32 %v1710, 1e-16
        %v2735 = vadd.f32 %v1711, 1e-16
        %v2736 = vadd.f32 %v1712, 1e-16
        %v2737 = vadd.f32 %v1713, 1e-16
        %v2738 = vadd.f32 %v1714, 1e-16
        %v2739 = vadd.f32 %v1715, 1e-16
        %v2740 = vadd.f32 %v1716, 1e-16
        %v2741 = vadd.f32 %v1717, 1e-16
        %v2742 = vadd.f32 %v1718, 1e-16
        %v2743 = vadd.f32 %v1719, 1e-16
        %v2744 = vadd.f32 %v1720, 1e-16
        %v2745 = vadd.f32 %v1721, 1e-16
        %v2746 = vadd.f32 %v1722, 1e-16
        %v2747 = vadd.f32 %v1723, 1e-16
        %v2748 = vadd.f32 %v1724, 1e-16
        %v2749 = vadd.f32 %v1725, 1e-16
        %v2750 = vadd.f32 %v1726, 1e-16
        %v2751 = vadd.f32 %v1727, 1e-16
        %v2752 = vadd.f32 %v1728, 1e-16
        %v2753 = vadd.f32 %v1729, 1e-16
        %v2754 = vadd.f32 %v1730, 1e-16
        %v2755 = vadd.f32 %v1731, 1e-16
        %v2756 = vadd.f32 %v1732, 1e-16
        %v2757 = vadd.f32 %v1733, 1e-16
        %v2758 = vadd.f32 %v1734, 1e-16
        %v2759 = vadd.f32 %v1735, 1e-16
        %v2760 = vadd.f32 %v1736, 1e-16
        %v2761 = vadd.f32 %v1737, 1e-16
        %v2762 = vadd.f32 %v1738, 1e-16
        %v2763 = vadd.f32 %v1739, 1e-16
        %v2764 = vadd.f32 %v1740, 1e-16
        %v2765 = vadd.f32 %v1741, 1e-16
        %v2766 = vadd.f32 %v1742, 1e-16
        %v2767 = vadd.f32 %v1743, 1e-16
        %v2768 = vadd.f32 %v1744, 1e-16
        %v2769 = vadd.f32 %v1745, 1e-16
        %v2770 = vadd.f32 %v1746, 1e-16
        %v2771 = vadd.f32 %v1747, 1e-16
        %v2772 = vadd.f32 %v1748, 1e-16
        %v2773 = vadd.f32 %v1749, 1e-16
        %v2774 = vadd.f32 %v1750, 1e-16
        %v2775 = vadd.f32 %v1751, 1e-16
        %v2776 = vadd.f32 %v1752, 1e-16
        %v2777 = vadd.f32 %v1753, 1e-16
        %v2778 = vadd.f32 %v1754, 1e-16
        %v2779 = vadd.f32 %v1755, 1e-16
        %v2780 = vadd.f32 %v1756, 1e-16
        %v2781 = vadd.f32 %v1757, 1e-16
        %v2782 = vadd.f32 %v1758, 1e-16
        %v2783 = vadd.f32 %v1759, 1e-16
        %v2784 = vadd.f32 %v1760, 1e-16
        %v2785 = vadd.f32 %v1761, 1e-16
        %v2786 = vadd.f32 %v1762, 1e-16
        %v2787 = vadd.f32 %v1763, 1e-16
        %v2788 = vadd.f32 %v1764, 1e-16
        %v2789 = vadd.f32 %v1765, 1e-16
        %v2790 = vadd.f32 %v1766, 1e-16
        %v2791 = vadd.f32 %v1767, 1e-16
        %v2792 = vadd.f32 %v1768, 1e-16
        %v2793 = vadd.f32 %v1769, 1e-16
        %v2794 = vadd.f32 %v1770, 1e-16
        %v2795 = vadd.f32 %v1771, 1e-16
        %v2796 = vadd.f32 %v1772, 1e-16
        %v2797 = vadd.f32 %v1773, 1e-16
        %v2798 = vadd.f32 %v1774, 1e-16
        %v2799 = vadd.f32 %v1775, 1e-16
        %v2800 = vadd.f32 %v1776, 1e-16
        %v2801 = vadd.f32 %v1777, 1e-16
        %v2802 = vadd.f32 %v1778, 1e-16
        %v2803 = vadd.f32 %v1779, 1e-16
        %v2804 = vadd.f32 %v1780, 1e-16
        %v2805 = vadd.f32 %v1781, 1e-16
        %v2806 = vadd.f32 %v1782, 1e-16
        %v2807 = vadd.f32 %v1783, 1e-16
        %v2808 = vadd.f32 %v1784, 1e-16
        %v2809 = vadd.f32 %v1785, 1e-16
        %v2810 = vadd.f32 %v1786, 1e-16
        %v2811 = vadd.f32 %v1787, 1e-16
        %v2812 = vadd.f32 %v1788, 1e-16
        %v2813 = vadd.f32 %v1789, 1e-16
        %v2814 = vadd.f32 %v1790, 1e-16
        %v2815 = vadd.f32 %v1791, 1e-16
        %v2816 = vadd.f32 %v1792, 1e-16
        %v2817 = vadd.f32 %v1793, 1e-16
        %v2818 = vadd.f32 %v1794, 1e-16
        %v2819 = vadd.f32 %v1795, 1e-16
        %v2820 = vadd.f32 %v1796, 1e-16
        %v2821 = vadd.f32 %v1797, 1e-16
        %v2822 = vadd.f32 %v1798, 1e-16
        %v2823 = vadd.f32 %v1799, 1e-16
        %v2824 = vadd.f32 %v1800, 1e-16
        %v2825 = vadd.f32 %v1801, 1e-16
        %v2826 = vadd.f32 %v1802, 1e-16
        %v2827 = vadd.f32 %v1803, 1e-16
        %v2828 = vadd.f32 %v1804, 1e-16
        %v2829 = vadd.f32 %v1805, 1e-16
        %v2830 = vadd.f32 %v1806, 1e-16
        %v2831 = vadd.f32 %v1807, 1e-16
        %v2832 = vadd.f32 %v1808, 1e-16
        %v2833 = vadd.f32 %v1809, 1e-16
        %v2834 = vadd.f32 %v1810, 1e-16
        %v2835 = vadd.f32 %v1811, 1e-16
        %v2836 = vadd.f32 %v1812, 1e-16
        %v2837 = vadd.f32 %v1813, 1e-16
        %v2838 = vadd.f32 %v1814, 1e-16
        %v2839 = vadd.f32 %v1815, 1e-16
        %v2840 = vadd.f32 %v1816, 1e-16
        %v2841 = vadd.f32 %v1817, 1e-16
        %v2842 = vadd.f32 %v1818, 1e-16
        %v2843 = vadd.f32 %v1819, 1e-16
        %v2844 = vadd.f32 %v1820, 1e-16
        %v2845 = vadd.f32 %v1821, 1e-16
        %v2846 = vadd.f32 %v1822, 1e-16
        %v2847 = vadd.f32 %v1823, 1e-16
        %v2848 = vadd.f32 %v1824, 1e-16
        %v2849 = vadd.f32 %v1825, 1e-16
        %v2850 = vadd.f32 %v1826, 1e-16
        %v2851 = vadd.f32 %v1827, 1e-16
        %v2852 = vadd.f32 %v1828, 1e-16
        %v2853 = vadd.f32 %v1829, 1e-16
        %v2854 = vadd.f32 %v1830, 1e-16
        %v2855 = vadd.f32 %v1831, 1e-16
        %v2856 = vadd.f32 %v1832, 1e-16
        %v2857 = vadd.f32 %v1833, 1e-16
        %v2858 = vadd.f32 %v1834, 1e-16
        %v2859 = vadd.f32 %v1835, 1e-16
        %v2860 = vadd.f32 %v1836, 1e-16
        %v2861 = vadd.f32 %v1837, 1e-16
        %v2862 = vadd.f32 %v1838, 1e-16
        %v2863 = vadd.f32 %v1839, 1e-16
        %v2864 = vadd.f32 %v1840, 1e-16
        %v2865 = vadd.f32 %v1841, 1e-16
        %v2866 = vadd.f32 %v1842, 1e-16
        %v2867 = vadd.f32 %v1843, 1e-16
        %v2868 = vadd.f32 %v1844, 1e-16
        %v2869 = vadd.f32 %v1845, 1e-16
        %v2870 = vadd.f32 %v1846, 1e-16
        %v2871 = vadd.f32 %v1847, 1e-16
        %v2872 = vadd.f32 %v1848, 1e-16
        %v2873 = vadd.f32 %v1849, 1e-16
        %v2874 = vadd.f32 %v1850, 1e-16
        %v2875 = vadd.f32 %v1851, 1e-16
        %v2876 = vadd.f32 %v1852, 1e-16
        %v2877 = vadd.f32 %v1853, 1e-16
        %v2878 = vadd.f32 %v1854, 1e-16
        %v2879 = vadd.f32 %v1855, 1e-16
        %v2880 = vadd.f32 %v1856, 1e-16
        %v2881 = vadd.f32 %v1857, 1e-16
        %v2882 = vadd.f32 %v1858, 1e-16
        %v2883 = vadd.f32 %v1859, 1e-16
        %v2884 = vadd.f32 %v1860, 1e-16
        %v2885 = vadd.f32 %v1861, 1e-16
        %v2886 = vadd.f32 %v1862, 1e-16
        %v2887 = vadd.f32 %v1863, 1e-16
        %v2888 = vadd.f32 %v1864, 1e-16
        %v2889 = vadd.f32 %v1865, 1e-16
        %v2890 = vadd.f32 %v1866, 1e-16
        %v2891 = vadd.f32 %v1867, 1e-16
        %v2892 = vadd.f32 %v1868, 1e-16
        %v2893 = vadd.f32 %v1869, 1e-16
        %v2894 = vadd.f32 %v1870, 1e-16
        %v2895 = vadd.f32 %v1871, 1e-16
        %v2896 = vadd.f32 %v1872, 1e-16
        %v2897 = vadd.f32 %v1873, 1e-16
        %v2898 = vadd.f32 %v1874, 1e-16
        %v2899 = vadd.f32 %v1875, 1e-16
        %v2900 = vadd.f32 %v1876, 1e-16
        %v2901 = vadd.f32 %v1877, 1e-16
        %v2902 = vadd.f32 %v1878, 1e-16
        %v2903 = vadd.f32 %v1879, 1e-16
        %v2904 = vadd.f32 %v1880, 1e-16
        %v2905 = vadd.f32 %v1881, 1e-16
        %v2906 = vadd.f32 %v1882, 1e-16
        %v2907 = vadd.f32 %v1883, 1e-16
        %v2908 = vadd.f32 %v1884, 1e-16
        %v2909 = vadd.f32 %v1885, 1e-16
        %v2910 = vadd.f32 %v1886, 1e-16
        %v2911 = vadd.f32 %v1887, 1e-16
        %v2912 = vadd.f32 %v1888, 1e-16
        %v2913 = vadd.f32 %v1889, 1e-16
        %v2914 = vadd.f32 %v1890, 1e-16
        %v2915 = vadd.f32 %v1891, 1e-16
        %v2916 = vadd.f32 %v1892, 1e-16
        %v2917 = vadd.f32 %v1893, 1e-16
        %v2918 = vadd.f32 %v1894, 1e-16
        %v2919 = vadd.f32 %v1895, 1e-16
        %v2920 = vadd.f32 %v1896, 1e-16
        %v2921 = vadd.f32 %v1897, 1e-16
        %v2922 = vadd.f32 %v1898, 1e-16
        %v2923 = vadd.f32 %v1899, 1e-16
        %v2924 = vadd.f32 %v1900, 1e-16
        %v2925 = vadd.f32 %v1901, 1e-16
        %v2926 = vadd.f32 %v1902, 1e-16
        %v2927 = vadd.f32 %v1903, 1e-16
        %v2928 = vadd.f32 %v1904, 1e-16
        %v2929 = vadd.f32 %v1905, 1e-16
        %v2930 = vadd.f32 %v1906, 1e-16
        %v2931 = vadd.f32 %v1907, 1e-16
        %v2932 = vadd.f32 %v1908, 1e-16
        %v2933 = vadd.f32 %v1909, 1e-16
        %v2934 = vadd.f32 %v1910, 1e-16
        %v2935 = vadd.f32 %v1911, 1e-16
        %v2936 = vadd.f32 %v1912, 1e-16
        %v2937 = vadd.f32 %v1913, 1e-16
        %v2938 = vadd.f32 %v1914, 1e-16
        %v2939 = vadd.f32 %v1915, 1e-16
        %v2940 = vadd.f32 %v1916, 1e-16
        %v2941 = vadd.f32 %v1917, 1e-16
        %v2942 = vadd.f32 %v1918, 1e-16
        %v2943 = vadd.f32 %v1919, 1e-16
        %v2944 = vadd.f32 %v1920, 1e-16
        %v2945 = vadd.f32 %v1921, 1e-16
        %v2946 = vadd.f32 %v1922, 1e-16
        %v2947 = vadd.f32 %v1923, 1e-16
        %v2948 = vadd.f32 %v1924, 1e-16
        %v2949 = vadd.f32 %v1925, 1e-16
        %v2950 = vadd.f32 %v1926, 1e-16
        %v2951 = vadd.f32 %v1927, 1e-16
        %v2952 = vadd.f32 %v1928, 1e-16
        %v2953 = vadd.f32 %v1929, 1e-16
        %v2954 = vadd.f32 %v1930, 1e-16
        %v2955 = vadd.f32 %v1931, 1e-16
        %v2956 = vadd.f32 %v1932, 1e-16
        %v2957 = vadd.f32 %v1933, 1e-16
        %v2958 = vadd.f32 %v1934, 1e-16
        %v2959 = vadd.f32 %v1935, 1e-16
        %v2960 = vadd.f32 %v1936, 1e-16
        %v2961 = vadd.f32 %v1937, 1e-16
        %v2962 = vadd.f32 %v1938, 1e-16
        %v2963 = vadd.f32 %v1939, 1e-16
        %v2964 = vadd.f32 %v1940, 1e-16
        %v2965 = vadd.f32 %v1941, 1e-16
        %v2966 = vadd.f32 %v1942, 1e-16
        %v2967 = vadd.f32 %v1943, 1e-16
        %v2968 = vadd.f32 %v1944, 1e-16
        %v2969 = vadd.f32 %v1945, 1e-16
        %v2970 = vadd.f32 %v1946, 1e-16
        %v2971 = vadd.f32 %v1947, 1e-16
        %v2972 = vadd.f32 %v1948, 1e-16
        %v2973 = vadd.f32 %v1949, 1e-16
        %v2974 = vadd.f32 %v1950, 1e-16
        %v2975 = vadd.f32 %v1951, 1e-16
        %v2976 = vadd.f32 %v1952, 1e-16
        %v2977 = vadd.f32 %v1953, 1e-16
        %v2978 = vadd.f32 %v1954, 1e-16
        %v2979 = vadd.f32 %v1955, 1e-16
        %v2980 = vadd.f32 %v1956, 1e-16
        %v2981 = vadd.f32 %v1957, 1e-16
        %v2982 = vadd.f32 %v1958, 1e-16
        %v2983 = vadd.f32 %v1959, 1e-16
        %v2984 = vadd.f32 %v1960, 1e-16
        %v2985 = vadd.f32 %v1961, 1e-16
        %v2986 = vadd.f32 %v1962, 1e-16
        %v2987 = vadd.f32 %v1963, 1e-16
        %v2988 = vadd.f32 %v1964, 1e-16
        %v2989 = vadd.f32 %v1965, 1e-16
        %v2990 = vadd.f32 %v1966, 1e-16
        %v2991 = vadd.f32 %v1967, 1e-16
        %v2992 = vadd.f32 %v1968, 1e-16
        %v2993 = vadd.f32 %v1969, 1e-16
        %v2994 = vadd.f32 %v1970, 1e-16
        %v2995 = vadd.f32 %v1971, 1e-16
        %v2996 = vadd.f32 %v1972, 1e-16
        %v2997 = vadd.f32 %v1973, 1e-16
        %v2998 = vadd.f32 %v1974, 1e-16
        %v2999 = vadd.f32 %v1975, 1e-16
        %v3000 = vadd.f32 %v1976, 1e-16
        %v3001 = vadd.f32 %v1977, 1e-16
        %v3002 = vadd.f32 %v1978, 1e-16
        %v3003 = vadd.f32 %v1979, 1e-16
        %v3004 = vadd.f32 %v1980, 1e-16
        %v3005 = vadd.f32 %v1981, 1e-16
        %v3006 = vadd.f32 %v1982, 1e-16
        %v3007 = vadd.f32 %v1983, 1e-16
        %v3008 = vadd.f32 %v1984, 1e-16
        %v3009 = vadd.f32 %v1985, 1e-16
        %v3010 = vadd.f32 %v1986, 1e-16
        %v3011 = vadd.f32 %v1987, 1e-16
        %v3012 = vadd.f32 %v1988, 1e-16
        %v3013 = vadd.f32 %v1989, 1e-16
        %v3014 = vadd.f32 %v1990, 1e-16
        %v3015 = vadd.f32 %v1991, 1e-16
        %v3016 = vadd.f32 %v1992, 1e-16
        %v3017 = vadd.f32 %v1993, 1e-16
        %v3018 = vadd.f32 %v1994, 1e-16
        %v3019 = vadd.f32 %v1995, 1e-16
        %v3020 = vadd.f32 %v1996, 1e-16
        %v3021 = vadd.f32 %v1997, 1e-16
        %v3022 = vadd.f32 %v1998, 1e-16
        %v3023 = vadd.f32 %v1999, 1e-16
        %v3024 = vadd.f32 %v2000, 1e-16
        %v3025 = vadd.f32 %v2001, 1e-16
        %v3026 = vadd.f32 %v2002, 1e-16
        %v3027 = vadd.f32 %v2003, 1e-16
        %v3028 = vadd.f32 %v2004, 1e-16
        %v3029 = vadd.f32 %v2005, 1e-16
        %v3030 = vadd.f32 %v2006, 1e-16
        %v3031 = vadd.f32 %v2007, 1e-16
        %v3032 = vadd.f32 %v2008, 1e-16
        %v3033 = vadd.f32 %v2009, 1e-16
        %v3034 = vadd.f32 %v2010, 1e-16
        %v3035 = vadd.f32 %v2011, 1e-16
        %v3036 = vadd.f32 %v2012, 1e-16
        %v3037 = vadd.f32 %v2013, 1e-16
        %v3038 = vadd.f32 %v2014, 1e-16
        %v3039 = vadd.f32 %v2015, 1e-16
        %v3040 = vadd.f32 %v2016, 1e-16
        %v3041 = vadd.f32 %v2017, 1e-16
        %v3042 = vadd.f32 %v2018, 1e-16
        %v3043 = vadd.f32 %v2019, 1e-16
        %v3044 = vadd.f32 %v2020, 1e-16
        %v3045 = vadd.f32 %v2021, 1e-16
        %v3046 = vadd.f32 %v2022, 1e-16
        %v3047 = vadd.f32 %v2023, 1e-16
        %v3048 = vadd.f32 %v2024, 1e-16
        %v3049 = vadd.f32 %v2025, 1e-16
        %v3050 = vadd.f32 %v2026, 1e-16
        %v3051 = vadd.f32 %v2027, 1e-16
        %v3052 = vadd.f32 %v2028, 1e-16
        %v3053 = vadd.f32 %v2029, 1e-16
        %v3054 = vadd.f32 %v2030, 1e-16
        %v3055 = vadd.f32 %v2031, 1e-16
        %v3056 = vadd.f32 %v2032, 1e-16
        %v3057 = vadd.f32 %v2033, 1e-16
        %v3058 = vadd.f32 %v2034, 1e-16
        %v3059 = vadd.f32 %v2035, 1e-16
        %v3060 = vadd.f32 %v2036, 1e-16
        %v3061 = vadd.f32 %v2037, 1e-16
        %v3062 = vadd.f32 %v2038, 1e-16
        %v3063 = vadd.f32 %v2039, 1e-16
        %v3064 = vadd.f32 %v2040, 1e-16
        %v3065 = vadd.f32 %v2041, 1e-16
        %v3066 = vadd.f32 %v2042, 1e-16
        %v3067 = vadd.f32 %v2043, 1e-16
        %v3068 = vadd.f32 %v2044, 1e-16
        %v3069 = vadd.f32 %v2045, 1e-16
        %v3070 = vadd.f32 %v2046, 1e-16
        %v3071 = vadd.f32 %v2047, 1e-16
        %v3072 = vadd.f32 %v2048, 1e-16
        %v3073 = vadd.f32 %v2049, 1e-16
        %v3074 = vadd.f32 %v2050, 1e-16
        %v3075 = vadd.f32 %v2051, 1e-16
        %v3076 = vadd.f32 %v2052, 1e-16
        %v3077 = vadd.f32 %v2053, 1e-16
        %v3078 = vadd.f32 %v2054, 1e-16
        %v3079 = vadd.f32 %v2055, 1e-16
        %v3080 = vadd.f32 %v2056, 1e-16
        %v3081 = vadd.f32 %v2057, 1e-16
        %v3082 = vadd.f32 %v2058, 1e-16
        %v3083 = vadd.f32 %v2059, 1e-16
        %v3084 = vadd.f32 %v2060, 1e-16
        %v3085 = vadd.f32 %v2061, 1e-16
        %v3086 = vadd.f32 %v2062, 1e-16
        %v3087 = vadd.f32 %v2063, 1e-16
        %v3088 = vadd.f32 %v2064, 1e-16
        %v3089 = vadd.f32 %v2065, 1e-16
        %v3090 = vadd.f32 %v2066, 1e-16
        %v3091 = vadd.f32 %v2067, 1e-16
        %v3092 = vadd.f32 %v2068, 1e-16
        %v3093 = vadd.f32 %v2069, 1e-16
        %v3094 = vadd.f32 %v2070, 1e-16
        %v3095 = vadd.f32 %v2071, 1e-16
        %v3096 = vadd.f32 %v2072, 1e-16
        %v3097 = vadd.f32 %v2073, 1e-16
        %v3098 = vadd.f32 %v2074, 1e-16
        %v3099 = vadd.f32 %v2075, 1e-16
        %v3100 = vadd.f32 %v2076, 1e-16
        %v3101 = vadd.f32 %v2077, 1e-16
        %v3102 = vadd.f32 %v2078, 1e-16
        %v3103 = vadd.f32 %v2079, 1e-16
        %v3104 = vadd.f32 %v2080, 1e-16
        %v3105 = vadd.f32 %v2081, 1e-16
        %v3106 = vadd.f32 %v2082, 1e-16
        %v3107 = vadd.f32 %v2083, 1e-16
        %v3108 = vadd.f32 %v2084, 1e-16
        %v3109 = vadd.f32 %v2085, 1e-16
        %v3110 = vadd.f32 %v2086, 1e-16
        %v3111 = vadd.f32 %v2087, 1e-16
        %v3112 = vadd.f32 %v2088, 1e-16
        %v3113 = vadd.f32 %v2089, 1e-16
        %v3114 = vadd.f32 %v2090, 1e-16
        %v3115 = vadd.f32 %v2091, 1e-16
        %v3116 = vadd.f32 %v2092, 1e-16
        %v3117 = vadd.f32 %v2093, 1e-16
        %v3118 = vadd.f32 %v2094, 1e-16
        %v3119 = vadd.f32 %v2095, 1e-16
        %v3120 = vadd.f32 %v2096, 1e-16
        %v3121 = vadd.f32 %v2097, 1e-16
        %v3122 = vadd.f32 %v2098, 1e-16
        %v3123 = vadd.f32 %v2099, 1e-16
        %v3124 = vadd.f32 %v2100, 1e-16
        %v3125 = vadd.f32 %v2101, 1e-16
        %v3126 = vadd.f32 %v2102, 1e-16
        %v3127 = vadd.f32 %v2103, 1e-16
        %v3128 = vadd.f32 %v2104, 1e-16
        %v3129 = vadd.f32 %v2105, 1e-16
        %v3130 = vadd.f32 %v2106, 1e-16
        %v3131 = vadd.f32 %v2107, 1e-16
        %v3132 = vadd.f32 %v2108, 1e-16
        %v3133 = vadd.f32 %v2109, 1e-16
        %v3134 = vadd.f32 %v2110, 1e-16
        %v3135 = vadd.f32 %v2111, 1e-16
        %v3136 = vadd.f32 %v2112, 1e-16
        %v3137 = vadd.f32 %v2113, 1e-16
        %v3138 = vadd.f32 %v2114, 1e-16
        %v3139 = vadd.f32 %v2115, 1e-16
        %v3140 = vadd.f32 %v2116, 1e-16
        %v3141 = vadd.f32 %v2117, 1e-16
        %v3142 = vadd.f32 %v2118, 1e-16
        %v3143 = vadd.f32 %v2119, 1e-16
        %v3144 = vadd.f32 %v2120, 1e-16
        %v3145 = vadd.f32 %v2121, 1e-16
        %v3146 = vadd.f32 %v2122, 1e-16
        %v3147 = vadd.f32 %v2123, 1e-16
        %v3148 = vadd.f32 %v2124, 1e-16
        %v3149 = vadd.f32 %v2125, 1e-16
        %v3150 = vadd.f32 %v2126, 1e-16
        %v3151 = vadd.f32 %v2127, 1e-16
        %v3152 = vadd.f32 %v2128, 1e-16
        %v3153 = vadd.f32 %v2129, 1e-16
        %v3154 = vadd.f32 %v2130, 1e-16
        %v3155 = vadd.f32 %v2131, 1e-16
        %v3156 = vadd.f32 %v2132, 1e-16
        %v3157 = vadd.f32 %v2133, 1e-16
        %v3158 = vadd.f32 %v2134, 1e-16
        %v3159 = vadd.f32 %v2135, 1e-16
        %v3160 = vadd.f32 %v2136, 1e-16
        %v3161 = vadd.f32 %v2137, 1e-16
        %v3162 = vadd.f32 %v2138, 1e-16
        %v3163 = vadd.f32 %v2139, 1e-16
        %v3164 = vadd.f32 %v2140, 1e-16
        %v3165 = vadd.f32 %v2141, 1e-16
        %v3166 = vadd.f32 %v2142, 1e-16
        %v3167 = vadd.f32 %v2143, 1e-16
        %v3168 = vadd.f32 %v2144, 1e-16
        %v3169 = vadd.f32 %v2145, 1e-16
        %v3170 = vadd.f32 %v2146, 1e-16
        %v3171 = vadd.f32 %v2147, 1e-16
        %v3172 = vadd.f32 %v2148, 1e-16
        %v3173 = vadd.f32 %v2149, 1e-16
        %v3174 = vadd.f32 %v2150, 1e-16
        %v3175 = vadd.f32 %v2151, 1e-16
        %v3176 = vadd.f32 %v2152, 1e-16
        %v3177 = vadd.f32 %v2153, 1e-16
        %v3178 = vadd.f32 %v2154, 1e-16
        %v3179 = vadd.f32 %v2155, 1e-16
        %v3180 = vadd.f32 %v2156, 1e-16
        %v3181 = vadd.f32 %v2157, 1e-16
        %v3182 = vadd.f32 %v2158, 1e-16
        %v3183 = vadd.f32 %v2159, 1e-16
        %v3184 = vadd.f32 %v2160, 1e-16
        %v3185 = vadd.f32 %v2161, 1e-16
        %v3186 = vadd.f32 %v2162, 1e-16
        %v3187 = vadd.f32 %v2163, 1e-16
        %v3188 = vadd.f32 %v2164, 1e-16
        %v3189 = vadd.f32 %v2165, 1e-16
        %v3190 = vadd.f32 %v2166, 1e-16
        %v3191 = vadd.f32 %v2167, 1e-16
        %v3192 = vadd.f32 %v2168, 1e-16
        %v3193 = vadd.f32 %v2169, 1e-16
        %v3194 = vadd.f32 %v2170, 1e-16
        %v3195 = vadd.f32 %v2171, 1e-16
        %v3196 = vadd.f32 %v2172, 1e-16
        %v3197 = vadd.f32 %v2173, 1e-16
        %v3198 = vadd.f32 %v2174, 1e-16
        %v3199 = vadd.f32 %v2175, 1e-16
        %v3200 = vadd.f32 %v2176, 1e-16
        %v3201 = vadd.f32 %v2177, 1e-16
        %v3202 = vadd.f32 %v2178, 1e-16
        %v3203 = vadd.f32 %v2179, 1e-16
        %v3204 = vadd.f32 %v2180, 1e-16
        %v3205 = vadd.f32 %v2181, 1e-16
        %v3206 = vadd.f32 %v2182, 1e-16
        %v3207 = vadd.f32 %v2183, 1e-16
        %v3208 = vadd.f32 %v2184, 1e-16
        %v3209 = vadd.f32 %v2185, 1e-16
        %v3210 = vadd.f32 %v2186, 1e-16
        %v3211 = vadd.f32 %v2187, 1e-16
        %3212 = vst [vmem:[%s137] sm:$0xff] %v2188
        %3213 = vst [vmem:[%s137 + $0x8] sm:$0xff] %v2189
        %3214 = vst [vmem:[%s137 + $0x10] sm:$0xff] %v2190
        %3215 = vst [vmem:[%s137 + $0x18] sm:$0xff] %v2191
        %3216 = vst [vmem:[%s137 + $0x20] sm:$0xff] %v2192
        %3217 = vst [vmem:[%s137 + $0x28] sm:$0xff] %v2193
        %3218 = vst [vmem:[%s137 + $0x30] sm:$0xff] %v2194
        %3219 = vst [vmem:[%s137 + $0x38] sm:$0xff] %v2195
        %3220 = vst [vmem:[%s137 + $0x40] sm:$0xff] %v2196
        %3221 = vst [vmem:[%s137 + $0x48] sm:$0xff] %v2197
        %3222 = vst [vmem:[%s137 + $0x50] sm:$0xff] %v2198
        %3223 = vst [vmem:[%s137 + $0x58] sm:$0xff] %v2199
        %3224 = vst [vmem:[%s137 + $0x60] sm:$0xff] %v2200
        %3225 = vst [vmem:[%s137 + $0x68] sm:$0xff] %v2201
        %3226 = vst [vmem:[%s137 + $0x70] sm:$0xff] %v2202
        %3227 = vst [vmem:[%s137 + $0x78] sm:$0xff] %v2203
        %3228 = vst [vmem:[%s137 + $0x80] sm:$0xff] %v2204
        %3229 = vst [vmem:[%s137 + $0x88] sm:$0xff] %v2205
        %3230 = vst [vmem:[%s137 + $0x90] sm:$0xff] %v2206
        %3231 = vst [vmem:[%s137 + $0x98] sm:$0xff] %v2207
        %3232 = vst [vmem:[%s137 + $0xa0] sm:$0xff] %v2208
        %3233 = vst [vmem:[%s137 + $0xa8] sm:$0xff] %v2209
        %3234 = vst [vmem:[%s137 + $0xb0] sm:$0xff] %v2210
        %3235 = vst [vmem:[%s137 + $0xb8] sm:$0xff] %v2211
        %3236 = vst [vmem:[%s137 + $0xc0] sm:$0xff] %v2212
        %3237 = vst [vmem:[%s137 + $0xc8] sm:$0xff] %v2213
        %3238 = vst [vmem:[%s137 + $0xd0] sm:$0xff] %v2214
        %3239 = vst [vmem:[%s137 + $0xd8] sm:$0xff] %v2215
        %3240 = vst [vmem:[%s137 + $0xe0] sm:$0xff] %v2216
        %3241 = vst [vmem:[%s137 + $0xe8] sm:$0xff] %v2217
        %3242 = vst [vmem:[%s137 + $0xf0] sm:$0xff] %v2218
        %3243 = vst [vmem:[%s137 + $0xf8] sm:$0xff] %v2219
        %3244 = vst [vmem:[%s137 + $0x100] sm:$0xff] %v2220
        %3245 = vst [vmem:[%s137 + $0x108] sm:$0xff] %v2221
        %3246 = vst [vmem:[%s137 + $0x110] sm:$0xff] %v2222
        %3247 = vst [vmem:[%s137 + $0x118] sm:$0xff] %v2223
        %3248 = vst [vmem:[%s137 + $0x120] sm:$0xff] %v2224
        %3249 = vst [vmem:[%s137 + $0x128] sm:$0xff] %v2225
        %3250 = vst [vmem:[%s137 + $0x130] sm:$0xff] %v2226
        %3251 = vst [vmem:[%s137 + $0x138] sm:$0xff] %v2227
        %3252 = vst [vmem:[%s137 + $0x140] sm:$0xff] %v2228
        %3253 = vst [vmem:[%s137 + $0x148] sm:$0xff] %v2229
        %3254 = vst [vmem:[%s137 + $0x150] sm:$0xff] %v2230
        %3255 = vst [vmem:[%s137 + $0x158] sm:$0xff] %v2231
        %3256 = vst [vmem:[%s137 + $0x160] sm:$0xff] %v2232
        %3257 = vst [vmem:[%s137 + $0x168] sm:$0xff] %v2233
        %3258 = vst [vmem:[%s137 + $0x170] sm:$0xff] %v2234
        %3259 = vst [vmem:[%s137 + $0x178] sm:$0xff] %v2235
        %3260 = vst [vmem:[%s137 + $0x180] sm:$0xff] %v2236
        %3261 = vst [vmem:[%s137 + $0x188] sm:$0xff] %v2237
        %3262 = vst [vmem:[%s137 + $0x190] sm:$0xff] %v2238
        %3263 = vst [vmem:[%s137 + $0x198] sm:$0xff] %v2239
        %3264 = vst [vmem:[%s137 + $0x1a0] sm:$0xff] %v2240
        %3265 = vst [vmem:[%s137 + $0x1a8] sm:$0xff] %v2241
        %3266 = vst [vmem:[%s137 + $0x1b0] sm:$0xff] %v2242
        %3267 = vst [vmem:[%s137 + $0x1b8] sm:$0xff] %v2243
        %3268 = vst [vmem:[%s137 + $0x1c0] sm:$0xff] %v2244
        %3269 = vst [vmem:[%s137 + $0x1c8] sm:$0xff] %v2245
        %3270 = vst [vmem:[%s137 + $0x1d0] sm:$0xff] %v2246
        %3271 = vst [vmem:[%s137 + $0x1d8] sm:$0xff] %v2247
        %3272 = vst [vmem:[%s137 + $0x1e0] sm:$0xff] %v2248
        %3273 = vst [vmem:[%s137 + $0x1e8] sm:$0xff] %v2249
        %3274 = vst [vmem:[%s137 + $0x1f0] sm:$0xff] %v2250
        %3275 = vst [vmem:[%s137 + $0x1f8] sm:$0xff] %v2251
        %3276 = vst [vmem:[%s137 + $0x200] sm:$0xff] %v2252
        %3277 = vst [vmem:[%s137 + $0x208] sm:$0xff] %v2253
        %3278 = vst [vmem:[%s137 + $0x210] sm:$0xff] %v2254
        %3279 = vst [vmem:[%s137 + $0x218] sm:$0xff] %v2255
        %3280 = vst [vmem:[%s137 + $0x220] sm:$0xff] %v2256
        %3281 = vst [vmem:[%s137 + $0x228] sm:$0xff] %v2257
        %3282 = vst [vmem:[%s137 + $0x230] sm:$0xff] %v2258
        %3283 = vst [vmem:[%s137 + $0x238] sm:$0xff] %v2259
        %3284 = vst [vmem:[%s137 + $0x240] sm:$0xff] %v2260
        %3285 = vst [vmem:[%s137 + $0x248] sm:$0xff] %v2261
        %3286 = vst [vmem:[%s137 + $0x250] sm:$0xff] %v2262
        %3287 = vst [vmem:[%s137 + $0x258] sm:$0xff] %v2263
        %3288 = vst [vmem:[%s137 + $0x260] sm:$0xff] %v2264
        %3289 = vst [vmem:[%s137 + $0x268] sm:$0xff] %v2265
        %3290 = vst [vmem:[%s137 + $0x270] sm:$0xff] %v2266
        %3291 = vst [vmem:[%s137 + $0x278] sm:$0xff] %v2267
        %3292 = vst [vmem:[%s137 + $0x280] sm:$0xff] %v2268
        %3293 = vst [vmem:[%s137 + $0x288] sm:$0xff] %v2269
        %3294 = vst [vmem:[%s137 + $0x290] sm:$0xff] %v2270
        %3295 = vst [vmem:[%s137 + $0x298] sm:$0xff] %v2271
        %3296 = vst [vmem:[%s137 + $0x2a0] sm:$0xff] %v2272
        %3297 = vst [vmem:[%s137 + $0x2a8] sm:$0xff] %v2273
        %3298 = vst [vmem:[%s137 + $0x2b0] sm:$0xff] %v2274
        %3299 = vst [vmem:[%s137 + $0x2b8] sm:$0xff] %v2275
        %3300 = vst [vmem:[%s137 + $0x2c0] sm:$0xff] %v2276
        %3301 = vst [vmem:[%s137 + $0x2c8] sm:$0xff] %v2277
        %3302 = vst [vmem:[%s137 + $0x2d0] sm:$0xff] %v2278
        %3303 = vst [vmem:[%s137 + $0x2d8] sm:$0xff] %v2279
        %3304 = vst [vmem:[%s137 + $0x2e0] sm:$0xff] %v2280
        %3305 = vst [vmem:[%s137 + $0x2e8] sm:$0xff] %v2281
        %3306 = vst [vmem:[%s137 + $0x2f0] sm:$0xff] %v2282
        %3307 = vst [vmem:[%s137 + $0x2f8] sm:$0xff] %v2283
        %3308 = vst [vmem:[%s137 + $0x300] sm:$0xff] %v2284
        %3309 = vst [vmem:[%s137 + $0x308] sm:$0xff] %v2285
        %3310 = vst [vmem:[%s137 + $0x310] sm:$0xff] %v2286
        %3311 = vst [vmem:[%s137 + $0x318] sm:$0xff] %v2287
        %3312 = vst [vmem:[%s137 + $0x320] sm:$0xff] %v2288
        %3313 = vst [vmem:[%s137 + $0x328] sm:$0xff] %v2289
        %3314 = vst [vmem:[%s137 + $0x330] sm:$0xff] %v2290
        %3315 = vst [vmem:[%s137 + $0x338] sm:$0xff] %v2291
        %3316 = vst [vmem:[%s137 + $0x340] sm:$0xff] %v2292
        %3317 = vst [vmem:[%s137 + $0x348] sm:$0xff] %v2293
        %3318 = vst [vmem:[%s137 + $0x350] sm:$0xff] %v2294
        %3319 = vst [vmem:[%s137 + $0x358] sm:$0xff] %v2295
        %3320 = vst [vmem:[%s137 + $0x360] sm:$0xff] %v2296
        %3321 = vst [vmem:[%s137 + $0x368] sm:$0xff] %v2297
        %3322 = vst [vmem:[%s137 + $0x370] sm:$0xff] %v2298
        %3323 = vst [vmem:[%s137 + $0x378] sm:$0xff] %v2299
        %3324 = vst [vmem:[%s137 + $0x380] sm:$0xff] %v2300
        %3325 = vst [vmem:[%s137 + $0x388] sm:$0xff] %v2301
        %3326 = vst [vmem:[%s137 + $0x390] sm:$0xff] %v2302
        %3327 = vst [vmem:[%s137 + $0x398] sm:$0xff] %v2303
        %3328 = vst [vmem:[%s137 + $0x3a0] sm:$0xff] %v2304
        %3329 = vst [vmem:[%s137 + $0x3a8] sm:$0xff] %v2305
        %3330 = vst [vmem:[%s137 + $0x3b0] sm:$0xff] %v2306
        %3331 = vst [vmem:[%s137 + $0x3b8] sm:$0xff] %v2307
        %3332 = vst [vmem:[%s137 + $0x3c0] sm:$0xff] %v2308
        %3333 = vst [vmem:[%s137 + $0x3c8] sm:$0xff] %v2309
        %3334 = vst [vmem:[%s137 + $0x3d0] sm:$0xff] %v2310
        %3335 = vst [vmem:[%s137 + $0x3d8] sm:$0xff] %v2311
        %3336 = vst [vmem:[%s137 + $0x3e0] sm:$0xff] %v2312
        %3337 = vst [vmem:[%s137 + $0x3e8] sm:$0xff] %v2313
        %3338 = vst [vmem:[%s137 + $0x3f0] sm:$0xff] %v2314
        %3339 = vst [vmem:[%s137 + $0x3f8] sm:$0xff] %v2315
        %3340 = vst [vmem:[%s137 + $0x400] sm:$0xff] %v2316
        %3341 = vst [vmem:[%s137 + $0x408] sm:$0xff] %v2317
        %3342 = vst [vmem:[%s137 + $0x410] sm:$0xff] %v2318
        %3343 = vst [vmem:[%s137 + $0x418] sm:$0xff] %v2319
        %3344 = vst [vmem:[%s137 + $0x420] sm:$0xff] %v2320
        %3345 = vst [vmem:[%s137 + $0x428] sm:$0xff] %v2321
        %3346 = vst [vmem:[%s137 + $0x430] sm:$0xff] %v2322
        %3347 = vst [vmem:[%s137 + $0x438] sm:$0xff] %v2323
        %3348 = vst [vmem:[%s137 + $0x440] sm:$0xff] %v2324
        %3349 = vst [vmem:[%s137 + $0x448] sm:$0xff] %v2325
        %3350 = vst [vmem:[%s137 + $0x450] sm:$0xff] %v2326
        %3351 = vst [vmem:[%s137 + $0x458] sm:$0xff] %v2327
        %3352 = vst [vmem:[%s137 + $0x460] sm:$0xff] %v2328
        %3353 = vst [vmem:[%s137 + $0x468] sm:$0xff] %v2329
        %3354 = vst [vmem:[%s137 + $0x470] sm:$0xff] %v2330
        %3355 = vst [vmem:[%s137 + $0x478] sm:$0xff] %v2331
        %3356 = vst [vmem:[%s137 + $0x480] sm:$0xff] %v2332
        %3357 = vst [vmem:[%s137 + $0x488] sm:$0xff] %v2333
        %3358 = vst [vmem:[%s137 + $0x490] sm:$0xff] %v2334
        %3359 = vst [vmem:[%s137 + $0x498] sm:$0xff] %v2335
        %3360 = vst [vmem:[%s137 + $0x4a0] sm:$0xff] %v2336
        %3361 = vst [vmem:[%s137 + $0x4a8] sm:$0xff] %v2337
        %3362 = vst [vmem:[%s137 + $0x4b0] sm:$0xff] %v2338
        %3363 = vst [vmem:[%s137 + $0x4b8] sm:$0xff] %v2339
        %3364 = vst [vmem:[%s137 + $0x4c0] sm:$0xff] %v2340
        %3365 = vst [vmem:[%s137 + $0x4c8] sm:$0xff] %v2341
        %3366 = vst [vmem:[%s137 + $0x4d0] sm:$0xff] %v2342
        %3367 = vst [vmem:[%s137 + $0x4d8] sm:$0xff] %v2343
        %3368 = vst [vmem:[%s137 + $0x4e0] sm:$0xff] %v2344
        %3369 = vst [vmem:[%s137 + $0x4e8] sm:$0xff] %v2345
        %3370 = vst [vmem:[%s137 + $0x4f0] sm:$0xff] %v2346
        %3371 = vst [vmem:[%s137 + $0x4f8] sm:$0xff] %v2347
        %3372 = vst [vmem:[%s137 + $0x500] sm:$0xff] %v2348
        %3373 = vst [vmem:[%s137 + $0x508] sm:$0xff] %v2349
        %3374 = vst [vmem:[%s137 + $0x510] sm:$0xff] %v2350
        %3375 = vst [vmem:[%s137 + $0x518] sm:$0xff] %v2351
        %3376 = vst [vmem:[%s137 + $0x520] sm:$0xff] %v2352
        %3377 = vst [vmem:[%s137 + $0x528] sm:$0xff] %v2353
        %3378 = vst [vmem:[%s137 + $0x530] sm:$0xff] %v2354
        %3379 = vst [vmem:[%s137 + $0x538] sm:$0xff] %v2355
        %3380 = vst [vmem:[%s137 + $0x540] sm:$0xff] %v2356
        %3381 = vst [vmem:[%s137 + $0x548] sm:$0xff] %v2357
        %3382 = vst [vmem:[%s137 + $0x550] sm:$0xff] %v2358
        %3383 = vst [vmem:[%s137 + $0x558] sm:$0xff] %v2359
        %3384 = vst [vmem:[%s137 + $0x560] sm:$0xff] %v2360
        %3385 = vst [vmem:[%s137 + $0x568] sm:$0xff] %v2361
        %3386 = vst [vmem:[%s137 + $0x570] sm:$0xff] %v2362
        %3387 = vst [vmem:[%s137 + $0x578] sm:$0xff] %v2363
        %3388 = vst [vmem:[%s137 + $0x580] sm:$0xff] %v2364
        %3389 = vst [vmem:[%s137 + $0x588] sm:$0xff] %v2365
        %3390 = vst [vmem:[%s137 + $0x590] sm:$0xff] %v2366
        %3391 = vst [vmem:[%s137 + $0x598] sm:$0xff] %v2367
        %3392 = vst [vmem:[%s137 + $0x5a0] sm:$0xff] %v2368
        %3393 = vst [vmem:[%s137 + $0x5a8] sm:$0xff] %v2369
        %3394 = vst [vmem:[%s137 + $0x5b0] sm:$0xff] %v2370
        %3395 = vst [vmem:[%s137 + $0x5b8] sm:$0xff] %v2371
        %3396 = vst [vmem:[%s137 + $0x5c0] sm:$0xff] %v2372
        %3397 = vst [vmem:[%s137 + $0x5c8] sm:$0xff] %v2373
        %3398 = vst [vmem:[%s137 + $0x5d0] sm:$0xff] %v2374
        %3399 = vst [vmem:[%s137 + $0x5d8] sm:$0xff] %v2375
        %3400 = vst [vmem:[%s137 + $0x5e0] sm:$0xff] %v2376
        %3401 = vst [vmem:[%s137 + $0x5e8] sm:$0xff] %v2377
        %3402 = vst [vmem:[%s137 + $0x5f0] sm:$0xff] %v2378
        %3403 = vst [vmem:[%s137 + $0x5f8] sm:$0xff] %v2379
        %3404 = vst [vmem:[%s137 + $0x600] sm:$0xff] %v2380
        %3405 = vst [vmem:[%s137 + $0x608] sm:$0xff] %v2381
        %3406 = vst [vmem:[%s137 + $0x610] sm:$0xff] %v2382
        %3407 = vst [vmem:[%s137 + $0x618] sm:$0xff] %v2383
        %3408 = vst [vmem:[%s137 + $0x620] sm:$0xff] %v2384
        %3409 = vst [vmem:[%s137 + $0x628] sm:$0xff] %v2385
        %3410 = vst [vmem:[%s137 + $0x630] sm:$0xff] %v2386
        %3411 = vst [vmem:[%s137 + $0x638] sm:$0xff] %v2387
        %3412 = vst [vmem:[%s137 + $0x640] sm:$0xff] %v2388
        %3413 = vst [vmem:[%s137 + $0x648] sm:$0xff] %v2389
        %3414 = vst [vmem:[%s137 + $0x650] sm:$0xff] %v2390
        %3415 = vst [vmem:[%s137 + $0x658] sm:$0xff] %v2391
        %3416 = vst [vmem:[%s137 + $0x660] sm:$0xff] %v2392
        %3417 = vst [vmem:[%s137 + $0x668] sm:$0xff] %v2393
        %3418 = vst [vmem:[%s137 + $0x670] sm:$0xff] %v2394
        %3419 = vst [vmem:[%s137 + $0x678] sm:$0xff] %v2395
        %3420 = vst [vmem:[%s137 + $0x680] sm:$0xff] %v2396
        %3421 = vst [vmem:[%s137 + $0x688] sm:$0xff] %v2397
        %3422 = vst [vmem:[%s137 + $0x690] sm:$0xff] %v2398
        %3423 = vst [vmem:[%s137 + $0x698] sm:$0xff] %v2399
        %3424 = vst [vmem:[%s137 + $0x6a0] sm:$0xff] %v2400
        %3425 = vst [vmem:[%s137 + $0x6a8] sm:$0xff] %v2401
        %3426 = vst [vmem:[%s137 + $0x6b0] sm:$0xff] %v2402
        %3427 = vst [vmem:[%s137 + $0x6b8] sm:$0xff] %v2403
        %3428 = vst [vmem:[%s137 + $0x6c0] sm:$0xff] %v2404
        %3429 = vst [vmem:[%s137 + $0x6c8] sm:$0xff] %v2405
        %3430 = vst [vmem:[%s137 + $0x6d0] sm:$0xff] %v2406
        %3431 = vst [vmem:[%s137 + $0x6d8] sm:$0xff] %v2407
        %3432 = vst [vmem:[%s137 + $0x6e0] sm:$0xff] %v2408
        %3433 = vst [vmem:[%s137 + $0x6e8] sm:$0xff] %v2409
        %3434 = vst [vmem:[%s137 + $0x6f0] sm:$0xff] %v2410
        %3435 = vst [vmem:[%s137 + $0x6f8] sm:$0xff] %v2411
        %3436 = vst [vmem:[%s137 + $0x700] sm:$0xff] %v2412
        %3437 = vst [vmem:[%s137 + $0x708] sm:$0xff] %v2413
        %3438 = vst [vmem:[%s137 + $0x710] sm:$0xff] %v2414
        %3439 = vst [vmem:[%s137 + $0x718] sm:$0xff] %v2415
        %3440 = vst [vmem:[%s137 + $0x720] sm:$0xff] %v2416
        %3441 = vst [vmem:[%s137 + $0x728] sm:$0xff] %v2417
        %3442 = vst [vmem:[%s137 + $0x730] sm:$0xff] %v2418
        %3443 = vst [vmem:[%s137 + $0x738] sm:$0xff] %v2419
        %3444 = vst [vmem:[%s137 + $0x740] sm:$0xff] %v2420
        %3445 = vst [vmem:[%s137 + $0x748] sm:$0xff] %v2421
        %3446 = vst [vmem:[%s137 + $0x750] sm:$0xff] %v2422
        %3447 = vst [vmem:[%s137 + $0x758] sm:$0xff] %v2423
        %3448 = vst [vmem:[%s137 + $0x760] sm:$0xff] %v2424
        %3449 = vst [vmem:[%s137 + $0x768] sm:$0xff] %v2425
        %3450 = vst [vmem:[%s137 + $0x770] sm:$0xff] %v2426
        %3451 = vst [vmem:[%s137 + $0x778] sm:$0xff] %v2427
        %3452 = vst [vmem:[%s137 + $0x780] sm:$0xff] %v2428
        %3453 = vst [vmem:[%s137 + $0x788] sm:$0xff] %v2429
        %3454 = vst [vmem:[%s137 + $0x790] sm:$0xff] %v2430
        %3455 = vst [vmem:[%s137 + $0x798] sm:$0xff] %v2431
        %3456 = vst [vmem:[%s137 + $0x7a0] sm:$0xff] %v2432
        %3457 = vst [vmem:[%s137 + $0x7a8] sm:$0xff] %v2433
        %3458 = vst [vmem:[%s137 + $0x7b0] sm:$0xff] %v2434
        %3459 = vst [vmem:[%s137 + $0x7b8] sm:$0xff] %v2435
        %3460 = vst [vmem:[%s137 + $0x7c0] sm:$0xff] %v2436
        %3461 = vst [vmem:[%s137 + $0x7c8] sm:$0xff] %v2437
        %3462 = vst [vmem:[%s137 + $0x7d0] sm:$0xff] %v2438
        %3463 = vst [vmem:[%s137 + $0x7d8] sm:$0xff] %v2439
        %3464 = vst [vmem:[%s137 + $0x7e0] sm:$0xff] %v2440
        %3465 = vst [vmem:[%s137 + $0x7e8] sm:$0xff] %v2441
        %3466 = vst [vmem:[%s137 + $0x7f0] sm:$0xff] %v2442
        %3467 = vst [vmem:[%s137 + $0x7f8] sm:$0xff] %v2443
        %3468 = vst [vmem:[%s137 + $0x800] sm:$0xff] %v2444
        %3469 = vst [vmem:[%s137 + $0x808] sm:$0xff] %v2445
        %3470 = vst [vmem:[%s137 + $0x810] sm:$0xff] %v2446
        %3471 = vst [vmem:[%s137 + $0x818] sm:$0xff] %v2447
        %3472 = vst [vmem:[%s137 + $0x820] sm:$0xff] %v2448
        %3473 = vst [vmem:[%s137 + $0x828] sm:$0xff] %v2449
        %3474 = vst [vmem:[%s137 + $0x830] sm:$0xff] %v2450
        %3475 = vst [vmem:[%s137 + $0x838] sm:$0xff] %v2451
        %3476 = vst [vmem:[%s137 + $0x840] sm:$0xff] %v2452
        %3477 = vst [vmem:[%s137 + $0x848] sm:$0xff] %v2453
        %3478 = vst [vmem:[%s137 + $0x850] sm:$0xff] %v2454
        %3479 = vst [vmem:[%s137 + $0x858] sm:$0xff] %v2455
        %3480 = vst [vmem:[%s137 + $0x860] sm:$0xff] %v2456
        %3481 = vst [vmem:[%s137 + $0x868] sm:$0xff] %v2457
        %3482 = vst [vmem:[%s137 + $0x870] sm:$0xff] %v2458
        %3483 = vst [vmem:[%s137 + $0x878] sm:$0xff] %v2459
        %3484 = vst [vmem:[%s137 + $0x880] sm:$0xff] %v2460
        %3485 = vst [vmem:[%s137 + $0x888] sm:$0xff] %v2461
        %3486 = vst [vmem:[%s137 + $0x890] sm:$0xff] %v2462
        %3487 = vst [vmem:[%s137 + $0x898] sm:$0xff] %v2463
        %3488 = vst [vmem:[%s137 + $0x8a0] sm:$0xff] %v2464
        %3489 = vst [vmem:[%s137 + $0x8a8] sm:$0xff] %v2465
        %3490 = vst [vmem:[%s137 + $0x8b0] sm:$0xff] %v2466
        %3491 = vst [vmem:[%s137 + $0x8b8] sm:$0xff] %v2467
        %3492 = vst [vmem:[%s137 + $0x8c0] sm:$0xff] %v2468
        %3493 = vst [vmem:[%s137 + $0x8c8] sm:$0xff] %v2469
        %3494 = vst [vmem:[%s137 + $0x8d0] sm:$0xff] %v2470
        %3495 = vst [vmem:[%s137 + $0x8d8] sm:$0xff] %v2471
        %3496 = vst [vmem:[%s137 + $0x8e0] sm:$0xff] %v2472
        %3497 = vst [vmem:[%s137 + $0x8e8] sm:$0xff] %v2473
        %3498 = vst [vmem:[%s137 + $0x8f0] sm:$0xff] %v2474
        %3499 = vst [vmem:[%s137 + $0x8f8] sm:$0xff] %v2475
        %3500 = vst [vmem:[%s137 + $0x900] sm:$0xff] %v2476
        %3501 = vst [vmem:[%s137 + $0x908] sm:$0xff] %v2477
        %3502 = vst [vmem:[%s137 + $0x910] sm:$0xff] %v2478
        %3503 = vst [vmem:[%s137 + $0x918] sm:$0xff] %v2479
        %3504 = vst [vmem:[%s137 + $0x920] sm:$0xff] %v2480
        %3505 = vst [vmem:[%s137 + $0x928] sm:$0xff] %v2481
        %3506 = vst [vmem:[%s137 + $0x930] sm:$0xff] %v2482
        %3507 = vst [vmem:[%s137 + $0x938] sm:$0xff] %v2483
        %3508 = vst [vmem:[%s137 + $0x940] sm:$0xff] %v2484
        %3509 = vst [vmem:[%s137 + $0x948] sm:$0xff] %v2485
        %3510 = vst [vmem:[%s137 + $0x950] sm:$0xff] %v2486
        %3511 = vst [vmem:[%s137 + $0x958] sm:$0xff] %v2487
        %3512 = vst [vmem:[%s137 + $0x960] sm:$0xff] %v2488
        %3513 = vst [vmem:[%s137 + $0x968] sm:$0xff] %v2489
        %3514 = vst [vmem:[%s137 + $0x970] sm:$0xff] %v2490
        %3515 = vst [vmem:[%s137 + $0x978] sm:$0xff] %v2491
        %3516 = vst [vmem:[%s137 + $0x980] sm:$0xff] %v2492
        %3517 = vst [vmem:[%s137 + $0x988] sm:$0xff] %v2493
        %3518 = vst [vmem:[%s137 + $0x990] sm:$0xff] %v2494
        %3519 = vst [vmem:[%s137 + $0x998] sm:$0xff] %v2495
        %3520 = vst [vmem:[%s137 + $0x9a0] sm:$0xff] %v2496
        %3521 = vst [vmem:[%s137 + $0x9a8] sm:$0xff] %v2497
        %3522 = vst [vmem:[%s137 + $0x9b0] sm:$0xff] %v2498
        %3523 = vst [vmem:[%s137 + $0x9b8] sm:$0xff] %v2499
        %3524 = vst [vmem:[%s137 + $0x9c0] sm:$0xff] %v2500
        %3525 = vst [vmem:[%s137 + $0x9c8] sm:$0xff] %v2501
        %3526 = vst [vmem:[%s137 + $0x9d0] sm:$0xff] %v2502
        %3527 = vst [vmem:[%s137 + $0x9d8] sm:$0xff] %v2503
        %3528 = vst [vmem:[%s137 + $0x9e0] sm:$0xff] %v2504
        %3529 = vst [vmem:[%s137 + $0x9e8] sm:$0xff] %v2505
        %3530 = vst [vmem:[%s137 + $0x9f0] sm:$0xff] %v2506
        %3531 = vst [vmem:[%s137 + $0x9f8] sm:$0xff] %v2507
        %3532 = vst [vmem:[%s137 + $0xa00] sm:$0xff] %v2508
        %3533 = vst [vmem:[%s137 + $0xa08] sm:$0xff] %v2509
        %3534 = vst [vmem:[%s137 + $0xa10] sm:$0xff] %v2510
        %3535 = vst [vmem:[%s137 + $0xa18] sm:$0xff] %v2511
        %3536 = vst [vmem:[%s137 + $0xa20] sm:$0xff] %v2512
        %3537 = vst [vmem:[%s137 + $0xa28] sm:$0xff] %v2513
        %3538 = vst [vmem:[%s137 + $0xa30] sm:$0xff] %v2514
        %3539 = vst [vmem:[%s137 + $0xa38] sm:$0xff] %v2515
        %3540 = vst [vmem:[%s137 + $0xa40] sm:$0xff] %v2516
        %3541 = vst [vmem:[%s137 + $0xa48] sm:$0xff] %v2517
        %3542 = vst [vmem:[%s137 + $0xa50] sm:$0xff] %v2518
        %3543 = vst [vmem:[%s137 + $0xa58] sm:$0xff] %v2519
        %3544 = vst [vmem:[%s137 + $0xa60] sm:$0xff] %v2520
        %3545 = vst [vmem:[%s137 + $0xa68] sm:$0xff] %v2521
        %3546 = vst [vmem:[%s137 + $0xa70] sm:$0xff] %v2522
        %3547 = vst [vmem:[%s137 + $0xa78] sm:$0xff] %v2523
        %3548 = vst [vmem:[%s137 + $0xa80] sm:$0xff] %v2524
        %3549 = vst [vmem:[%s137 + $0xa88] sm:$0xff] %v2525
        %3550 = vst [vmem:[%s137 + $0xa90] sm:$0xff] %v2526
        %3551 = vst [vmem:[%s137 + $0xa98] sm:$0xff] %v2527
        %3552 = vst [vmem:[%s137 + $0xaa0] sm:$0xff] %v2528
        %3553 = vst [vmem:[%s137 + $0xaa8] sm:$0xff] %v2529
        %3554 = vst [vmem:[%s137 + $0xab0] sm:$0xff] %v2530
        %3555 = vst [vmem:[%s137 + $0xab8] sm:$0xff] %v2531
        %3556 = vst [vmem:[%s137 + $0xac0] sm:$0xff] %v2532
        %3557 = vst [vmem:[%s137 + $0xac8] sm:$0xff] %v2533
        %3558 = vst [vmem:[%s137 + $0xad0] sm:$0xff] %v2534
        %3559 = vst [vmem:[%s137 + $0xad8] sm:$0xff] %v2535
        %3560 = vst [vmem:[%s137 + $0xae0] sm:$0xff] %v2536
        %3561 = vst [vmem:[%s137 + $0xae8] sm:$0xff] %v2537
        %3562 = vst [vmem:[%s137 + $0xaf0] sm:$0xff] %v2538
        %3563 = vst [vmem:[%s137 + $0xaf8] sm:$0xff] %v2539
        %3564 = vst [vmem:[%s137 + $0xb00] sm:$0xff] %v2540
        %3565 = vst [vmem:[%s137 + $0xb08] sm:$0xff] %v2541
        %3566 = vst [vmem:[%s137 + $0xb10] sm:$0xff] %v2542
        %3567 = vst [vmem:[%s137 + $0xb18] sm:$0xff] %v2543
        %3568 = vst [vmem:[%s137 + $0xb20] sm:$0xff] %v2544
        %3569 = vst [vmem:[%s137 + $0xb28] sm:$0xff] %v2545
        %3570 = vst [vmem:[%s137 + $0xb30] sm:$0xff] %v2546
        %3571 = vst [vmem:[%s137 + $0xb38] sm:$0xff] %v2547
        %3572 = vst [vmem:[%s137 + $0xb40] sm:$0xff] %v2548
        %3573 = vst [vmem:[%s137 + $0xb48] sm:$0xff] %v2549
        %3574 = vst [vmem:[%s137 + $0xb50] sm:$0xff] %v2550
        %3575 = vst [vmem:[%s137 + $0xb58] sm:$0xff] %v2551
        %3576 = vst [vmem:[%s137 + $0xb60] sm:$0xff] %v2552
        %3577 = vst [vmem:[%s137 + $0xb68] sm:$0xff] %v2553
        %3578 = vst [vmem:[%s137 + $0xb70] sm:$0xff] %v2554
        %3579 = vst [vmem:[%s137 + $0xb78] sm:$0xff] %v2555
        %3580 = vst [vmem:[%s137 + $0xb80] sm:$0xff] %v2556
        %3581 = vst [vmem:[%s137 + $0xb88] sm:$0xff] %v2557
        %3582 = vst [vmem:[%s137 + $0xb90] sm:$0xff] %v2558
        %3583 = vst [vmem:[%s137 + $0xb98] sm:$0xff] %v2559
        %3584 = vst [vmem:[%s137 + $0xba0] sm:$0xff] %v2560
        %3585 = vst [vmem:[%s137 + $0xba8] sm:$0xff] %v2561
        %3586 = vst [vmem:[%s137 + $0xbb0] sm:$0xff] %v2562
        %3587 = vst [vmem:[%s137 + $0xbb8] sm:$0xff] %v2563
        %3588 = vst [vmem:[%s137 + $0xbc0] sm:$0xff] %v2564
        %3589 = vst [vmem:[%s137 + $0xbc8] sm:$0xff] %v2565
        %3590 = vst [vmem:[%s137 + $0xbd0] sm:$0xff] %v2566
        %3591 = vst [vmem:[%s137 + $0xbd8] sm:$0xff] %v2567
        %3592 = vst [vmem:[%s137 + $0xbe0] sm:$0xff] %v2568
        %3593 = vst [vmem:[%s137 + $0xbe8] sm:$0xff] %v2569
        %3594 = vst [vmem:[%s137 + $0xbf0] sm:$0xff] %v2570
        %3595 = vst [vmem:[%s137 + $0xbf8] sm:$0xff] %v2571
        %3596 = vst [vmem:[%s137 + $0xc00] sm:$0xff] %v2572
        %3597 = vst [vmem:[%s137 + $0xc08] sm:$0xff] %v2573
        %3598 = vst [vmem:[%s137 + $0xc10] sm:$0xff] %v2574
        %3599 = vst [vmem:[%s137 + $0xc18] sm:$0xff] %v2575
        %3600 = vst [vmem:[%s137 + $0xc20] sm:$0xff] %v2576
        %3601 = vst [vmem:[%s137 + $0xc28] sm:$0xff] %v2577
        %3602 = vst [vmem:[%s137 + $0xc30] sm:$0xff] %v2578
        %3603 = vst [vmem:[%s137 + $0xc38] sm:$0xff] %v2579
        %3604 = vst [vmem:[%s137 + $0xc40] sm:$0xff] %v2580
        %3605 = vst [vmem:[%s137 + $0xc48] sm:$0xff] %v2581
        %3606 = vst [vmem:[%s137 + $0xc50] sm:$0xff] %v2582
        %3607 = vst [vmem:[%s137 + $0xc58] sm:$0xff] %v2583
        %3608 = vst [vmem:[%s137 + $0xc60] sm:$0xff] %v2584
        %3609 = vst [vmem:[%s137 + $0xc68] sm:$0xff] %v2585
        %3610 = vst [vmem:[%s137 + $0xc70] sm:$0xff] %v2586
        %3611 = vst [vmem:[%s137 + $0xc78] sm:$0xff] %v2587
        %3612 = vst [vmem:[%s137 + $0xc80] sm:$0xff] %v2588
        %3613 = vst [vmem:[%s137 + $0xc88] sm:$0xff] %v2589
        %3614 = vst [vmem:[%s137 + $0xc90] sm:$0xff] %v2590
        %3615 = vst [vmem:[%s137 + $0xc98] sm:$0xff] %v2591
        %3616 = vst [vmem:[%s137 + $0xca0] sm:$0xff] %v2592
        %3617 = vst [vmem:[%s137 + $0xca8] sm:$0xff] %v2593
        %3618 = vst [vmem:[%s137 + $0xcb0] sm:$0xff] %v2594
        %3619 = vst [vmem:[%s137 + $0xcb8] sm:$0xff] %v2595
        %3620 = vst [vmem:[%s137 + $0xcc0] sm:$0xff] %v2596
        %3621 = vst [vmem:[%s137 + $0xcc8] sm:$0xff] %v2597
        %3622 = vst [vmem:[%s137 + $0xcd0] sm:$0xff] %v2598
        %3623 = vst [vmem:[%s137 + $0xcd8] sm:$0xff] %v2599
        %3624 = vst [vmem:[%s137 + $0xce0] sm:$0xff] %v2600
        %3625 = vst [vmem:[%s137 + $0xce8] sm:$0xff] %v2601
        %3626 = vst [vmem:[%s137 + $0xcf0] sm:$0xff] %v2602
        %3627 = vst [vmem:[%s137 + $0xcf8] sm:$0xff] %v2603
        %3628 = vst [vmem:[%s137 + $0xd00] sm:$0xff] %v2604
        %3629 = vst [vmem:[%s137 + $0xd08] sm:$0xff] %v2605
        %3630 = vst [vmem:[%s137 + $0xd10] sm:$0xff] %v2606
        %3631 = vst [vmem:[%s137 + $0xd18] sm:$0xff] %v2607
        %3632 = vst [vmem:[%s137 + $0xd20] sm:$0xff] %v2608
        %3633 = vst [vmem:[%s137 + $0xd28] sm:$0xff] %v2609
        %3634 = vst [vmem:[%s137 + $0xd30] sm:$0xff] %v2610
        %3635 = vst [vmem:[%s137 + $0xd38] sm:$0xff] %v2611
        %3636 = vst [vmem:[%s137 + $0xd40] sm:$0xff] %v2612
        %3637 = vst [vmem:[%s137 + $0xd48] sm:$0xff] %v2613
        %3638 = vst [vmem:[%s137 + $0xd50] sm:$0xff] %v2614
        %3639 = vst [vmem:[%s137 + $0xd58] sm:$0xff] %v2615
        %3640 = vst [vmem:[%s137 + $0xd60] sm:$0xff] %v2616
        %3641 = vst [vmem:[%s137 + $0xd68] sm:$0xff] %v2617
        %3642 = vst [vmem:[%s137 + $0xd70] sm:$0xff] %v2618
        %3643 = vst [vmem:[%s137 + $0xd78] sm:$0xff] %v2619
        %3644 = vst [vmem:[%s137 + $0xd80] sm:$0xff] %v2620
        %3645 = vst [vmem:[%s137 + $0xd88] sm:$0xff] %v2621
        %3646 = vst [vmem:[%s137 + $0xd90] sm:$0xff] %v2622
        %3647 = vst [vmem:[%s137 + $0xd98] sm:$0xff] %v2623
        %3648 = vst [vmem:[%s137 + $0xda0] sm:$0xff] %v2624
        %3649 = vst [vmem:[%s137 + $0xda8] sm:$0xff] %v2625
        %3650 = vst [vmem:[%s137 + $0xdb0] sm:$0xff] %v2626
        %3651 = vst [vmem:[%s137 + $0xdb8] sm:$0xff] %v2627
        %3652 = vst [vmem:[%s137 + $0xdc0] sm:$0xff] %v2628
        %3653 = vst [vmem:[%s137 + $0xdc8] sm:$0xff] %v2629
        %3654 = vst [vmem:[%s137 + $0xdd0] sm:$0xff] %v2630
        %3655 = vst [vmem:[%s137 + $0xdd8] sm:$0xff] %v2631
        %3656 = vst [vmem:[%s137 + $0xde0] sm:$0xff] %v2632
        %3657 = vst [vmem:[%s137 + $0xde8] sm:$0xff] %v2633
        %3658 = vst [vmem:[%s137 + $0xdf0] sm:$0xff] %v2634
        %3659 = vst [vmem:[%s137 + $0xdf8] sm:$0xff] %v2635
        %3660 = vst [vmem:[%s137 + $0xe00] sm:$0xff] %v2636
        %3661 = vst [vmem:[%s137 + $0xe08] sm:$0xff] %v2637
        %3662 = vst [vmem:[%s137 + $0xe10] sm:$0xff] %v2638
        %3663 = vst [vmem:[%s137 + $0xe18] sm:$0xff] %v2639
        %3664 = vst [vmem:[%s137 + $0xe20] sm:$0xff] %v2640
        %3665 = vst [vmem:[%s137 + $0xe28] sm:$0xff] %v2641
        %3666 = vst [vmem:[%s137 + $0xe30] sm:$0xff] %v2642
        %3667 = vst [vmem:[%s137 + $0xe38] sm:$0xff] %v2643
        %3668 = vst [vmem:[%s137 + $0xe40] sm:$0xff] %v2644
        %3669 = vst [vmem:[%s137 + $0xe48] sm:$0xff] %v2645
        %3670 = vst [vmem:[%s137 + $0xe50] sm:$0xff] %v2646
        %3671 = vst [vmem:[%s137 + $0xe58] sm:$0xff] %v2647
        %3672 = vst [vmem:[%s137 + $0xe60] sm:$0xff] %v2648
        %3673 = vst [vmem:[%s137 + $0xe68] sm:$0xff] %v2649
        %3674 = vst [vmem:[%s137 + $0xe70] sm:$0xff] %v2650
        %3675 = vst [vmem:[%s137 + $0xe78] sm:$0xff] %v2651
        %3676 = vst [vmem:[%s137 + $0xe80] sm:$0xff] %v2652
        %3677 = vst [vmem:[%s137 + $0xe88] sm:$0xff] %v2653
        %3678 = vst [vmem:[%s137 + $0xe90] sm:$0xff] %v2654
        %3679 = vst [vmem:[%s137 + $0xe98] sm:$0xff] %v2655
        %3680 = vst [vmem:[%s137 + $0xea0] sm:$0xff] %v2656
        %3681 = vst [vmem:[%s137 + $0xea8] sm:$0xff] %v2657
        %3682 = vst [vmem:[%s137 + $0xeb0] sm:$0xff] %v2658
        %3683 = vst [vmem:[%s137 + $0xeb8] sm:$0xff] %v2659
        %3684 = vst [vmem:[%s137 + $0xec0] sm:$0xff] %v2660
        %3685 = vst [vmem:[%s137 + $0xec8] sm:$0xff] %v2661
        %3686 = vst [vmem:[%s137 + $0xed0] sm:$0xff] %v2662
        %3687 = vst [vmem:[%s137 + $0xed8] sm:$0xff] %v2663
        %3688 = vst [vmem:[%s137 + $0xee0] sm:$0xff] %v2664
        %3689 = vst [vmem:[%s137 + $0xee8] sm:$0xff] %v2665
        %3690 = vst [vmem:[%s137 + $0xef0] sm:$0xff] %v2666
        %3691 = vst [vmem:[%s137 + $0xef8] sm:$0xff] %v2667
        %3692 = vst [vmem:[%s137 + $0xf00] sm:$0xff] %v2668
        %3693 = vst [vmem:[%s137 + $0xf08] sm:$0xff] %v2669
        %3694 = vst [vmem:[%s137 + $0xf10] sm:$0xff] %v2670
        %3695 = vst [vmem:[%s137 + $0xf18] sm:$0xff] %v2671
        %3696 = vst [vmem:[%s137 + $0xf20] sm:$0xff] %v2672
        %3697 = vst [vmem:[%s137 + $0xf28] sm:$0xff] %v2673
        %3698 = vst [vmem:[%s137 + $0xf30] sm:$0xff] %v2674
        %3699 = vst [vmem:[%s137 + $0xf38] sm:$0xff] %v2675
        %3700 = vst [vmem:[%s137 + $0xf40] sm:$0xff] %v2676
        %3701 = vst [vmem:[%s137 + $0xf48] sm:$0xff] %v2677
        %3702 = vst [vmem:[%s137 + $0xf50] sm:$0xff] %v2678
        %3703 = vst [vmem:[%s137 + $0xf58] sm:$0xff] %v2679
        %3704 = vst [vmem:[%s137 + $0xf60] sm:$0xff] %v2680
        %3705 = vst [vmem:[%s137 + $0xf68] sm:$0xff] %v2681
        %3706 = vst [vmem:[%s137 + $0xf70] sm:$0xff] %v2682
        %3707 = vst [vmem:[%s137 + $0xf78] sm:$0xff] %v2683
        %3708 = vst [vmem:[%s137 + $0xf80] sm:$0xff] %v2684
        %3709 = vst [vmem:[%s137 + $0xf88] sm:$0xff] %v2685
        %3710 = vst [vmem:[%s137 + $0xf90] sm:$0xff] %v2686
        %3711 = vst [vmem:[%s137 + $0xf98] sm:$0xff] %v2687
        %3712 = vst [vmem:[%s137 + $0xfa0] sm:$0xff] %v2688
        %3713 = vst [vmem:[%s137 + $0xfa8] sm:$0xff] %v2689
        %3714 = vst [vmem:[%s137 + $0xfb0] sm:$0xff] %v2690
        %3715 = vst [vmem:[%s137 + $0xfb8] sm:$0xff] %v2691
        %3716 = vst [vmem:[%s137 + $0xfc0] sm:$0xff] %v2692
        %3717 = vst [vmem:[%s137 + $0xfc8] sm:$0xff] %v2693
        %3718 = vst [vmem:[%s137 + $0xfd0] sm:$0xff] %v2694
        %3719 = vst [vmem:[%s137 + $0xfd8] sm:$0xff] %v2695
        %3720 = vst [vmem:[%s137 + $0xfe0] sm:$0xff] %v2696
        %3721 = vst [vmem:[%s137 + $0xfe8] sm:$0xff] %v2697
        %3722 = vst [vmem:[%s137 + $0xff0] sm:$0xff] %v2698
        %3723 = vst [vmem:[%s137 + $0xff8] sm:$0xff] %v2699
        %3724 = vst [vmem:[%s137 + $0x1000] sm:$0xff] %v2700
        %3725 = vst [vmem:[%s137 + $0x1008] sm:$0xff] %v2701
        %3726 = vst [vmem:[%s137 + $0x1010] sm:$0xff] %v2702
        %3727 = vst [vmem:[%s137 + $0x1018] sm:$0xff] %v2703
        %3728 = vst [vmem:[%s137 + $0x1020] sm:$0xff] %v2704
        %3729 = vst [vmem:[%s137 + $0x1028] sm:$0xff] %v2705
        %3730 = vst [vmem:[%s137 + $0x1030] sm:$0xff] %v2706
        %3731 = vst [vmem:[%s137 + $0x1038] sm:$0xff] %v2707
        %3732 = vst [vmem:[%s137 + $0x1040] sm:$0xff] %v2708
        %3733 = vst [vmem:[%s137 + $0x1048] sm:$0xff] %v2709
        %3734 = vst [vmem:[%s137 + $0x1050] sm:$0xff] %v2710
        %3735 = vst [vmem:[%s137 + $0x1058] sm:$0xff] %v2711
        %3736 = vst [vmem:[%s137 + $0x1060] sm:$0xff] %v2712
        %3737 = vst [vmem:[%s137 + $0x1068] sm:$0xff] %v2713
        %3738 = vst [vmem:[%s137 + $0x1070] sm:$0xff] %v2714
        %3739 = vst [vmem:[%s137 + $0x1078] sm:$0xff] %v2715
        %3740 = vst [vmem:[%s137 + $0x1080] sm:$0xff] %v2716
        %3741 = vst [vmem:[%s137 + $0x1088] sm:$0xff] %v2717
        %3742 = vst [vmem:[%s137 + $0x1090] sm:$0xff] %v2718
        %3743 = vst [vmem:[%s137 + $0x1098] sm:$0xff] %v2719
        %3744 = vst [vmem:[%s137 + $0x10a0] sm:$0xff] %v2720
        %3745 = vst [vmem:[%s137 + $0x10a8] sm:$0xff] %v2721
        %3746 = vst [vmem:[%s137 + $0x10b0] sm:$0xff] %v2722
        %3747 = vst [vmem:[%s137 + $0x10b8] sm:$0xff] %v2723
        %3748 = vst [vmem:[%s137 + $0x10c0] sm:$0xff] %v2724
        %3749 = vst [vmem:[%s137 + $0x10c8] sm:$0xff] %v2725
        %3750 = vst [vmem:[%s137 + $0x10d0] sm:$0xff] %v2726
        %3751 = vst [vmem:[%s137 + $0x10d8] sm:$0xff] %v2727
        %3752 = vst [vmem:[%s137 + $0x10e0] sm:$0xff] %v2728
        %3753 = vst [vmem:[%s137 + $0x10e8] sm:$0xff] %v2729
        %3754 = vst [vmem:[%s137 + $0x10f0] sm:$0xff] %v2730
        %3755 = vst [vmem:[%s137 + $0x10f8] sm:$0xff] %v2731
        %3756 = vst [vmem:[%s137 + $0x1100] sm:$0xff] %v2732
        %3757 = vst [vmem:[%s137 + $0x1108] sm:$0xff] %v2733
        %3758 = vst [vmem:[%s137 + $0x1110] sm:$0xff] %v2734
        %3759 = vst [vmem:[%s137 + $0x1118] sm:$0xff] %v2735
        %3760 = vst [vmem:[%s137 + $0x1120] sm:$0xff] %v2736
        %3761 = vst [vmem:[%s137 + $0x1128] sm:$0xff] %v2737
        %3762 = vst [vmem:[%s137 + $0x1130] sm:$0xff] %v2738
        %3763 = vst [vmem:[%s137 + $0x1138] sm:$0xff] %v2739
        %3764 = vst [vmem:[%s137 + $0x1140] sm:$0xff] %v2740
        %3765 = vst [vmem:[%s137 + $0x1148] sm:$0xff] %v2741
        %3766 = vst [vmem:[%s137 + $0x1150] sm:$0xff] %v2742
        %3767 = vst [vmem:[%s137 + $0x1158] sm:$0xff] %v2743
        %3768 = vst [vmem:[%s137 + $0x1160] sm:$0xff] %v2744
        %3769 = vst [vmem:[%s137 + $0x1168] sm:$0xff] %v2745
        %3770 = vst [vmem:[%s137 + $0x1170] sm:$0xff] %v2746
        %3771 = vst [vmem:[%s137 + $0x1178] sm:$0xff] %v2747
        %3772 = vst [vmem:[%s137 + $0x1180] sm:$0xff] %v2748
        %3773 = vst [vmem:[%s137 + $0x1188] sm:$0xff] %v2749
        %3774 = vst [vmem:[%s137 + $0x1190] sm:$0xff] %v2750
        %3775 = vst [vmem:[%s137 + $0x1198] sm:$0xff] %v2751
        %3776 = vst [vmem:[%s137 + $0x11a0] sm:$0xff] %v2752
        %3777 = vst [vmem:[%s137 + $0x11a8] sm:$0xff] %v2753
        %3778 = vst [vmem:[%s137 + $0x11b0] sm:$0xff] %v2754
        %3779 = vst [vmem:[%s137 + $0x11b8] sm:$0xff] %v2755
        %3780 = vst [vmem:[%s137 + $0x11c0] sm:$0xff] %v2756
        %3781 = vst [vmem:[%s137 + $0x11c8] sm:$0xff] %v2757
        %3782 = vst [vmem:[%s137 + $0x11d0] sm:$0xff] %v2758
        %3783 = vst [vmem:[%s137 + $0x11d8] sm:$0xff] %v2759
        %3784 = vst [vmem:[%s137 + $0x11e0] sm:$0xff] %v2760
        %3785 = vst [vmem:[%s137 + $0x11e8] sm:$0xff] %v2761
        %3786 = vst [vmem:[%s137 + $0x11f0] sm:$0xff] %v2762
        %3787 = vst [vmem:[%s137 + $0x11f8] sm:$0xff] %v2763
        %3788 = vst [vmem:[%s137 + $0x1200] sm:$0xff] %v2764
        %3789 = vst [vmem:[%s137 + $0x1208] sm:$0xff] %v2765
        %3790 = vst [vmem:[%s137 + $0x1210] sm:$0xff] %v2766
        %3791 = vst [vmem:[%s137 + $0x1218] sm:$0xff] %v2767
        %3792 = vst [vmem:[%s137 + $0x1220] sm:$0xff] %v2768
        %3793 = vst [vmem:[%s137 + $0x1228] sm:$0xff] %v2769
        %3794 = vst [vmem:[%s137 + $0x1230] sm:$0xff] %v2770
        %3795 = vst [vmem:[%s137 + $0x1238] sm:$0xff] %v2771
        %3796 = vst [vmem:[%s137 + $0x1240] sm:$0xff] %v2772
        %3797 = vst [vmem:[%s137 + $0x1248] sm:$0xff] %v2773
        %3798 = vst [vmem:[%s137 + $0x1250] sm:$0xff] %v2774
        %3799 = vst [vmem:[%s137 + $0x1258] sm:$0xff] %v2775
        %3800 = vst [vmem:[%s137 + $0x1260] sm:$0xff] %v2776
        %3801 = vst [vmem:[%s137 + $0x1268] sm:$0xff] %v2777
        %3802 = vst [vmem:[%s137 + $0x1270] sm:$0xff] %v2778
        %3803 = vst [vmem:[%s137 + $0x1278] sm:$0xff] %v2779
        %3804 = vst [vmem:[%s137 + $0x1280] sm:$0xff] %v2780
        %3805 = vst [vmem:[%s137 + $0x1288] sm:$0xff] %v2781
        %3806 = vst [vmem:[%s137 + $0x1290] sm:$0xff] %v2782
        %3807 = vst [vmem:[%s137 + $0x1298] sm:$0xff] %v2783
        %3808 = vst [vmem:[%s137 + $0x12a0] sm:$0xff] %v2784
        %3809 = vst [vmem:[%s137 + $0x12a8] sm:$0xff] %v2785
        %3810 = vst [vmem:[%s137 + $0x12b0] sm:$0xff] %v2786
        %3811 = vst [vmem:[%s137 + $0x12b8] sm:$0xff] %v2787
        %3812 = vst [vmem:[%s137 + $0x12c0] sm:$0xff] %v2788
        %3813 = vst [vmem:[%s137 + $0x12c8] sm:$0xff] %v2789
        %3814 = vst [vmem:[%s137 + $0x12d0] sm:$0xff] %v2790
        %3815 = vst [vmem:[%s137 + $0x12d8] sm:$0xff] %v2791
        %3816 = vst [vmem:[%s137 + $0x12e0] sm:$0xff] %v2792
        %3817 = vst [vmem:[%s137 + $0x12e8] sm:$0xff] %v2793
        %3818 = vst [vmem:[%s137 + $0x12f0] sm:$0xff] %v2794
        %3819 = vst [vmem:[%s137 + $0x12f8] sm:$0xff] %v2795
        %3820 = vst [vmem:[%s137 + $0x1300] sm:$0xff] %v2796
        %3821 = vst [vmem:[%s137 + $0x1308] sm:$0xff] %v2797
        %3822 = vst [vmem:[%s137 + $0x1310] sm:$0xff] %v2798
        %3823 = vst [vmem:[%s137 + $0x1318] sm:$0xff] %v2799
        %3824 = vst [vmem:[%s137 + $0x1320] sm:$0xff] %v2800
        %3825 = vst [vmem:[%s137 + $0x1328] sm:$0xff] %v2801
        %3826 = vst [vmem:[%s137 + $0x1330] sm:$0xff] %v2802
        %3827 = vst [vmem:[%s137 + $0x1338] sm:$0xff] %v2803
        %3828 = vst [vmem:[%s137 + $0x1340] sm:$0xff] %v2804
        %3829 = vst [vmem:[%s137 + $0x1348] sm:$0xff] %v2805
        %3830 = vst [vmem:[%s137 + $0x1350] sm:$0xff] %v2806
        %3831 = vst [vmem:[%s137 + $0x1358] sm:$0xff] %v2807
        %3832 = vst [vmem:[%s137 + $0x1360] sm:$0xff] %v2808
        %3833 = vst [vmem:[%s137 + $0x1368] sm:$0xff] %v2809
        %3834 = vst [vmem:[%s137 + $0x1370] sm:$0xff] %v2810
        %3835 = vst [vmem:[%s137 + $0x1378] sm:$0xff] %v2811
        %3836 = vst [vmem:[%s137 + $0x1380] sm:$0xff] %v2812
        %3837 = vst [vmem:[%s137 + $0x1388] sm:$0xff] %v2813
        %3838 = vst [vmem:[%s137 + $0x1390] sm:$0xff] %v2814
        %3839 = vst [vmem:[%s137 + $0x1398] sm:$0xff] %v2815
        %3840 = vst [vmem:[%s137 + $0x13a0] sm:$0xff] %v2816
        %3841 = vst [vmem:[%s137 + $0x13a8] sm:$0xff] %v2817
        %3842 = vst [vmem:[%s137 + $0x13b0] sm:$0xff] %v2818
        %3843 = vst [vmem:[%s137 + $0x13b8] sm:$0xff] %v2819
        %3844 = vst [vmem:[%s137 + $0x13c0] sm:$0xff] %v2820
        %3845 = vst [vmem:[%s137 + $0x13c8] sm:$0xff] %v2821
        %3846 = vst [vmem:[%s137 + $0x13d0] sm:$0xff] %v2822
        %3847 = vst [vmem:[%s137 + $0x13d8] sm:$0xff] %v2823
        %3848 = vst [vmem:[%s137 + $0x13e0] sm:$0xff] %v2824
        %3849 = vst [vmem:[%s137 + $0x13e8] sm:$0xff] %v2825
        %3850 = vst [vmem:[%s137 + $0x13f0] sm:$0xff] %v2826
        %3851 = vst [vmem:[%s137 + $0x13f8] sm:$0xff] %v2827
        %3852 = vst [vmem:[%s137 + $0x1400] sm:$0xff] %v2828
        %3853 = vst [vmem:[%s137 + $0x1408] sm:$0xff] %v2829
        %3854 = vst [vmem:[%s137 + $0x1410] sm:$0xff] %v2830
        %3855 = vst [vmem:[%s137 + $0x1418] sm:$0xff] %v2831
        %3856 = vst [vmem:[%s137 + $0x1420] sm:$0xff] %v2832
        %3857 = vst [vmem:[%s137 + $0x1428] sm:$0xff] %v2833
        %3858 = vst [vmem:[%s137 + $0x1430] sm:$0xff] %v2834
        %3859 = vst [vmem:[%s137 + $0x1438] sm:$0xff] %v2835
        %3860 = vst [vmem:[%s137 + $0x1440] sm:$0xff] %v2836
        %3861 = vst [vmem:[%s137 + $0x1448] sm:$0xff] %v2837
        %3862 = vst [vmem:[%s137 + $0x1450] sm:$0xff] %v2838
        %3863 = vst [vmem:[%s137 + $0x1458] sm:$0xff] %v2839
        %3864 = vst [vmem:[%s137 + $0x1460] sm:$0xff] %v2840
        %3865 = vst [vmem:[%s137 + $0x1468] sm:$0xff] %v2841
        %3866 = vst [vmem:[%s137 + $0x1470] sm:$0xff] %v2842
        %3867 = vst [vmem:[%s137 + $0x1478] sm:$0xff] %v2843
        %3868 = vst [vmem:[%s137 + $0x1480] sm:$0xff] %v2844
        %3869 = vst [vmem:[%s137 + $0x1488] sm:$0xff] %v2845
        %3870 = vst [vmem:[%s137 + $0x1490] sm:$0xff] %v2846
        %3871 = vst [vmem:[%s137 + $0x1498] sm:$0xff] %v2847
        %3872 = vst [vmem:[%s137 + $0x14a0] sm:$0xff] %v2848
        %3873 = vst [vmem:[%s137 + $0x14a8] sm:$0xff] %v2849
        %3874 = vst [vmem:[%s137 + $0x14b0] sm:$0xff] %v2850
        %3875 = vst [vmem:[%s137 + $0x14b8] sm:$0xff] %v2851
        %3876 = vst [vmem:[%s137 + $0x14c0] sm:$0xff] %v2852
        %3877 = vst [vmem:[%s137 + $0x14c8] sm:$0xff] %v2853
        %3878 = vst [vmem:[%s137 + $0x14d0] sm:$0xff] %v2854
        %3879 = vst [vmem:[%s137 + $0x14d8] sm:$0xff] %v2855
        %3880 = vst [vmem:[%s137 + $0x14e0] sm:$0xff] %v2856
        %3881 = vst [vmem:[%s137 + $0x14e8] sm:$0xff] %v2857
        %3882 = vst [vmem:[%s137 + $0x14f0] sm:$0xff] %v2858
        %3883 = vst [vmem:[%s137 + $0x14f8] sm:$0xff] %v2859
        %3884 = vst [vmem:[%s137 + $0x1500] sm:$0xff] %v2860
        %3885 = vst [vmem:[%s137 + $0x1508] sm:$0xff] %v2861
        %3886 = vst [vmem:[%s137 + $0x1510] sm:$0xff] %v2862
        %3887 = vst [vmem:[%s137 + $0x1518] sm:$0xff] %v2863
        %3888 = vst [vmem:[%s137 + $0x1520] sm:$0xff] %v2864
        %3889 = vst [vmem:[%s137 + $0x1528] sm:$0xff] %v2865
        %3890 = vst [vmem:[%s137 + $0x1530] sm:$0xff] %v2866
        %3891 = vst [vmem:[%s137 + $0x1538] sm:$0xff] %v2867
        %3892 = vst [vmem:[%s137 + $0x1540] sm:$0xff] %v2868
        %3893 = vst [vmem:[%s137 + $0x1548] sm:$0xff] %v2869
        %3894 = vst [vmem:[%s137 + $0x1550] sm:$0xff] %v2870
        %3895 = vst [vmem:[%s137 + $0x1558] sm:$0xff] %v2871
        %3896 = vst [vmem:[%s137 + $0x1560] sm:$0xff] %v2872
        %3897 = vst [vmem:[%s137 + $0x1568] sm:$0xff] %v2873
        %3898 = vst [vmem:[%s137 + $0x1570] sm:$0xff] %v2874
        %3899 = vst [vmem:[%s137 + $0x1578] sm:$0xff] %v2875
        %3900 = vst [vmem:[%s137 + $0x1580] sm:$0xff] %v2876
        %3901 = vst [vmem:[%s137 + $0x1588] sm:$0xff] %v2877
        %3902 = vst [vmem:[%s137 + $0x1590] sm:$0xff] %v2878
        %3903 = vst [vmem:[%s137 + $0x1598] sm:$0xff] %v2879
        %3904 = vst [vmem:[%s137 + $0x15a0] sm:$0xff] %v2880
        %3905 = vst [vmem:[%s137 + $0x15a8] sm:$0xff] %v2881
        %3906 = vst [vmem:[%s137 + $0x15b0] sm:$0xff] %v2882
        %3907 = vst [vmem:[%s137 + $0x15b8] sm:$0xff] %v2883
        %3908 = vst [vmem:[%s137 + $0x15c0] sm:$0xff] %v2884
        %3909 = vst [vmem:[%s137 + $0x15c8] sm:$0xff] %v2885
        %3910 = vst [vmem:[%s137 + $0x15d0] sm:$0xff] %v2886
        %3911 = vst [vmem:[%s137 + $0x15d8] sm:$0xff] %v2887
        %3912 = vst [vmem:[%s137 + $0x15e0] sm:$0xff] %v2888
        %3913 = vst [vmem:[%s137 + $0x15e8] sm:$0xff] %v2889
        %3914 = vst [vmem:[%s137 + $0x15f0] sm:$0xff] %v2890
        %3915 = vst [vmem:[%s137 + $0x15f8] sm:$0xff] %v2891
        %3916 = vst [vmem:[%s137 + $0x1600] sm:$0xff] %v2892
        %3917 = vst [vmem:[%s137 + $0x1608] sm:$0xff] %v2893
        %3918 = vst [vmem:[%s137 + $0x1610] sm:$0xff] %v2894
        %3919 = vst [vmem:[%s137 + $0x1618] sm:$0xff] %v2895
        %3920 = vst [vmem:[%s137 + $0x1620] sm:$0xff] %v2896
        %3921 = vst [vmem:[%s137 + $0x1628] sm:$0xff] %v2897
        %3922 = vst [vmem:[%s137 + $0x1630] sm:$0xff] %v2898
        %3923 = vst [vmem:[%s137 + $0x1638] sm:$0xff] %v2899
        %3924 = vst [vmem:[%s137 + $0x1640] sm:$0xff] %v2900
        %3925 = vst [vmem:[%s137 + $0x1648] sm:$0xff] %v2901
        %3926 = vst [vmem:[%s137 + $0x1650] sm:$0xff] %v2902
        %3927 = vst [vmem:[%s137 + $0x1658] sm:$0xff] %v2903
        %3928 = vst [vmem:[%s137 + $0x1660] sm:$0xff] %v2904
        %3929 = vst [vmem:[%s137 + $0x1668] sm:$0xff] %v2905
        %3930 = vst [vmem:[%s137 + $0x1670] sm:$0xff] %v2906
        %3931 = vst [vmem:[%s137 + $0x1678] sm:$0xff] %v2907
        %3932 = vst [vmem:[%s137 + $0x1680] sm:$0xff] %v2908
        %3933 = vst [vmem:[%s137 + $0x1688] sm:$0xff] %v2909
        %3934 = vst [vmem:[%s137 + $0x1690] sm:$0xff] %v2910
        %3935 = vst [vmem:[%s137 + $0x1698] sm:$0xff] %v2911
        %3936 = vst [vmem:[%s137 + $0x16a0] sm:$0xff] %v2912
        %3937 = vst [vmem:[%s137 + $0x16a8] sm:$0xff] %v2913
        %3938 = vst [vmem:[%s137 + $0x16b0] sm:$0xff] %v2914
        %3939 = vst [vmem:[%s137 + $0x16b8] sm:$0xff] %v2915
        %3940 = vst [vmem:[%s137 + $0x16c0] sm:$0xff] %v2916
        %3941 = vst [vmem:[%s137 + $0x16c8] sm:$0xff] %v2917
        %3942 = vst [vmem:[%s137 + $0x16d0] sm:$0xff] %v2918
        %3943 = vst [vmem:[%s137 + $0x16d8] sm:$0xff] %v2919
        %3944 = vst [vmem:[%s137 + $0x16e0] sm:$0xff] %v2920
        %3945 = vst [vmem:[%s137 + $0x16e8] sm:$0xff] %v2921
        %3946 = vst [vmem:[%s137 + $0x16f0] sm:$0xff] %v2922
        %3947 = vst [vmem:[%s137 + $0x16f8] sm:$0xff] %v2923
        %3948 = vst [vmem:[%s137 + $0x1700] sm:$0xff] %v2924
        %3949 = vst [vmem:[%s137 + $0x1708] sm:$0xff] %v2925
        %3950 = vst [vmem:[%s137 + $0x1710] sm:$0xff] %v2926
        %3951 = vst [vmem:[%s137 + $0x1718] sm:$0xff] %v2927
        %3952 = vst [vmem:[%s137 + $0x1720] sm:$0xff] %v2928
        %3953 = vst [vmem:[%s137 + $0x1728] sm:$0xff] %v2929
        %3954 = vst [vmem:[%s137 + $0x1730] sm:$0xff] %v2930
        %3955 = vst [vmem:[%s137 + $0x1738] sm:$0xff] %v2931
        %3956 = vst [vmem:[%s137 + $0x1740] sm:$0xff] %v2932
        %3957 = vst [vmem:[%s137 + $0x1748] sm:$0xff] %v2933
        %3958 = vst [vmem:[%s137 + $0x1750] sm:$0xff] %v2934
        %3959 = vst [vmem:[%s137 + $0x1758] sm:$0xff] %v2935
        %3960 = vst [vmem:[%s137 + $0x1760] sm:$0xff] %v2936
        %3961 = vst [vmem:[%s137 + $0x1768] sm:$0xff] %v2937
        %3962 = vst [vmem:[%s137 + $0x1770] sm:$0xff] %v2938
        %3963 = vst [vmem:[%s137 + $0x1778] sm:$0xff] %v2939
        %3964 = vst [vmem:[%s137 + $0x1780] sm:$0xff] %v2940
        %3965 = vst [vmem:[%s137 + $0x1788] sm:$0xff] %v2941
        %3966 = vst [vmem:[%s137 + $0x1790] sm:$0xff] %v2942
        %3967 = vst [vmem:[%s137 + $0x1798] sm:$0xff] %v2943
        %3968 = vst [vmem:[%s137 + $0x17a0] sm:$0xff] %v2944
        %3969 = vst [vmem:[%s137 + $0x17a8] sm:$0xff] %v2945
        %3970 = vst [vmem:[%s137 + $0x17b0] sm:$0xff] %v2946
        %3971 = vst [vmem:[%s137 + $0x17b8] sm:$0xff] %v2947
        %3972 = vst [vmem:[%s137 + $0x17c0] sm:$0xff] %v2948
        %3973 = vst [vmem:[%s137 + $0x17c8] sm:$0xff] %v2949
        %3974 = vst [vmem:[%s137 + $0x17d0] sm:$0xff] %v2950
        %3975 = vst [vmem:[%s137 + $0x17d8] sm:$0xff] %v2951
        %3976 = vst [vmem:[%s137 + $0x17e0] sm:$0xff] %v2952
        %3977 = vst [vmem:[%s137 + $0x17e8] sm:$0xff] %v2953
        %3978 = vst [vmem:[%s137 + $0x17f0] sm:$0xff] %v2954
        %3979 = vst [vmem:[%s137 + $0x17f8] sm:$0xff] %v2955
        %3980 = vst [vmem:[%s137 + $0x1800] sm:$0xff] %v2956
        %3981 = vst [vmem:[%s137 + $0x1808] sm:$0xff] %v2957
        %3982 = vst [vmem:[%s137 + $0x1810] sm:$0xff] %v2958
        %3983 = vst [vmem:[%s137 + $0x1818] sm:$0xff] %v2959
        %3984 = vst [vmem:[%s137 + $0x1820] sm:$0xff] %v2960
        %3985 = vst [vmem:[%s137 + $0x1828] sm:$0xff] %v2961
        %3986 = vst [vmem:[%s137 + $0x1830] sm:$0xff] %v2962
        %3987 = vst [vmem:[%s137 + $0x1838] sm:$0xff] %v2963
        %3988 = vst [vmem:[%s137 + $0x1840] sm:$0xff] %v2964
        %3989 = vst [vmem:[%s137 + $0x1848] sm:$0xff] %v2965
        %3990 = vst [vmem:[%s137 + $0x1850] sm:$0xff] %v2966
        %3991 = vst [vmem:[%s137 + $0x1858] sm:$0xff] %v2967
        %3992 = vst [vmem:[%s137 + $0x1860] sm:$0xff] %v2968
        %3993 = vst [vmem:[%s137 + $0x1868] sm:$0xff] %v2969
        %3994 = vst [vmem:[%s137 + $0x1870] sm:$0xff] %v2970
        %3995 = vst [vmem:[%s137 + $0x1878] sm:$0xff] %v2971
        %3996 = vst [vmem:[%s137 + $0x1880] sm:$0xff] %v2972
        %3997 = vst [vmem:[%s137 + $0x1888] sm:$0xff] %v2973
        %3998 = vst [vmem:[%s137 + $0x1890] sm:$0xff] %v2974
        %3999 = vst [vmem:[%s137 + $0x1898] sm:$0xff] %v2975
        %4000 = vst [vmem:[%s137 + $0x18a0] sm:$0xff] %v2976
        %4001 = vst [vmem:[%s137 + $0x18a8] sm:$0xff] %v2977
        %4002 = vst [vmem:[%s137 + $0x18b0] sm:$0xff] %v2978
        %4003 = vst [vmem:[%s137 + $0x18b8] sm:$0xff] %v2979
        %4004 = vst [vmem:[%s137 + $0x18c0] sm:$0xff] %v2980
        %4005 = vst [vmem:[%s137 + $0x18c8] sm:$0xff] %v2981
        %4006 = vst [vmem:[%s137 + $0x18d0] sm:$0xff] %v2982
        %4007 = vst [vmem:[%s137 + $0x18d8] sm:$0xff] %v2983
        %4008 = vst [vmem:[%s137 + $0x18e0] sm:$0xff] %v2984
        %4009 = vst [vmem:[%s137 + $0x18e8] sm:$0xff] %v2985
        %4010 = vst [vmem:[%s137 + $0x18f0] sm:$0xff] %v2986
        %4011 = vst [vmem:[%s137 + $0x18f8] sm:$0xff] %v2987
        %4012 = vst [vmem:[%s137 + $0x1900] sm:$0xff] %v2988
        %4013 = vst [vmem:[%s137 + $0x1908] sm:$0xff] %v2989
        %4014 = vst [vmem:[%s137 + $0x1910] sm:$0xff] %v2990
        %4015 = vst [vmem:[%s137 + $0x1918] sm:$0xff] %v2991
        %4016 = vst [vmem:[%s137 + $0x1920] sm:$0xff] %v2992
        %4017 = vst [vmem:[%s137 + $0x1928] sm:$0xff] %v2993
        %4018 = vst [vmem:[%s137 + $0x1930] sm:$0xff] %v2994
        %4019 = vst [vmem:[%s137 + $0x1938] sm:$0xff] %v2995
        %4020 = vst [vmem:[%s137 + $0x1940] sm:$0xff] %v2996
        %4021 = vst [vmem:[%s137 + $0x1948] sm:$0xff] %v2997
        %4022 = vst [vmem:[%s137 + $0x1950] sm:$0xff] %v2998
        %4023 = vst [vmem:[%s137 + $0x1958] sm:$0xff] %v2999
        %4024 = vst [vmem:[%s137 + $0x1960] sm:$0xff] %v3000
        %4025 = vst [vmem:[%s137 + $0x1968] sm:$0xff] %v3001
        %4026 = vst [vmem:[%s137 + $0x1970] sm:$0xff] %v3002
        %4027 = vst [vmem:[%s137 + $0x1978] sm:$0xff] %v3003
        %4028 = vst [vmem:[%s137 + $0x1980] sm:$0xff] %v3004
        %4029 = vst [vmem:[%s137 + $0x1988] sm:$0xff] %v3005
        %4030 = vst [vmem:[%s137 + $0x1990] sm:$0xff] %v3006
        %4031 = vst [vmem:[%s137 + $0x1998] sm:$0xff] %v3007
        %4032 = vst [vmem:[%s137 + $0x19a0] sm:$0xff] %v3008
        %4033 = vst [vmem:[%s137 + $0x19a8] sm:$0xff] %v3009
        %4034 = vst [vmem:[%s137 + $0x19b0] sm:$0xff] %v3010
        %4035 = vst [vmem:[%s137 + $0x19b8] sm:$0xff] %v3011
        %4036 = vst [vmem:[%s137 + $0x19c0] sm:$0xff] %v3012
        %4037 = vst [vmem:[%s137 + $0x19c8] sm:$0xff] %v3013
        %4038 = vst [vmem:[%s137 + $0x19d0] sm:$0xff] %v3014
        %4039 = vst [vmem:[%s137 + $0x19d8] sm:$0xff] %v3015
        %4040 = vst [vmem:[%s137 + $0x19e0] sm:$0xff] %v3016
        %4041 = vst [vmem:[%s137 + $0x19e8] sm:$0xff] %v3017
        %4042 = vst [vmem:[%s137 + $0x19f0] sm:$0xff] %v3018
        %4043 = vst [vmem:[%s137 + $0x19f8] sm:$0xff] %v3019
        %4044 = vst [vmem:[%s137 + $0x1a00] sm:$0xff] %v3020
        %4045 = vst [vmem:[%s137 + $0x1a08] sm:$0xff] %v3021
        %4046 = vst [vmem:[%s137 + $0x1a10] sm:$0xff] %v3022
        %4047 = vst [vmem:[%s137 + $0x1a18] sm:$0xff] %v3023
        %4048 = vst [vmem:[%s137 + $0x1a20] sm:$0xff] %v3024
        %4049 = vst [vmem:[%s137 + $0x1a28] sm:$0xff] %v3025
        %4050 = vst [vmem:[%s137 + $0x1a30] sm:$0xff] %v3026
        %4051 = vst [vmem:[%s137 + $0x1a38] sm:$0xff] %v3027
        %4052 = vst [vmem:[%s137 + $0x1a40] sm:$0xff] %v3028
        %4053 = vst [vmem:[%s137 + $0x1a48] sm:$0xff] %v3029
        %4054 = vst [vmem:[%s137 + $0x1a50] sm:$0xff] %v3030
        %4055 = vst [vmem:[%s137 + $0x1a58] sm:$0xff] %v3031
        %4056 = vst [vmem:[%s137 + $0x1a60] sm:$0xff] %v3032
        %4057 = vst [vmem:[%s137 + $0x1a68] sm:$0xff] %v3033
        %4058 = vst [vmem:[%s137 + $0x1a70] sm:$0xff] %v3034
        %4059 = vst [vmem:[%s137 + $0x1a78] sm:$0xff] %v3035
        %4060 = vst [vmem:[%s137 + $0x1a80] sm:$0xff] %v3036
        %4061 = vst [vmem:[%s137 + $0x1a88] sm:$0xff] %v3037
        %4062 = vst [vmem:[%s137 + $0x1a90] sm:$0xff] %v3038
        %4063 = vst [vmem:[%s137 + $0x1a98] sm:$0xff] %v3039
        %4064 = vst [vmem:[%s137 + $0x1aa0] sm:$0xff] %v3040
        %4065 = vst [vmem:[%s137 + $0x1aa8] sm:$0xff] %v3041
        %4066 = vst [vmem:[%s137 + $0x1ab0] sm:$0xff] %v3042
        %4067 = vst [vmem:[%s137 + $0x1ab8] sm:$0xff] %v3043
        %4068 = vst [vmem:[%s137 + $0x1ac0] sm:$0xff] %v3044
        %4069 = vst [vmem:[%s137 + $0x1ac8] sm:$0xff] %v3045
        %4070 = vst [vmem:[%s137 + $0x1ad0] sm:$0xff] %v3046
        %4071 = vst [vmem:[%s137 + $0x1ad8] sm:$0xff] %v3047
        %4072 = vst [vmem:[%s137 + $0x1ae0] sm:$0xff] %v3048
        %4073 = vst [vmem:[%s137 + $0x1ae8] sm:$0xff] %v3049
        %4074 = vst [vmem:[%s137 + $0x1af0] sm:$0xff] %v3050
        %4075 = vst [vmem:[%s137 + $0x1af8] sm:$0xff] %v3051
        %4076 = vst [vmem:[%s137 + $0x1b00] sm:$0xff] %v3052
        %4077 = vst [vmem:[%s137 + $0x1b08] sm:$0xff] %v3053
        %4078 = vst [vmem:[%s137 + $0x1b10] sm:$0xff] %v3054
        %4079 = vst [vmem:[%s137 + $0x1b18] sm:$0xff] %v3055
        %4080 = vst [vmem:[%s137 + $0x1b20] sm:$0xff] %v3056
        %4081 = vst [vmem:[%s137 + $0x1b28] sm:$0xff] %v3057
        %4082 = vst [vmem:[%s137 + $0x1b30] sm:$0xff] %v3058
        %4083 = vst [vmem:[%s137 + $0x1b38] sm:$0xff] %v3059
        %4084 = vst [vmem:[%s137 + $0x1b40] sm:$0xff] %v3060
        %4085 = vst [vmem:[%s137 + $0x1b48] sm:$0xff] %v3061
        %4086 = vst [vmem:[%s137 + $0x1b50] sm:$0xff] %v3062
        %4087 = vst [vmem:[%s137 + $0x1b58] sm:$0xff] %v3063
        %4088 = vst [vmem:[%s137 + $0x1b60] sm:$0xff] %v3064
        %4089 = vst [vmem:[%s137 + $0x1b68] sm:$0xff] %v3065
        %4090 = vst [vmem:[%s137 + $0x1b70] sm:$0xff] %v3066
        %4091 = vst [vmem:[%s137 + $0x1b78] sm:$0xff] %v3067
        %4092 = vst [vmem:[%s137 + $0x1b80] sm:$0xff] %v3068
        %4093 = vst [vmem:[%s137 + $0x1b88] sm:$0xff] %v3069
        %4094 = vst [vmem:[%s137 + $0x1b90] sm:$0xff] %v3070
        %4095 = vst [vmem:[%s137 + $0x1b98] sm:$0xff] %v3071
        %4096 = vst [vmem:[%s137 + $0x1ba0] sm:$0xff] %v3072
        %4097 = vst [vmem:[%s137 + $0x1ba8] sm:$0xff] %v3073
        %4098 = vst [vmem:[%s137 + $0x1bb0] sm:$0xff] %v3074
        %4099 = vst [vmem:[%s137 + $0x1bb8] sm:$0xff] %v3075
        %4100 = vst [vmem:[%s137 + $0x1bc0] sm:$0xff] %v3076
        %4101 = vst [vmem:[%s137 + $0x1bc8] sm:$0xff] %v3077
        %4102 = vst [vmem:[%s137 + $0x1bd0] sm:$0xff] %v3078
        %4103 = vst [vmem:[%s137 + $0x1bd8] sm:$0xff] %v3079
        %4104 = vst [vmem:[%s137 + $0x1be0] sm:$0xff] %v3080
        %4105 = vst [vmem:[%s137 + $0x1be8] sm:$0xff] %v3081
        %4106 = vst [vmem:[%s137 + $0x1bf0] sm:$0xff] %v3082
        %4107 = vst [vmem:[%s137 + $0x1bf8] sm:$0xff] %v3083
        %4108 = vst [vmem:[%s137 + $0x1c00] sm:$0xff] %v3084
        %4109 = vst [vmem:[%s137 + $0x1c08] sm:$0xff] %v3085
        %4110 = vst [vmem:[%s137 + $0x1c10] sm:$0xff] %v3086
        %4111 = vst [vmem:[%s137 + $0x1c18] sm:$0xff] %v3087
        %4112 = vst [vmem:[%s137 + $0x1c20] sm:$0xff] %v3088
        %4113 = vst [vmem:[%s137 + $0x1c28] sm:$0xff] %v3089
        %4114 = vst [vmem:[%s137 + $0x1c30] sm:$0xff] %v3090
        %4115 = vst [vmem:[%s137 + $0x1c38] sm:$0xff] %v3091
        %4116 = vst [vmem:[%s137 + $0x1c40] sm:$0xff] %v3092
        %4117 = vst [vmem:[%s137 + $0x1c48] sm:$0xff] %v3093
        %4118 = vst [vmem:[%s137 + $0x1c50] sm:$0xff] %v3094
        %4119 = vst [vmem:[%s137 + $0x1c58] sm:$0xff] %v3095
        %4120 = vst [vmem:[%s137 + $0x1c60] sm:$0xff] %v3096
        %4121 = vst [vmem:[%s137 + $0x1c68] sm:$0xff] %v3097
        %4122 = vst [vmem:[%s137 + $0x1c70] sm:$0xff] %v3098
        %4123 = vst [vmem:[%s137 + $0x1c78] sm:$0xff] %v3099
        %4124 = vst [vmem:[%s137 + $0x1c80] sm:$0xff] %v3100
        %4125 = vst [vmem:[%s137 + $0x1c88] sm:$0xff] %v3101
        %4126 = vst [vmem:[%s137 + $0x1c90] sm:$0xff] %v3102
        %4127 = vst [vmem:[%s137 + $0x1c98] sm:$0xff] %v3103
        %4128 = vst [vmem:[%s137 + $0x1ca0] sm:$0xff] %v3104
        %4129 = vst [vmem:[%s137 + $0x1ca8] sm:$0xff] %v3105
        %4130 = vst [vmem:[%s137 + $0x1cb0] sm:$0xff] %v3106
        %4131 = vst [vmem:[%s137 + $0x1cb8] sm:$0xff] %v3107
        %4132 = vst [vmem:[%s137 + $0x1cc0] sm:$0xff] %v3108
        %4133 = vst [vmem:[%s137 + $0x1cc8] sm:$0xff] %v3109
        %4134 = vst [vmem:[%s137 + $0x1cd0] sm:$0xff] %v3110
        %4135 = vst [vmem:[%s137 + $0x1cd8] sm:$0xff] %v3111
        %4136 = vst [vmem:[%s137 + $0x1ce0] sm:$0xff] %v3112
        %4137 = vst [vmem:[%s137 + $0x1ce8] sm:$0xff] %v3113
        %4138 = vst [vmem:[%s137 + $0x1cf0] sm:$0xff] %v3114
        %4139 = vst [vmem:[%s137 + $0x1cf8] sm:$0xff] %v3115
        %4140 = vst [vmem:[%s137 + $0x1d00] sm:$0xff] %v3116
        %4141 = vst [vmem:[%s137 + $0x1d08] sm:$0xff] %v3117
        %4142 = vst [vmem:[%s137 + $0x1d10] sm:$0xff] %v3118
        %4143 = vst [vmem:[%s137 + $0x1d18] sm:$0xff] %v3119
        %4144 = vst [vmem:[%s137 + $0x1d20] sm:$0xff] %v3120
        %4145 = vst [vmem:[%s137 + $0x1d28] sm:$0xff] %v3121
        %4146 = vst [vmem:[%s137 + $0x1d30] sm:$0xff] %v3122
        %4147 = vst [vmem:[%s137 + $0x1d38] sm:$0xff] %v3123
        %4148 = vst [vmem:[%s137 + $0x1d40] sm:$0xff] %v3124
        %4149 = vst [vmem:[%s137 + $0x1d48] sm:$0xff] %v3125
        %4150 = vst [vmem:[%s137 + $0x1d50] sm:$0xff] %v3126
        %4151 = vst [vmem:[%s137 + $0x1d58] sm:$0xff] %v3127
        %4152 = vst [vmem:[%s137 + $0x1d60] sm:$0xff] %v3128
        %4153 = vst [vmem:[%s137 + $0x1d68] sm:$0xff] %v3129
        %4154 = vst [vmem:[%s137 + $0x1d70] sm:$0xff] %v3130
        %4155 = vst [vmem:[%s137 + $0x1d78] sm:$0xff] %v3131
        %4156 = vst [vmem:[%s137 + $0x1d80] sm:$0xff] %v3132
        %4157 = vst [vmem:[%s137 + $0x1d88] sm:$0xff] %v3133
        %4158 = vst [vmem:[%s137 + $0x1d90] sm:$0xff] %v3134
        %4159 = vst [vmem:[%s137 + $0x1d98] sm:$0xff] %v3135
        %4160 = vst [vmem:[%s137 + $0x1da0] sm:$0xff] %v3136
        %4161 = vst [vmem:[%s137 + $0x1da8] sm:$0xff] %v3137
        %4162 = vst [vmem:[%s137 + $0x1db0] sm:$0xff] %v3138
        %4163 = vst [vmem:[%s137 + $0x1db8] sm:$0xff] %v3139
        %4164 = vst [vmem:[%s137 + $0x1dc0] sm:$0xff] %v3140
        %4165 = vst [vmem:[%s137 + $0x1dc8] sm:$0xff] %v3141
        %4166 = vst [vmem:[%s137 + $0x1dd0] sm:$0xff] %v3142
        %4167 = vst [vmem:[%s137 + $0x1dd8] sm:$0xff] %v3143
        %4168 = vst [vmem:[%s137 + $0x1de0] sm:$0xff] %v3144
        %4169 = vst [vmem:[%s137 + $0x1de8] sm:$0xff] %v3145
        %4170 = vst [vmem:[%s137 + $0x1df0] sm:$0xff] %v3146
        %4171 = vst [vmem:[%s137 + $0x1df8] sm:$0xff] %v3147
        %4172 = vst [vmem:[%s137 + $0x1e00] sm:$0xff] %v3148
        %4173 = vst [vmem:[%s137 + $0x1e08] sm:$0xff] %v3149
        %4174 = vst [vmem:[%s137 + $0x1e10] sm:$0xff] %v3150
        %4175 = vst [vmem:[%s137 + $0x1e18] sm:$0xff] %v3151
        %4176 = vst [vmem:[%s137 + $0x1e20] sm:$0xff] %v3152
        %4177 = vst [vmem:[%s137 + $0x1e28] sm:$0xff] %v3153
        %4178 = vst [vmem:[%s137 + $0x1e30] sm:$0xff] %v3154
        %4179 = vst [vmem:[%s137 + $0x1e38] sm:$0xff] %v3155
        %4180 = vst [vmem:[%s137 + $0x1e40] sm:$0xff] %v3156
        %4181 = vst [vmem:[%s137 + $0x1e48] sm:$0xff] %v3157
        %4182 = vst [vmem:[%s137 + $0x1e50] sm:$0xff] %v3158
        %4183 = vst [vmem:[%s137 + $0x1e58] sm:$0xff] %v3159
        %4184 = vst [vmem:[%s137 + $0x1e60] sm:$0xff] %v3160
        %4185 = vst [vmem:[%s137 + $0x1e68] sm:$0xff] %v3161
        %4186 = vst [vmem:[%s137 + $0x1e70] sm:$0xff] %v3162
        %4187 = vst [vmem:[%s137 + $0x1e78] sm:$0xff] %v3163
        %4188 = vst [vmem:[%s137 + $0x1e80] sm:$0xff] %v3164
        %4189 = vst [vmem:[%s137 + $0x1e88] sm:$0xff] %v3165
        %4190 = vst [vmem:[%s137 + $0x1e90] sm:$0xff] %v3166
        %4191 = vst [vmem:[%s137 + $0x1e98] sm:$0xff] %v3167
        %4192 = vst [vmem:[%s137 + $0x1ea0] sm:$0xff] %v3168
        %4193 = vst [vmem:[%s137 + $0x1ea8] sm:$0xff] %v3169
        %4194 = vst [vmem:[%s137 + $0x1eb0] sm:$0xff] %v3170
        %4195 = vst [vmem:[%s137 + $0x1eb8] sm:$0xff] %v3171
        %4196 = vst [vmem:[%s137 + $0x1ec0] sm:$0xff] %v3172
        %4197 = vst [vmem:[%s137 + $0x1ec8] sm:$0xff] %v3173
        %4198 = vst [vmem:[%s137 + $0x1ed0] sm:$0xff] %v3174
        %4199 = vst [vmem:[%s137 + $0x1ed8] sm:$0xff] %v3175
        %4200 = vst [vmem:[%s137 + $0x1ee0] sm:$0xff] %v3176
        %4201 = vst [vmem:[%s137 + $0x1ee8] sm:$0xff] %v3177
        %4202 = vst [vmem:[%s137 + $0x1ef0] sm:$0xff] %v3178
        %4203 = vst [vmem:[%s137 + $0x1ef8] sm:$0xff] %v3179
        %4204 = vst [vmem:[%s137 + $0x1f00] sm:$0xff] %v3180
        %4205 = vst [vmem:[%s137 + $0x1f08] sm:$0xff] %v3181
        %4206 = vst [vmem:[%s137 + $0x1f10] sm:$0xff] %v3182
        %4207 = vst [vmem:[%s137 + $0x1f18] sm:$0xff] %v3183
        %4208 = vst [vmem:[%s137 + $0x1f20] sm:$0xff] %v3184
        %4209 = vst [vmem:[%s137 + $0x1f28] sm:$0xff] %v3185
        %4210 = vst [vmem:[%s137 + $0x1f30] sm:$0xff] %v3186
        %4211 = vst [vmem:[%s137 + $0x1f38] sm:$0xff] %v3187
        %4212 = vst [vmem:[%s137 + $0x1f40] sm:$0xff] %v3188
        %4213 = vst [vmem:[%s137 + $0x1f48] sm:$0xff] %v3189
        %4214 = vst [vmem:[%s137 + $0x1f50] sm:$0xff] %v3190
        %4215 = vst [vmem:[%s137 + $0x1f58] sm:$0xff] %v3191
        %4216 = vst [vmem:[%s137 + $0x1f60] sm:$0xff] %v3192
        %4217 = vst [vmem:[%s137 + $0x1f68] sm:$0xff] %v3193
        %4218 = vst [vmem:[%s137 + $0x1f70] sm:$0xff] %v3194
        %4219 = vst [vmem:[%s137 + $0x1f78] sm:$0xff] %v3195
        %4220 = vst [vmem:[%s137 + $0x1f80] sm:$0xff] %v3196
        %4221 = vst [vmem:[%s137 + $0x1f88] sm:$0xff] %v3197
        %4222 = vst [vmem:[%s137 + $0x1f90] sm:$0xff] %v3198
        %4223 = vst [vmem:[%s137 + $0x1f98] sm:$0xff] %v3199
        %4224 = vst [vmem:[%s137 + $0x1fa0] sm:$0xff] %v3200
        %4225 = vst [vmem:[%s137 + $0x1fa8] sm:$0xff] %v3201
        %4226 = vst [vmem:[%s137 + $0x1fb0] sm:$0xff] %v3202
        %4227 = vst [vmem:[%s137 + $0x1fb8] sm:$0xff] %v3203
        %4228 = vst [vmem:[%s137 + $0x1fc0] sm:$0xff] %v3204
        %4229 = vst [vmem:[%s137 + $0x1fc8] sm:$0xff] %v3205
        %4230 = vst [vmem:[%s137 + $0x1fd0] sm:$0xff] %v3206
        %4231 = vst [vmem:[%s137 + $0x1fd8] sm:$0xff] %v3207
        %4232 = vst [vmem:[%s137 + $0x1fe0] sm:$0xff] %v3208
        %4233 = vst [vmem:[%s137 + $0x1fe8] sm:$0xff] %v3209
        %4234 = vst [vmem:[%s137 + $0x1ff0] sm:$0xff] %v3210
        %4235 = vst [vmem:[%s137 + $0x1ff8] sm:$0xff] %v3211
        %s4236 = sand.u32 %s52, 1
        %s4237 = scalar_lea.sflag [#allocation4], %s4236
        %s4238 = sand.u32 %s52, 1
        %s4239 = smul.addr %s4238, 8192
        %s4240 = scalar_lea.vmem [#allocation5], %s4239
        // Predicated region
        $region29: #{tpu_custom_call.1} parent=23 // pred_check
          %p4241 = pneg %p62
        $region30: #{tpu_custom_call.1} parent=23 // pred_check_branch
          %4243 = sbr.rel (%p4241) target = $region32
        $region31: #{tpu_custom_call.1} parent=23 // pred_region
          %s4244 = smul.u32 16, %s18
          %4246 = vsyncadd %s4237, 0
          %s4247 = smul.addr %s4244, 64
          %s4248 = smul.addr %s4247, 8
          %s4249 = scalar_lea.hbm %s1, %s4248
          %s4250 = sshll.u32 %s4240, 4
          %s4251 = int_to_ptr.vmem [resolvable:$true] %s4250
          %s4252 = sshll.u32 %s4249, 4
          %s4253 = int_to_ptr.hbm [resolvable:$true] %s4252
          %4258 = dma.vmem_to_hbm [thread:$0]  %s4251, 131072, %s4253, %s4237, 8192, 8192, 512
        $region32: #{tpu_custom_call.1} parent=23 // pred_fallthru
          _
      $region24: #{tpu_custom_call.1} parent=5 // pred_fallthru
        _
      %p4259 = scmp.le.s32.totalorder 2, %s13
      // Predicated region
      $region33: #{tpu_custom_call.1} parent=5 // pred_check
        %p4260 = pneg %p4259
      $region34: #{tpu_custom_call.1} parent=5 // pred_check_branch
        %4262 = sbr.rel (%p4260) target = $region36
      $region35: #{tpu_custom_call.1} parent=5 // pred_region
        %s4263 = ssub.s32 %s13, 2
        // Predicated region
        $region37: #{tpu_custom_call.1} parent=35 // pred_check
          %p4264 = pneg %p68
        $region38: #{tpu_custom_call.1} parent=35 // pred_check_branch
          %4266 = sbr.rel (%p4264) target = $region40
        $region39: #{tpu_custom_call.1} parent=35 // pred_region
          %s4267 = sand.u32 %s53, 1
          %s4268 = scalar_lea.sflag [#allocation4], %s4267
          %s4269 = sand.u32 %s53, 1
          %s4270 = smul.addr %s4269, 8192
          %s4271 = scalar_lea.vmem [#allocation5], %s4270
          %4273 = dma.done %s4268, 131072
        $region40: #{tpu_custom_call.1} parent=35 // pred_fallthru
          _
      $region36: #{tpu_custom_call.1} parent=5 // pred_fallthru
        _
    $region6: #{tpu_custom_call.1} parent=1 // loop_footer
      %s17 = sadd.s32 1, %s13
    $region7: #{tpu_custom_call.1} parent=1 // loop_footer_branch
      %12 = sbr.rel target = $region3
    $region8: #{tpu_custom_call.1} parent=1 // loop_exit
      _
    %4274 = vsyncpa [#allocation3], 1
    %s4275 = scalar_lea.sflag [#allocation3], 1
    %4276 = vsyncpa %s4275, 1
    %4277 = vsyncpa [#allocation4], 1
    %s4278 = scalar_lea.sflag [#allocation4], 1
    %4279 = vsyncpa %s4278, 1

</llo_original>
